<compile_context>
chip_gen: v7x
topology: tpu7x:2x2x1
jax: 0.10.0
libtpu: 0.0.40
codegen_flags: <defaults>
</compile_context>

<pallas_src>
import math
from functools import partial

import jax
import jax.numpy as jnp
from jax.experimental import pallas as pl
from jax.experimental.pallas import tpu as pltpu


def attention_block_kernel(x_ref, gamma_ref, beta_ref, wqkv_ref, bqkv_ref,
                           wproj_ref, bproj_ref, kbias_ref, out_ref,
                           *, num_heads, num_groups, eps, t_real):
    _, C, Tp = x_ref.shape
    Hh = num_heads
    Ch = C // Hh
    G = num_groups
    Cg = C // G

    # ---- GroupNorm (two-pass mean/variance, kept in the native (C, T) layout).
    # Padded columns of x are zero, so the mean sum is already exact over the real columns;
    # the (x - mean)^2 sum picks up (Tp - T) * mean^2 per channel which we subtract analytically.
    x = x_ref[0].astype(jnp.float32)                                   # (C, Tp)
    s1 = jnp.sum(x, axis=1, keepdims=True)                             # (C, 1)   lane reduce
    mean_g = jnp.sum(s1.reshape(G, Cg), axis=1, keepdims=True) / float(Cg * t_real)
    mean_c = jnp.broadcast_to(mean_g, (G, Cg)).reshape(C, 1)
    diff = x - mean_c
    ss = jnp.sum(diff * diff, axis=1, keepdims=True)                   # (C, 1)
    ss = ss - float(Tp - t_real) * (mean_c * mean_c)                   # padded-column correction
    var_g = jnp.sum(ss.reshape(G, Cg), axis=1, keepdims=True) / float(Cg * t_real)
    rstd_c = jnp.broadcast_to(jax.lax.rsqrt(var_g + eps), (G, Cg)).reshape(C, 1)
    hn = (diff * (rstd_c * gamma_ref[...]) + beta_ref[...]).astype(jnp.bfloat16)

    # ---- single full QKV projection (bf16 MXU operands, f32 accumulation).
    # Weight rows are regrouped in the wrapper as [all-q; all-k; all-v] (head-major channels)
    # with the 1/sqrt(T) q/k scale folded into rows + biases, so q/k/v are contiguous slabs.
    qkv = jnp.dot(wqkv_ref[...], hn, preferred_element_type=jnp.float32) + bqkv_ref[...]
    q = qkv[:C].reshape(Hh, Ch, Tp).astype(jnp.bfloat16)
    k = qkv[C:2 * C].reshape(Hh, Ch, Tp).astype(jnp.bfloat16)
    v = qkv[2 * C:].reshape(Hh, Ch, Tp).astype(jnp.bfloat16)

    # ---- all heads batched: scores, softmax (deferred normalization), PV.
    s = jnp.einsum('hct,hcs->hts', q, k, preferred_element_type=jnp.float32)   # (Hh, Tp, Tp)
    if t_real != Tp:   # static: additive (1, Tp) key-mask bias row instead of a (Tp, Tp) select
        s = s + jnp.reshape(kbias_ref[...], (1, 1, Tp))
    m = jnp.max(s, axis=-1, keepdims=True)                             # (Hh, Tp, 1)
    p = jnp.exp(s - m)                                                 # f32, EUP exp
    l = jnp.sum(p, axis=-1)                                            # (Hh, Tp)
    a = jnp.einsum('hcs,hts->hct', v, p.astype(jnp.bfloat16),
                   preferred_element_type=jnp.float32)                 # (Hh, Ch, Tp)
    # deferred softmax normalization: Ch*Tp multiplies per head instead of Tp*Tp
    inv_l = pl.reciprocal(l, approx=True).reshape(Hh, 1, Tp)
    a = a * inv_l

    # ---- output projection (single C-deep matmul) + residual (f32).
    proj = jnp.dot(wproj_ref[...], a.reshape(C, Tp).astype(jnp.bfloat16),
                   preferred_element_type=jnp.float32) + bproj_ref[...]
    out_ref[0] = (x + proj).astype(out_ref.dtype)


def attention_block(x_nchw, params, *, num_heads, num_groups=32, eps=1e-5):
    N, C, H, W = x_nchw.shape
    T = H * W
    assert C % num_heads == 0, "channels must be divisible by num_heads"
    assert C % num_groups == 0, "channels must be divisible by num_groups"
    Hh = num_heads
    Ch = C // Hh

    # Pad the flattened spatial axis to a lane-dense multiple of 128.
    Tp = max(128, pl.cdiv(T, 128) * 128)
    x = x_nchw.reshape(N, C, T)
    if Tp != T:
        x = jnp.pad(x, ((0, 0), (0, 0), (0, Tp - T)))
    x_in = x.astype(jnp.bfloat16)          # bf16 at the HBM boundary (halves read traffic)

    f32 = jnp.float32
    gamma = params["gamma"].reshape(C, 1).astype(f32)
    beta = params["beta"].reshape(C, 1).astype(f32)

    # QKV conv weight is laid out per head as [q_h; k_h; v_h] blocks of Ch rows
    # (QKVAttentionLegacy). Regroup to [all-q; all-k; all-v] (head-major channel order inside
    # each group) and fold scale = 1/sqrt(length) (applied to BOTH q and k in this spec's
    # QKVAttentionLegacy) into the q/k rows + biases.
    w_qkv = params["w_qkv"].reshape(3 * C, C).astype(f32)
    b_qkv = params["b_qkv"].reshape(3 * C).astype(f32)
    w_r = w_qkv.reshape(Hh, 3, Ch, C).transpose(1, 0, 2, 3).reshape(3 * C, C)
    b_r = b_qkv.reshape(Hh, 3, Ch).transpose(1, 0, 2).reshape(3 * C)
    scale = 1.0 / math.sqrt(T)
    row_scale = jnp.concatenate([jnp.full((2 * C,), scale, f32), jnp.ones((C,), f32)])
    wqkv = (w_r * row_scale[:, None]).astype(jnp.bfloat16)
    bqkv = (b_r * row_scale).reshape(3 * C, 1).astype(f32)

    wproj = params["w_proj"].reshape(C, C).astype(jnp.bfloat16)
    bproj = params["b_proj"].reshape(C, 1).astype(f32)

    # Additive key mask row: 0 for real columns, -1e30 for padded columns.
    kbias = jnp.where(jnp.arange(Tp) < T, 0.0, -1e30).astype(f32).reshape(1, Tp)

    kernel = partial(attention_block_kernel, num_heads=Hh, num_groups=num_groups,
                     eps=eps, t_real=T)

    # Per-step VMEM footprint -> generation-aware scoped-VMEM limit.
    est = (2 * C * Tp * 2 + 2 * C * Tp * 4            # double-buffered x (bf16) / out (f32)
           + (3 * C * C + C * C) * 2 + 8 * C * 4 + Tp * 4   # resident weights / biases / mask
           + C * Tp * (2 + 12 + 6 + 4 + 2 + 4)        # hn, qkv, q/k/v, a, a_bf16, proj temps
           + Hh * Tp * Tp * (4 + 4 + 2))              # scores + probs (f32) + bf16 probs
    try:
        vmem_phys = int(pltpu.get_tpu_info().vmem_capacity_bytes)
    except Exception:
        vmem_phys = 64 << 20                          # assume the smallest (v7x per-TC)
    vmem_limit = int(min(max(est + (8 << 20), 32 << 20), (vmem_phys * 3) // 4))

    cost = pl.CostEstimate(
        flops=int(N * (2 * (3 * C) * C * Tp + 4 * C * Tp * Tp + 2 * C * C * Tp)),
        transcendentals=int(N * Hh * Tp * Tp),
        bytes_accessed=int(N * C * Tp * (2 + 4)                 # x in (bf16) + out (f32)
                           + (3 * C * C + C * C) * 2            # weights once
                           + 8 * C * 4 + Tp * 4))               # biases / affine / mask once

    out = pl.pallas_call(
        kernel,
        out_shape=jax.ShapeDtypeStruct((N, C, Tp), jnp.float32),
        grid_spec=pltpu.PrefetchScalarGridSpec(
            num_scalar_prefetch=0,
            grid=(N,),
            in_specs=[
                pl.BlockSpec((1, C, Tp), lambda n: (n, 0, 0)),        # x (bf16)
                pl.BlockSpec((C, 1), lambda n: (0, 0)),               # gamma
                pl.BlockSpec((C, 1), lambda n: (0, 0)),               # beta
                pl.BlockSpec((3 * C, C), lambda n: (0, 0)),           # qkv W (resident)
                pl.BlockSpec((3 * C, 1), lambda n: (0, 0)),           # qkv b
                pl.BlockSpec((C, C), lambda n: (0, 0)),               # proj W
                pl.BlockSpec((C, 1), lambda n: (0, 0)),               # proj b
                pl.BlockSpec((1, Tp), lambda n: (0, 0)),              # key-mask bias row
            ],
            out_specs=pl.BlockSpec((1, C, Tp), lambda n: (n, 0, 0)),
        ),
        compiler_params=pltpu.CompilerParams(
            dimension_semantics=("parallel",),
            vmem_limit_bytes=vmem_limit),
        cost_estimate=cost,
    )(x_in, gamma, beta, wqkv, bqkv, wproj, bproj, kbias)

    if Tp != T:
        out = out[:, :, :T]
    return out.reshape(N, C, H, W)


def attention_block_reference(x_nchw, params, *, num_heads, num_groups=32, eps=1e-5):
    """Pure-JAX mirror of the PyTorch AttentionBlock (QKVAttentionLegacy) forward."""
    N, C, H, W = x_nchw.shape
    T = H * W
    x = x_nchw.reshape(N, C, T).astype(jnp.float32)

    gamma = params["gamma"].reshape(1, C, 1)
    beta = params["beta"].reshape(1, C, 1)
    G = num_groups
    xg = x.reshape(N, G, (C // G) * T)
    mean = jnp.mean(xg, axis=-1, keepdims=True)
    var = jnp.mean((xg - mean) ** 2, axis=-1, keepdims=True)
    h = ((xg - mean) / jnp.sqrt(var + eps)).reshape(N, C, T) * gamma + beta

    qkv = jnp.einsum('oc,nct->not', params["w_qkv"].reshape(3 * C, C), h) \
        + params["b_qkv"].reshape(1, 3 * C, 1)
    Ch = C // num_heads
    qkv = qkv.reshape(N * num_heads, 3 * Ch, T)
    q, k, v = qkv[:, :Ch], qkv[:, Ch:2 * Ch], qkv[:, 2 * Ch:]
    scale = 1.0 / math.sqrt(T)                 # QKVAttentionLegacy: scale = 1 / sqrt(length)
    w = jnp.einsum('bct,bcs->bts', q * scale, k * scale)
    w = jax.nn.softmax(w, axis=-1)
    a = jnp.einsum('bts,bcs->bct', w, v).reshape(N, C, T)
    proj = jnp.einsum('oc,nct->not', params["w_proj"].reshape(C, C), a) \
        + params["b_proj"].reshape(1, C, 1)
    return (x + proj).reshape(N, C, H, W)


def init_params(key, channels):
    C = channels
    k1, k2, k3, k4, k5, k6 = jax.random.split(key, 6)
    bound = 1.0 / math.sqrt(C)
    # GroupNorm affine (slightly perturbed from the ones/zeros default so the check is non-trivial)
    gamma = 1.0 + 0.1 * jax.random.normal(k1, (C,), jnp.float32)
    beta = 0.1 * jax.random.normal(k2, (C,), jnp.float32)
    w_qkv = jax.random.uniform(k3, (3 * C, C), jnp.float32, -bound, bound)
    b_qkv = jax.random.uniform(k4, (3 * C,), jnp.float32, -bound, bound)
    # NOTE: the real module zero-inits proj_out (zero_module); use non-zero weights here so the
    # numerical check actually exercises the projection + residual path.
    w_proj = jax.random.uniform(k5, (C, C), jnp.float32, -bound, bound)
    b_proj = jax.random.uniform(k6, (C,), jnp.float32, -bound, bound)
    return dict(gamma=gamma, beta=beta, w_qkv=w_qkv, b_qkv=b_qkv,
                w_proj=w_proj, b_proj=b_proj)


if __name__ == "__main__":
    num_heads = 4
    num_groups = 32   # openai_model group_norm uses 32 groups
    C = 32            # divisible by num_heads and num_groups; Ch = 8

    key = jax.random.PRNGKey(0)
    kp, kx1, kx2 = jax.random.split(key, 3)
    params = init_params(kp, C)

    cases = [
        ((2, C, 16, 16), kx1),   # T = 256 (lane-dense, no padding)
        ((2, C, 8, 8), kx2),     # T = 64  (exercises pad-to-128 + additive key-mask bias)
    ]
    for shape, kx in cases:
        x = jax.random.normal(kx, shape, jnp.float32)
        out = jax.block_until_ready(
            attention_block(x, params, num_heads=num_heads, num_groups=num_groups))
        ref = attention_block_reference(x, params, num_heads=num_heads,
                                        num_groups=num_groups)
        assert out.shape == shape
        err = float(jnp.max(jnp.abs(out - ref)))
        assert jnp.allclose(out, ref, atol=2e-2, rtol=2e-2), \
            f"Pallas kernel mismatch vs JAX reference (shape={shape}, max abs err={err})"

    print("KERNEL_OK")
</pallas_src>

<mosaic_0001>
module attributes {stable_mosaic.version = 11 : i64} {
  func.func @attention_block_kernel(%arg0: i32, %arg1: memref<1x32x256xbf16, #tpu.memory_space<vmem>>, %arg2: memref<32x1xf32, #tpu.memory_space<vmem>>, %arg3: memref<32x1xf32, #tpu.memory_space<vmem>>, %arg4: memref<96x32xbf16, #tpu.memory_space<vmem>>, %arg5: memref<96x1xf32, #tpu.memory_space<vmem>>, %arg6: memref<32x32xbf16, #tpu.memory_space<vmem>>, %arg7: memref<32x1xf32, #tpu.memory_space<vmem>>, %arg8: memref<1x256xf32, #tpu.memory_space<vmem>>, %arg9: memref<1x32x256xf32, #tpu.memory_space<vmem>>) attributes {dimension_semantics = [#tpu.dimension_semantics<parallel>], iteration_bounds = array<i64: 2>, scalar_prefetch = 0 : i64, scratch_operands = 0 : i64, tpu.core_type = #tpu.core_type<tc>, window_params = [{transform_indices = @transform_0, window_bounds = array<i64: 1, 32, 256>}, {pipeline_mode = #tpu.pipeline_mode<synchronous>, transform_indices = @transform_1, window_bounds = array<i64: 32, 1>}, {pipeline_mode = #tpu.pipeline_mode<synchronous>, transform_indices = @transform_2, window_bounds = array<i64: 32, 1>}, {pipeline_mode = #tpu.pipeline_mode<synchronous>, transform_indices = @transform_3, window_bounds = array<i64: 96, 32>}, {pipeline_mode = #tpu.pipeline_mode<synchronous>, transform_indices = @transform_4, window_bounds = array<i64: 96, 1>}, {pipeline_mode = #tpu.pipeline_mode<synchronous>, transform_indices = @transform_5, window_bounds = array<i64: 32, 32>}, {pipeline_mode = #tpu.pipeline_mode<synchronous>, transform_indices = @transform_6, window_bounds = array<i64: 32, 1>}, {pipeline_mode = #tpu.pipeline_mode<synchronous>, transform_indices = @transform_7, window_bounds = array<i64: 1, 256>}, {transform_indices = @transform_8, window_bounds = array<i64: 1, 32, 256>}]} {
    %c0 = arith.constant 0 : index
    %c0_0 = arith.constant 0 : index
    %c0_1 = arith.constant 0 : index
    %0 = vector.load %arg1[%c0, %c0_0, %c0_1] : memref<1x32x256xbf16, #tpu.memory_space<vmem>>, vector<1x32x256xbf16>
    %1 = vector.shape_cast %0 : vector<1x32x256xbf16> to vector<32x256xbf16>
    %2 = arith.extf %1 : vector<32x256xbf16> to vector<32x256xf32>
    %cst = arith.constant dense<0.000000e+00> : vector<32xf32>
    %3 = vector.multi_reduction <add>, %2, %cst [1] : vector<32x256xf32> to vector<32xf32>
    %4 = vector.shape_cast %3 : vector<32xf32> to vector<32x1xf32>
    %cst_2 = arith.constant dense<0.000000e+00> : vector<32xf32>
    %5 = vector.multi_reduction <add>, %4, %cst_2 [1] : vector<32x1xf32> to vector<32xf32>
    %6 = vector.shape_cast %5 : vector<32xf32> to vector<32x1xf32>
    %cst_3 = arith.constant 2.560000e+02 : f32
    %7 = vector.broadcast %cst_3 : f32 to vector<32x1xf32>
    %8 = arith.divf %6, %7 : vector<32x1xf32>
    %9 = vector.broadcast %8 : vector<32x1xf32> to vector<32x256xf32>
    %10 = arith.subf %2, %9 : vector<32x256xf32>
    %11 = arith.mulf %10, %10 : vector<32x256xf32>
    %cst_4 = arith.constant dense<0.000000e+00> : vector<32xf32>
    %12 = vector.multi_reduction <add>, %11, %cst_4 [1] : vector<32x256xf32> to vector<32xf32>
    %13 = vector.shape_cast %12 : vector<32xf32> to vector<32x1xf32>
    %14 = arith.mulf %8, %8 : vector<32x1xf32>
    %cst_5 = arith.constant 0.000000e+00 : f32
    %15 = vector.broadcast %cst_5 : f32 to vector<32x1xf32>
    %16 = arith.mulf %15, %14 : vector<32x1xf32>
    %17 = arith.subf %13, %16 : vector<32x1xf32>
    %cst_6 = arith.constant dense<0.000000e+00> : vector<32xf32>
    %18 = vector.multi_reduction <add>, %17, %cst_6 [1] : vector<32x1xf32> to vector<32xf32>
    %19 = vector.shape_cast %18 : vector<32xf32> to vector<32x1xf32>
    %cst_7 = arith.constant 2.560000e+02 : f32
    %20 = vector.broadcast %cst_7 : f32 to vector<32x1xf32>
    %21 = arith.divf %19, %20 : vector<32x1xf32>
    %cst_8 = arith.constant 9.99999974E-6 : f32
    %22 = vector.broadcast %cst_8 : f32 to vector<32x1xf32>
    %23 = arith.addf %21, %22 : vector<32x1xf32>
    %24 = math.rsqrt %23 : vector<32x1xf32>
    %c0_9 = arith.constant 0 : index
    %c0_10 = arith.constant 0 : index
    %25 = vector.load %arg2[%c0_9, %c0_10] : memref<32x1xf32, #tpu.memory_space<vmem>>, vector<32x1xf32>
    %26 = arith.mulf %24, %25 : vector<32x1xf32>
    %27 = vector.broadcast %26 : vector<32x1xf32> to vector<32x256xf32>
    %28 = arith.mulf %10, %27 : vector<32x256xf32>
    %c0_11 = arith.constant 0 : index
    %c0_12 = arith.constant 0 : index
    %29 = vector.load %arg3[%c0_11, %c0_12] : memref<32x1xf32, #tpu.memory_space<vmem>>, vector<32x1xf32>
    %30 = vector.broadcast %29 : vector<32x1xf32> to vector<32x256xf32>
    %31 = arith.addf %28, %30 : vector<32x256xf32>
    %32 = arith.truncf %31 : vector<32x256xf32> to vector<32x256xbf16>
    %c0_13 = arith.constant 0 : index
    %c0_14 = arith.constant 0 : index
    %33 = vector.load %arg4[%c0_13, %c0_14] : memref<96x32xbf16, #tpu.memory_space<vmem>>, vector<96x32xbf16>
    %cst_15 = arith.constant dense<0.000000e+00> : vector<96x256xf32>
    %34 = tpu.matmul %33, %32, %cst_15 {dimension_numbers = #tpu.dot_dimension_numbers<[1], [0], [0], [1], [0, 0, 1, 1], [], []>} : vector<96x32xbf16>, vector<32x256xbf16>, vector<96x256xf32> -> vector<96x256xf32>
    %c0_16 = arith.constant 0 : index
    %c0_17 = arith.constant 0 : index
    %35 = vector.load %arg5[%c0_16, %c0_17] : memref<96x1xf32, #tpu.memory_space<vmem>>, vector<96x1xf32>
    %36 = vector.broadcast %35 : vector<96x1xf32> to vector<96x256xf32>
    %37 = arith.addf %34, %36 : vector<96x256xf32>
    %38 = vector.extract_strided_slice %37 {offsets = [0, 0], sizes = [32, 256], strides = [1, 1]} : vector<96x256xf32> to vector<32x256xf32>
    %39 = vector.shape_cast %38 : vector<32x256xf32> to vector<4x8x256xf32>
    %40 = arith.truncf %39 : vector<4x8x256xf32> to vector<4x8x256xbf16>
    %41 = vector.extract_strided_slice %37 {offsets = [32, 0], sizes = [32, 256], strides = [1, 1]} : vector<96x256xf32> to vector<32x256xf32>
    %42 = vector.shape_cast %41 : vector<32x256xf32> to vector<4x8x256xf32>
    %43 = arith.truncf %42 : vector<4x8x256xf32> to vector<4x8x256xbf16>
    %44 = vector.extract_strided_slice %37 {offsets = [64, 0], sizes = [32, 256], strides = [1, 1]} : vector<96x256xf32> to vector<32x256xf32>
    %45 = vector.shape_cast %44 : vector<32x256xf32> to vector<4x8x256xf32>
    %46 = arith.truncf %45 : vector<4x8x256xf32> to vector<4x8x256xbf16>
    "tpu.trace_start"() <{level = 10 : i32, message = "hct,hcs->hts"}> : () -> ()
    %cst_18 = arith.constant dense<0.000000e+00> : vector<4x256x256xf32>
    %47 = tpu.matmul %40, %43, %cst_18 {dimension_numbers = #tpu.dot_dimension_numbers<[1], [1], [2], [2], [0, 0, 0, 2, 1, 2], [0], [0]>} : vector<4x8x256xbf16>, vector<4x8x256xbf16>, vector<4x256x256xf32> -> vector<4x256x256xf32>
    "tpu.trace_stop"() : () -> ()
    %cst_19 = arith.constant dense<0xFF800000> : vector<4x256xf32>
    %48 = vector.multi_reduction <maximumf>, %47, %cst_19 [2] : vector<4x256x256xf32> to vector<4x256xf32>
    %49 = vector.shape_cast %48 : vector<4x256xf32> to vector<4x256x1xf32>
    %50 = vector.broadcast %49 : vector<4x256x1xf32> to vector<4x256x256xf32>
    %51 = arith.subf %47, %50 : vector<4x256x256xf32>
    %52 = math.exp %51 : vector<4x256x256xf32>
    %cst_20 = arith.constant dense<0.000000e+00> : vector<4x256xf32>
    %53 = vector.multi_reduction <add>, %52, %cst_20 [2] : vector<4x256x256xf32> to vector<4x256xf32>
    %54 = arith.truncf %52 : vector<4x256x256xf32> to vector<4x256x256xbf16>
    "tpu.trace_start"() <{level = 10 : i32, message = "hcs,hts->hct"}> : () -> ()
    %cst_21 = arith.constant dense<0.000000e+00> : vector<4x8x256xf32>
    %55 = tpu.matmul %46, %54, %cst_21 {dimension_numbers = #tpu.dot_dimension_numbers<[2], [2], [1], [1], [0, 0, 0, 1, 1, 1], [0], [0]>} : vector<4x8x256xbf16>, vector<4x256x256xbf16>, vector<4x8x256xf32> -> vector<4x8x256xf32>
    "tpu.trace_stop"() : () -> ()
    %56 = tpu.reciprocal %53 {approx = true} : vector<4x256xf32> -> vector<4x256xf32>
    %57 = vector.shape_cast %56 : vector<4x256xf32> to vector<4x1x256xf32>
    %58 = vector.broadcast %57 : vector<4x1x256xf32> to vector<4x8x256xf32>
    %59 = arith.mulf %55, %58 : vector<4x8x256xf32>
    %c0_22 = arith.constant 0 : index
    %c0_23 = arith.constant 0 : index
    %60 = vector.load %arg6[%c0_22, %c0_23] : memref<32x32xbf16, #tpu.memory_space<vmem>>, vector<32x32xbf16>
    %61 = vector.shape_cast %59 : vector<4x8x256xf32> to vector<32x256xf32>
    %62 = arith.truncf %61 : vector<32x256xf32> to vector<32x256xbf16>
    %cst_24 = arith.constant dense<0.000000e+00> : vector<32x256xf32>
    %63 = tpu.matmul %60, %62, %cst_24 {dimension_numbers = #tpu.dot_dimension_numbers<[1], [0], [0], [1], [0, 0, 1, 1], [], []>} : vector<32x32xbf16>, vector<32x256xbf16>, vector<32x256xf32> -> vector<32x256xf32>
    %c0_25 = arith.constant 0 : index
    %c0_26 = arith.constant 0 : index
    %64 = vector.load %arg7[%c0_25, %c0_26] : memref<32x1xf32, #tpu.memory_space<vmem>>, vector<32x1xf32>
    %65 = vector.broadcast %64 : vector<32x1xf32> to vector<32x256xf32>
    %66 = arith.addf %63, %65 : vector<32x256xf32>
    %67 = arith.addf %2, %66 : vector<32x256xf32>
    %c0_27 = arith.constant 0 : index
    %c0_28 = arith.constant 0 : index
    %c0_29 = arith.constant 0 : index
    %68 = vector.load %arg9[%c0_27, %c0_28, %c0_29] : memref<1x32x256xf32, #tpu.memory_space<vmem>>, vector<1x32x256xf32>
    %69 = vector.shape_cast %68 : vector<1x32x256xf32> to vector<32x256xf32>
    %70 = vector.shape_cast %67 : vector<32x256xf32> to vector<1x32x256xf32>
    tpu.vector_store %arg9[%c0_27, %c0_28, %c0_29], %70 {strides = array<i32>} : memref<1x32x256xf32, #tpu.memory_space<vmem>>, vector<1x32x256xf32>,
    return
  }
  func.func @transform_0(%arg0: i32) -> (i32, i32, i32) {
    %c0_i32 = arith.constant 0 : i32
    %c0_i32_0 = arith.constant 0 : i32
    %c0_i32_1 = arith.constant 0 : i32
    return %arg0, %c0_i32, %c0_i32_0 : i32, i32, i32
  }
  func.func @transform_1(%arg0: i32) -> (i32, i32) {
    %c0_i32 = arith.constant 0 : i32
    %c0_i32_0 = arith.constant 0 : i32
    %c0_i32_1 = arith.constant 0 : i32
    return %c0_i32, %c0_i32_0 : i32, i32
  }
  func.func @transform_2(%arg0: i32) -> (i32, i32) {
    %c0_i32 = arith.constant 0 : i32
    %c0_i32_0 = arith.constant 0 : i32
    %c0_i32_1 = arith.constant 0 : i32
    return %c0_i32, %c0_i32_0 : i32, i32
  }
  func.func @transform_3(%arg0: i32) -> (i32, i32) {
    %c0_i32 = arith.constant 0 : i32
    %c0_i32_0 = arith.constant 0 : i32
    %c0_i32_1 = arith.constant 0 : i32
    return %c0_i32, %c0_i32_0 : i32, i32
  }
  func.func @transform_4(%arg0: i32) -> (i32, i32) {
    %c0_i32 = arith.constant 0 : i32
    %c0_i32_0 = arith.constant 0 : i32
    %c0_i32_1 = arith.constant 0 : i32
    return %c0_i32, %c0_i32_0 : i32, i32
  }
  func.func @transform_5(%arg0: i32) -> (i32, i32) {
    %c0_i32 = arith.constant 0 : i32
    %c0_i32_0 = arith.constant 0 : i32
    %c0_i32_1 = arith.constant 0 : i32
    return %c0_i32, %c0_i32_0 : i32, i32
  }
  func.func @transform_6(%arg0: i32) -> (i32, i32) {
    %c0_i32 = arith.constant 0 : i32
    %c0_i32_0 = arith.constant 0 : i32
    %c0_i32_1 = arith.constant 0 : i32
    return %c0_i32, %c0_i32_0 : i32, i32
  }
  func.func @transform_7(%arg0: i32) -> (i32, i32) {
    %c0_i32 = arith.constant 0 : i32
    %c0_i32_0 = arith.constant 0 : i32
    %c0_i32_1 = arith.constant 0 : i32
    return %c0_i32, %c0_i32_0 : i32, i32
  }
  func.func @transform_8(%arg0: i32) -> (i32, i32, i32) {
    %c0_i32 = arith.constant 0 : i32
    %c0_i32_0 = arith.constant 0 : i32
    %c0_i32_1 = arith.constant 0 : i32
    return %arg0, %c0_i32, %c0_i32_0 : i32, i32, i32
  }
}

</mosaic_0001>

<llo_original>
// kernel: tpu_custom_call.1
$region0: #{tpu_custom_call.1}
  #allocation0 [shape = 'u32[]', space=smem, size = 0x4, offset = 0x4, fixed_abs, tag = 'smem constant byte address 0x4 - core index']
  #allocation1 [shape = 'u32[144,128]{1,0:T(1,128)}', space=vmem, size = 0x12000, scoped, tag = 'internal scratch']
  %s0 = inlined_call_operand.vmem [shape: bf16[2,32,256], index: 0, kind: input, shape index: {}]
  %s1 = inlined_call_operand.vmem [shape: f32[32,1], index: 1, kind: input, shape index: {}]
  %s2 = inlined_call_operand.vmem [shape: f32[32,1], index: 2, kind: input, shape index: {}]
  %s3 = inlined_call_operand.vmem [shape: bf16[96,32], index: 3, kind: input, shape index: {}]
  %s4 = inlined_call_operand.vmem [shape: f32[96,1], index: 4, kind: input, shape index: {}]
  %s5 = inlined_call_operand.vmem [shape: bf16[32,32], index: 5, kind: input, shape index: {}]
  %s6 = inlined_call_operand.vmem [shape: f32[32,1], index: 6, kind: input, shape index: {}]
  %s7 = inlined_call_operand.vmem [shape: f32[1,256], index: 7, kind: input, shape index: {}]
  %s8 = inlined_call_operand.hbm [shape: f32[2,32,256], index: 8, kind: output, shape index: {}]
  %s9 = sld [smem:[#allocation0]]
  $region65: #{tpu_custom_call.1} parent=0
    _
  %s11 = ssub.s32 1, %s9
  %s12 = scalar_select 0, %s11, %s9
  $region1: #{tpu_custom_call.1} parent=0
    #allocation2 [shape = 'u8[65536]{0}', space=vmem, size = 0x10000, scoped, tag = 'output window, operand 0']
    #allocation3 [shape = 's32[2]{0}', space=sflag, size = 0x8, scoped, tag = 'scoped memory for tpu_custom_call.1']
    %13 = vsyncpa [#allocation3], 0
    %s14 = scalar_lea.sflag [#allocation3], 1
    %15 = vsyncpa %s14, 0
    loop: start=0, step=1, limit=4
    $region2: #{tpu_custom_call.1} parent=1 // loop_pre_header
      _
    $region3: #{tpu_custom_call.1} parent=1 // loop_header
      %s17 = sphi 0, %s21
      %p18 = scmp.ge.s32.totalorder %s17, 4
      %s27 = sphi 0, %s29
      %s30 = sphi 0, %s27
      %s31 = sphi 0, %s30
      %s47 = sphi 0, %s31
      %s51 = sphi 0, %s51
      %s53 = sphi 0, %s51
      %s54 = sphi 0, %s53
      %s68 = sphi 0, %s54
      %s72 = sphi 0, %s72
      %s74 = sphi 0, %s72
      %s75 = sphi 0, %s74
      %s89 = sphi 0, %s75
      %s93 = sphi 0, %s93
      %s95 = sphi 0, %s93
      %s96 = sphi 0, %s95
      %s110 = sphi 0, %s96
      %s114 = sphi 0, %s114
      %s116 = sphi 0, %s114
      %s117 = sphi 0, %s116
      %s131 = sphi 0, %s117
      %s135 = sphi 0, %s135
      %s137 = sphi 0, %s135
      %s138 = sphi 0, %s137
      %s152 = sphi 0, %s138
      %s156 = sphi 0, %s156
      %s158 = sphi 0, %s156
      %s159 = sphi 0, %s158
      %s173 = sphi 0, %s159
      %s177 = sphi 0, %s177
      %s179 = sphi 0, %s177
      %s180 = sphi 0, %s179
      %s194 = sphi 0, %s180
      %s200 = sphi 0, %s202
      %s203 = sphi 0, %s200
      %s204 = sphi 0, %s203
      %s220 = sphi 0, %s204
    $region4: #{tpu_custom_call.1} parent=1 // loop_header_branch
      %20 = sbr.rel (%p18) target = $region8
    $region5: #{tpu_custom_call.1} parent=1 // loop_body
      %s22 = ssub.s32 %s17, 1
      %s23 = ssub.s32 %s17, 2
      %s24 = sadd.s32 %s17, 1
      %s25 = ssub.s32 %s17, %s24
      %p26 = scmp.eq.s32.totalorder %s25, 0
      %s28 = sadd.s32 %s27, 1
      %s29 = scalar_select %p26, %s27, %s28
      %p32 = pneg %p26
      %p33 = scmp.eq.s32.totalorder %s17, 1
      %p34 = por %p32, %p33
      %p35 = scmp.ne.s32.totalorder %s27, %s30
      %p36 = scmp.eq.s32.totalorder %s17, 0
      %p37 = por %p35, %p36
      %p38 = scmp.ne.s32.totalorder %s27, %s30
      %p39 = scmp.eq.s32.totalorder %s22, 1
      %p40 = por %p38, %p39
      %p41 = scmp.ne.s32.totalorder %s30, %s31
      %p42 = scmp.eq.s32.totalorder %s22, 0
      %p43 = por %p41, %p42
      %p44 = scmp.ne.s32.totalorder %s30, %s31
      %p45 = scmp.eq.s32.totalorder %s23, 1
      %p46 = por %p44, %p45
      %p48 = scmp.ne.s32.totalorder %s31, %s47
      %p49 = scmp.eq.s32.totalorder %s23, 0
      %p50 = por %p48, %p49
      %s52 = sadd.s32 %s51, 1
      %p55 = scmp.eq.s32.totalorder %s17, 1
      %p56 = scmp.ne.s32.totalorder %s51, %s53
      %p57 = scmp.eq.s32.totalorder %s17, 0
      %p58 = por %p56, %p57
      %p59 = scmp.ne.s32.totalorder %s51, %s53
      %p60 = scmp.eq.s32.totalorder %s22, 1
      %p61 = por %p59, %p60
      %p62 = scmp.ne.s32.totalorder %s53, %s54
      %p63 = scmp.eq.s32.totalorder %s22, 0
      %p64 = por %p62, %p63
      %p65 = scmp.ne.s32.totalorder %s53, %s54
      %p66 = scmp.eq.s32.totalorder %s23, 1
      %p67 = por %p65, %p66
      %p69 = scmp.ne.s32.totalorder %s54, %s68
      %p70 = scmp.eq.s32.totalorder %s23, 0
      %p71 = por %p69, %p70
      %s73 = sadd.s32 %s72, 1
      %p76 = scmp.eq.s32.totalorder %s17, 1
      %p77 = scmp.ne.s32.totalorder %s72, %s74
      %p78 = scmp.eq.s32.totalorder %s17, 0
      %p79 = por %p77, %p78
      %p80 = scmp.ne.s32.totalorder %s72, %s74
      %p81 = scmp.eq.s32.totalorder %s22, 1
      %p82 = por %p80, %p81
      %p83 = scmp.ne.s32.totalorder %s74, %s75
      %p84 = scmp.eq.s32.totalorder %s22, 0
      %p85 = por %p83, %p84
      %p86 = scmp.ne.s32.totalorder %s74, %s75
      %p87 = scmp.eq.s32.totalorder %s23, 1
      %p88 = por %p86, %p87
      %p90 = scmp.ne.s32.totalorder %s75, %s89
      %p91 = scmp.eq.s32.totalorder %s23, 0
      %p92 = por %p90, %p91
      %s94 = sadd.s32 %s93, 1
      %p97 = scmp.eq.s32.totalorder %s17, 1
      %p98 = scmp.ne.s32.totalorder %s93, %s95
      %p99 = scmp.eq.s32.totalorder %s17, 0
      %p100 = por %p98, %p99
      %p101 = scmp.ne.s32.totalorder %s93, %s95
      %p102 = scmp.eq.s32.totalorder %s22, 1
      %p103 = por %p101, %p102
      %p104 = scmp.ne.s32.totalorder %s95, %s96
      %p105 = scmp.eq.s32.totalorder %s22, 0
      %p106 = por %p104, %p105
      %p107 = scmp.ne.s32.totalorder %s95, %s96
      %p108 = scmp.eq.s32.totalorder %s23, 1
      %p109 = por %p107, %p108
      %p111 = scmp.ne.s32.totalorder %s96, %s110
      %p112 = scmp.eq.s32.totalorder %s23, 0
      %p113 = por %p111, %p112
      %s115 = sadd.s32 %s114, 1
      %p118 = scmp.eq.s32.totalorder %s17, 1
      %p119 = scmp.ne.s32.totalorder %s114, %s116
      %p120 = scmp.eq.s32.totalorder %s17, 0
      %p121 = por %p119, %p120
      %p122 = scmp.ne.s32.totalorder %s114, %s116
      %p123 = scmp.eq.s32.totalorder %s22, 1
      %p124 = por %p122, %p123
      %p125 = scmp.ne.s32.totalorder %s116, %s117
      %p126 = scmp.eq.s32.totalorder %s22, 0
      %p127 = por %p125, %p126
      %p128 = scmp.ne.s32.totalorder %s116, %s117
      %p129 = scmp.eq.s32.totalorder %s23, 1
      %p130 = por %p128, %p129
      %p132 = scmp.ne.s32.totalorder %s117, %s131
      %p133 = scmp.eq.s32.totalorder %s23, 0
      %p134 = por %p132, %p133
      %s136 = sadd.s32 %s135, 1
      %p139 = scmp.eq.s32.totalorder %s17, 1
      %p140 = scmp.ne.s32.totalorder %s135, %s137
      %p141 = scmp.eq.s32.totalorder %s17, 0
      %p142 = por %p140, %p141
      %p143 = scmp.ne.s32.totalorder %s135, %s137
      %p144 = scmp.eq.s32.totalorder %s22, 1
      %p145 = por %p143, %p144
      %p146 = scmp.ne.s32.totalorder %s137, %s138
      %p147 = scmp.eq.s32.totalorder %s22, 0
      %p148 = por %p146, %p147
      %p149 = scmp.ne.s32.totalorder %s137, %s138
      %p150 = scmp.eq.s32.totalorder %s23, 1
      %p151 = por %p149, %p150
      %p153 = scmp.ne.s32.totalorder %s138, %s152
      %p154 = scmp.eq.s32.totalorder %s23, 0
      %p155 = por %p153, %p154
      %s157 = sadd.s32 %s156, 1
      %p160 = scmp.eq.s32.totalorder %s17, 1
      %p161 = scmp.ne.s32.totalorder %s156, %s158
      %p162 = scmp.eq.s32.totalorder %s17, 0
      %p163 = por %p161, %p162
      %p164 = scmp.ne.s32.totalorder %s156, %s158
      %p165 = scmp.eq.s32.totalorder %s22, 1
      %p166 = por %p164, %p165
      %p167 = scmp.ne.s32.totalorder %s158, %s159
      %p168 = scmp.eq.s32.totalorder %s22, 0
      %p169 = por %p167, %p168
      %p170 = scmp.ne.s32.totalorder %s158, %s159
      %p171 = scmp.eq.s32.totalorder %s23, 1
      %p172 = por %p170, %p171
      %p174 = scmp.ne.s32.totalorder %s159, %s173
      %p175 = scmp.eq.s32.totalorder %s23, 0
      %p176 = por %p174, %p175
      %s178 = sadd.s32 %s177, 1
      %p181 = scmp.eq.s32.totalorder %s17, 1
      %p182 = scmp.ne.s32.totalorder %s177, %s179
      %p183 = scmp.eq.s32.totalorder %s17, 0
      %p184 = por %p182, %p183
      %p185 = scmp.ne.s32.totalorder %s177, %s179
      %p186 = scmp.eq.s32.totalorder %s22, 1
      %p187 = por %p185, %p186
      %p188 = scmp.ne.s32.totalorder %s179, %s180
      %p189 = scmp.eq.s32.totalorder %s22, 0
      %p190 = por %p188, %p189
      %p191 = scmp.ne.s32.totalorder %s179, %s180
      %p192 = scmp.eq.s32.totalorder %s23, 1
      %p193 = por %p191, %p192
      %p195 = scmp.ne.s32.totalorder %s180, %s194
      %p196 = scmp.eq.s32.totalorder %s23, 0
      %p197 = por %p195, %p196
      %s198 = ssub.s32 %s17, %s24
      %p199 = scmp.eq.s32.totalorder %s198, 0
      %s201 = sadd.s32 %s200, 1
      %s202 = scalar_select %p199, %s200, %s201
      %p205 = pneg %p199
      %p206 = scmp.eq.s32.totalorder %s17, 1
      %p207 = por %p205, %p206
      %p208 = scmp.ne.s32.totalorder %s200, %s203
      %p209 = scmp.eq.s32.totalorder %s17, 0
      %p210 = por %p208, %p209
      %p211 = scmp.ne.s32.totalorder %s200, %s203
      %p212 = scmp.eq.s32.totalorder %s22, 1
      %p213 = por %p211, %p212
      %p214 = scmp.ne.s32.totalorder %s203, %s204
      %p215 = scmp.eq.s32.totalorder %s22, 0
      %p216 = por %p214, %p215
      %p217 = scmp.ne.s32.totalorder %s203, %s204
      %p218 = scmp.eq.s32.totalorder %s23, 1
      %p219 = por %p217, %p218
      %p221 = scmp.ne.s32.totalorder %s204, %s220
      %p222 = scmp.eq.s32.totalorder %s23, 0
      %p223 = por %p221, %p222
      %p224 = scmp.le.s32.totalorder 1, %s17
      %p225 = scmp.lt.s32.totalorder %s17, 3
      %p226 = pnand %p224, %p225
      %p227 = pneg %p226
      // Predicated region
      $region9: #{tpu_custom_call.1} parent=5 // pred_check
        _
      $region10: #{tpu_custom_call.1} parent=5 // pred_check_branch
        %229 = sbr.rel (%p226) target = $region12
      $region11: #{tpu_custom_call.1} parent=5 // pred_region
        %s230 = ssub.s32 %s17, 1
        // Predicated region
        $region13: #{tpu_custom_call.1} parent=11 // pred_check
          %p231 = pneg %p64
        $region14: #{tpu_custom_call.1} parent=11 // pred_check_branch
          %233 = sbr.rel (%p231) target = $region16
        $region15: #{tpu_custom_call.1} parent=11 // pred_region
          _
        $region16: #{tpu_custom_call.1} parent=11 // pred_fallthru
          _
        // Predicated region
        $region17: #{tpu_custom_call.1} parent=11 // pred_check
          %p234 = pneg %p85
        $region18: #{tpu_custom_call.1} parent=11 // pred_check_branch
          %236 = sbr.rel (%p234) target = $region20
        $region19: #{tpu_custom_call.1} parent=11 // pred_region
          _
        $region20: #{tpu_custom_call.1} parent=11 // pred_fallthru
          _
        // Predicated region
        $region21: #{tpu_custom_call.1} parent=11 // pred_check
          %p237 = pneg %p106
        $region22: #{tpu_custom_call.1} parent=11 // pred_check_branch
          %239 = sbr.rel (%p237) target = $region24
        $region23: #{tpu_custom_call.1} parent=11 // pred_region
          _
        $region24: #{tpu_custom_call.1} parent=11 // pred_fallthru
          _
        // Predicated region
        $region25: #{tpu_custom_call.1} parent=11 // pred_check
          %p240 = pneg %p127
        $region26: #{tpu_custom_call.1} parent=11 // pred_check_branch
          %242 = sbr.rel (%p240) target = $region28
        $region27: #{tpu_custom_call.1} parent=11 // pred_region
          _
        $region28: #{tpu_custom_call.1} parent=11 // pred_fallthru
          _
        // Predicated region
        $region29: #{tpu_custom_call.1} parent=11 // pred_check
          %p243 = pneg %p148
        $region30: #{tpu_custom_call.1} parent=11 // pred_check_branch
          %245 = sbr.rel (%p243) target = $region32
        $region31: #{tpu_custom_call.1} parent=11 // pred_region
          _
        $region32: #{tpu_custom_call.1} parent=11 // pred_fallthru
          _
        // Predicated region
        $region33: #{tpu_custom_call.1} parent=11 // pred_check
          %p246 = pneg %p169
        $region34: #{tpu_custom_call.1} parent=11 // pred_check_branch
          %248 = sbr.rel (%p246) target = $region36
        $region35: #{tpu_custom_call.1} parent=11 // pred_region
          _
        $region36: #{tpu_custom_call.1} parent=11 // pred_fallthru
          _
        // Predicated region
        $region37: #{tpu_custom_call.1} parent=11 // pred_check
          %p249 = pneg %p190
        $region38: #{tpu_custom_call.1} parent=11 // pred_check_branch
          %251 = sbr.rel (%p249) target = $region40
        $region39: #{tpu_custom_call.1} parent=11 // pred_region
          _
        $region40: #{tpu_custom_call.1} parent=11 // pred_fallthru
          _
      $region12: #{tpu_custom_call.1} parent=5 // pred_fallthru
        _
      %p252 = scmp.lt.s32.totalorder %s17, 2
      // Predicated region
      $region41: #{tpu_custom_call.1} parent=5 // pred_check
        %p253 = pneg %p252
      $region42: #{tpu_custom_call.1} parent=5 // pred_check_branch
        %255 = sbr.rel (%p253) target = $region44
      $region43: #{tpu_custom_call.1} parent=5 // pred_region
        // Predicated region
        $region45: #{tpu_custom_call.1} parent=43 // pred_check
          %p256 = pneg %p37
        $region46: #{tpu_custom_call.1} parent=43 // pred_check_branch
          %258 = sbr.rel (%p256) target = $region48
        $region47: #{tpu_custom_call.1} parent=43 // pred_region
          %p259 = scmp.lt.s32.totalorder %s17, 1
          %s260 = scalar_select %p259, %s17, 1
          %s261 = smul.addr %s260, 8
          %s262 = smul.addr %s261, 4
          %s263 = scalar_lea.vmem %s0, %s262
        $region48: #{tpu_custom_call.1} parent=43 // pred_fallthru
          _
      $region44: #{tpu_custom_call.1} parent=5 // pred_fallthru
        _
      %p264 = scmp.le.s32.totalorder 1, %s17
      %p265 = scmp.lt.s32.totalorder %s17, 3
      %p266 = pnand %p264, %p265
      %p267 = pneg %p266
      // Predicated region
      $region49: #{tpu_custom_call.1} parent=5 // pred_check
        _
      $region50: #{tpu_custom_call.1} parent=5 // pred_check_branch
        %269 = sbr.rel (%p266) target = $region52
      $region51: #{tpu_custom_call.1} parent=5 // pred_region
        %s270 = ssub.s32 %s17, 1
        %p271 = scmp.lt.s32.totalorder %s22, 1
        %s272 = scalar_select %p271, %s22, 1
        %s273 = smul.addr %s272, 8
        %s274 = smul.addr %s273, 4
        %s275 = scalar_lea.vmem %s0, %s274
        %p276 = pneg %p43
        %p277 = pneg %p40
        %p278 = pneg %p64
        %p279 = pneg %p61
        %p280 = pneg %p85
        %p281 = pneg %p82
        %p282 = pneg %p106
        %p283 = pneg %p103
        %p284 = pneg %p127
        %p285 = pneg %p124
        %p286 = pneg %p148
        %p287 = pneg %p145
        %p288 = pneg %p169
        %p289 = pneg %p166
        %p290 = pneg %p190
        %p291 = pneg %p187
        %p292 = pneg %p216
        %p293 = pneg %p213
        %s294 = sand.u32 %s203, 1
        %s295 = scalar_lea.sflag [#allocation3], %s294
        %s296 = sand.u32 %s203, 1
        %s297 = smul.addr %s296, 64
        %s298 = scalar_lea.vmem [#allocation2], %s297
        %p299 = scmp.lt.s32.totalorder %s22, 1
        %s300 = scalar_select %p299, %s22, 1
        %s301 = smul.addr %s300, 8
        %s302 = smul.addr %s301, 4
        %s303 = scalar_lea.vmem %s0, %s302
        %v305 = vld [vmem:[%s303] sm:$0xff]
        %v306 = vld [vmem:[%s303 + $0x8] sm:$0xff]
        %v307 = vld [vmem:[%s303 + $0x10] sm:$0xff]
        %v308 = vld [vmem:[%s303 + $0x18] sm:$0xff]
        %v309 = vunpack.c.l.bf16 %v305
        %v310 = vunpack.c.h.bf16 %v305
        %v311 = vunpack.c.l.bf16 %v306
        %v312 = vunpack.c.h.bf16 %v306
        %v313 = vunpack.c.l.bf16 %v307
        %v314 = vunpack.c.h.bf16 %v307
        %v315 = vunpack.c.l.bf16 %v308
        %v316 = vunpack.c.h.bf16 %v308
        %v317 = vadd.f32 %v309, %v310
        %318 = vadd.xlane.f32.xlu0 %v317
        %v319 = vpop.xlane.xlu0 %318
        %v320 = vadd.f32 %v311, %v312
        %321 = vadd.xlane.f32.xlu0 %v320
        %v322 = vpop.xlane.xlu0 %321
        %v323 = vadd.f32 %v313, %v314
        %324 = vadd.xlane.f32.xlu0 %v323
        %v325 = vpop.xlane.xlu0 %324
        %v326 = vadd.f32 %v315, %v316
        %327 = vadd.xlane.f32.xlu0 %v326
        %v328 = vpop.xlane.xlu0 %327
        %v329 = vadd.f32 %v319, 0.0
        %v330 = vadd.f32 %v322, 0.0
        %v331 = vadd.f32 %v325, 0.0
        %v332 = vadd.f32 %v328, 0.0
        %v333 = vrcp.pop 256.0
        %v334 = vmul.f32 %v329, %v333
        %v335 = vmul.f32 %v330, %v333
        %v336 = vmul.f32 %v331, %v333
        %v337 = vmul.f32 %v332, %v333
        %v338 = vsub.f32 %v309, %v334
        %v339 = vsub.f32 %v310, %v334
        %v340 = vsub.f32 %v311, %v335
        %v341 = vsub.f32 %v312, %v335
        %v342 = vsub.f32 %v313, %v336
        %v343 = vsub.f32 %v314, %v336
        %v344 = vsub.f32 %v315, %v337
        %v345 = vsub.f32 %v316, %v337
        %v346 = vmul.f32 %v338, %v338
        %v347 = vmul.f32 %v339, %v339
        %v348 = vmul.f32 %v340, %v340
        %v349 = vmul.f32 %v341, %v341
        %v350 = vmul.f32 %v342, %v342
        %v351 = vmul.f32 %v343, %v343
        %v352 = vmul.f32 %v344, %v344
        %v353 = vmul.f32 %v345, %v345
        %v354 = vadd.f32 %v346, %v347
        %355 = vadd.xlane.f32.xlu0 %v354
        %v356 = vpop.xlane.xlu0 %355
        %v357 = vadd.f32 %v348, %v349
        %358 = vadd.xlane.f32.xlu0 %v357
        %v359 = vpop.xlane.xlu0 %358
        %v360 = vadd.f32 %v350, %v351
        %361 = vadd.xlane.f32.xlu0 %v360
        %v362 = vpop.xlane.xlu0 %361
        %v363 = vadd.f32 %v352, %v353
        %364 = vadd.xlane.f32.xlu0 %v363
        %v365 = vpop.xlane.xlu0 %364
        %v366 = vmul.f32 %v334, %v334
        %v367 = vmul.f32 %v335, %v335
        %v368 = vmul.f32 %v336, %v336
        %v369 = vmul.f32 %v337, %v337
        %v370 = vmul.f32 %v366, 0.0
        %v371 = vmul.f32 %v367, 0.0
        %v372 = vmul.f32 %v368, 0.0
        %v373 = vmul.f32 %v369, 0.0
        %v374 = vsub.f32 %v356, %v370
        %v375 = vsub.f32 %v359, %v371
        %v376 = vsub.f32 %v362, %v372
        %v377 = vsub.f32 %v365, %v373
        %v378 = vadd.f32 %v374, 0.0
        %v379 = vadd.f32 %v375, 0.0
        %v380 = vadd.f32 %v376, 0.0
        %v381 = vadd.f32 %v377, 0.0
        %v382 = vmul.f32 %v378, %v333
        %v383 = vmul.f32 %v379, %v333
        %v384 = vmul.f32 %v380, %v333
        %v385 = vmul.f32 %v381, %v333
        %v386 = vadd.f32 %v382, 1e-05
        %v387 = vadd.f32 %v383, 1e-05
        %v388 = vadd.f32 %v384, 1e-05
        %v389 = vadd.f32 %v385, 1e-05
        %v390 = vrsqrt.pop %v386
        %v391 = vrsqrt.pop %v387
        %v392 = vrsqrt.pop %v388
        %v393 = vrsqrt.pop %v389
        %v394 = vld [vmem:[%s1] sm:$0xff]
        %v395 = vld [vmem:[%s1 + $0x8] sm:$0xff]
        %v396 = vld [vmem:[%s1 + $0x10] sm:$0xff]
        %v397 = vld [vmem:[%s1 + $0x18] sm:$0xff]
        %v398 = vmul.f32 %v390, %v394
        %v399 = vmul.f32 %v391, %v395
        %v400 = vmul.f32 %v392, %v396
        %v401 = vmul.f32 %v393, %v397
        %403 = vset.pattern.permute.xlu0 0
        %404 = vperm.xlu0 %403, %v398
        %v405 = vpop.permute.xlu0 %404
        %408 = vset.pattern.permute.xlu0 0
        %409 = vperm.xlu0 %408, %v399
        %v410 = vpop.permute.xlu0 %409
        %413 = vset.pattern.permute.xlu0 0
        %414 = vperm.xlu0 %413, %v400
        %v415 = vpop.permute.xlu0 %414
        %418 = vset.pattern.permute.xlu0 0
        %419 = vperm.xlu0 %418, %v401
        %v420 = vpop.permute.xlu0 %419
        %v422 = vmul.f32 %v338, %v405
        %v423 = vmul.f32 %v339, %v405
        %v424 = vmul.f32 %v340, %v410
        %v425 = vmul.f32 %v341, %v410
        %v426 = vmul.f32 %v342, %v415
        %v427 = vmul.f32 %v343, %v415
        %v428 = vmul.f32 %v344, %v420
        %v429 = vmul.f32 %v345, %v420
        %v430 = vld [vmem:[%s2] sm:$0xff]
        %v431 = vld [vmem:[%s2 + $0x8] sm:$0xff]
        %v432 = vld [vmem:[%s2 + $0x10] sm:$0xff]
        %v433 = vld [vmem:[%s2 + $0x18] sm:$0xff]
        %435 = vset.pattern.permute.xlu0 0
        %436 = vperm.xlu0 %435, %v430
        %v437 = vpop.permute.xlu0 %436
        %440 = vset.pattern.permute.xlu0 0
        %441 = vperm.xlu0 %440, %v431
        %v442 = vpop.permute.xlu0 %441
        %445 = vset.pattern.permute.xlu0 0
        %446 = vperm.xlu0 %445, %v432
        %v447 = vpop.permute.xlu0 %446
        %450 = vset.pattern.permute.xlu0 0
        %451 = vperm.xlu0 %450, %v433
        %v452 = vpop.permute.xlu0 %451
        %v454 = vadd.f32 %v422, %v437
        %v455 = vadd.f32 %v423, %v437
        %v456 = vadd.f32 %v424, %v442
        %v457 = vadd.f32 %v425, %v442
        %v458 = vadd.f32 %v426, %v447
        %v459 = vadd.f32 %v427, %v447
        %v460 = vadd.f32 %v428, %v452
        %v461 = vadd.f32 %v429, %v452
        %v462 = vpack.c.bf16 %v456, %v454
        %v463 = vpack.c.bf16 %v457, %v455
        %v464 = vpack.c.bf16 %v460, %v458
        %v465 = vpack.c.bf16 %v461, %v459
        %v466 = vld [vmem:[%s3] sm:$0xf]
        %v467 = vld [vmem:[%s3 + $0x4] sm:$0xf]
        %v468 = vld [vmem:[%s3 + $0x8] sm:$0xf]
        %v469 = vld [vmem:[%s3 + $0xc] sm:$0xf]
        %v470 = vld [vmem:[%s3 + $0x10] sm:$0xf]
        %v471 = vld [vmem:[%s3 + $0x14] sm:$0xf]
        %v472 = vld [vmem:[%s3 + $0x18] sm:$0xf]
        %v473 = vld [vmem:[%s3 + $0x1c] sm:$0xf]
        %v474 = vld [vmem:[%s3 + $0x20] sm:$0xf]
        %v475 = vld [vmem:[%s3 + $0x24] sm:$0xf]
        %v476 = vld [vmem:[%s3 + $0x28] sm:$0xf]
        %v477 = vld [vmem:[%s3 + $0x2c] sm:$0xf]
        %v478 = vld [vmem:[%s4] sm:$0xff]
        %v479 = vld [vmem:[%s4 + $0x8] sm:$0xff]
        %v480 = vld [vmem:[%s4 + $0x10] sm:$0xff]
        %v481 = vld [vmem:[%s4 + $0x18] sm:$0xff]
        %v482 = vld [vmem:[%s4 + $0x20] sm:$0xff]
        %v483 = vld [vmem:[%s4 + $0x28] sm:$0xff]
        %v484 = vld [vmem:[%s4 + $0x30] sm:$0xff]
        %v485 = vld [vmem:[%s4 + $0x38] sm:$0xff]
        %v486 = vld [vmem:[%s4 + $0x40] sm:$0xff]
        %v487 = vld [vmem:[%s4 + $0x48] sm:$0xff]
        %v488 = vld [vmem:[%s4 + $0x50] sm:$0xff]
        %v489 = vld [vmem:[%s4 + $0x58] sm:$0xff]
        %491 = vset.pattern.permute.xlu0 0
        %492 = vperm.xlu0 %491, %v478
        %v493 = vpop.permute.xlu0 %492
        %496 = vset.pattern.permute.xlu0 0
        %497 = vperm.xlu0 %496, %v479
        %v498 = vpop.permute.xlu0 %497
        %501 = vset.pattern.permute.xlu0 0
        %502 = vperm.xlu0 %501, %v480
        %v503 = vpop.permute.xlu0 %502
        %506 = vset.pattern.permute.xlu0 0
        %507 = vperm.xlu0 %506, %v481
        %v508 = vpop.permute.xlu0 %507
        %511 = vset.pattern.permute.xlu0 0
        %512 = vperm.xlu0 %511, %v482
        %v513 = vpop.permute.xlu0 %512
        %516 = vset.pattern.permute.xlu0 0
        %517 = vperm.xlu0 %516, %v483
        %v518 = vpop.permute.xlu0 %517
        %521 = vset.pattern.permute.xlu0 0
        %522 = vperm.xlu0 %521, %v484
        %v523 = vpop.permute.xlu0 %522
        %526 = vset.pattern.permute.xlu0 0
        %527 = vperm.xlu0 %526, %v485
        %v528 = vpop.permute.xlu0 %527
        %531 = vset.pattern.permute.xlu0 0
        %532 = vperm.xlu0 %531, %v486
        %v533 = vpop.permute.xlu0 %532
        %536 = vset.pattern.permute.xlu0 0
        %537 = vperm.xlu0 %536, %v487
        %v538 = vpop.permute.xlu0 %537
        %541 = vset.pattern.permute.xlu0 0
        %542 = vperm.xlu0 %541, %v488
        %v543 = vpop.permute.xlu0 %542
        %546 = vset.pattern.permute.xlu0 0
        %547 = vperm.xlu0 %546, %v489
        %v548 = vpop.permute.xlu0 %547
        %v562 = vunpack.c.l.b16 %v466
        %v563 = vunpack.c.l.b16 %v467
        %v564 = vunpack.c.l.b16 %v468
        %v565 = vunpack.c.l.b16 %v469
        %v566 = vunpack.c.l.b16 %v470
        %v567 = vunpack.c.l.b16 %v471
        %v568 = vunpack.c.l.b16 %v472
        %v569 = vunpack.c.l.b16 %v473
        %v570 = vunpack.c.l.b16 %v474
        %v571 = vunpack.c.l.b16 %v475
        %v572 = vunpack.c.l.b16 %v476
        %v573 = vunpack.c.l.b16 %v477
        %v574 = vpack.c.b16 %v563, %v562
        %v575 = vpack.c.b16 %v565, %v564
        %v576 = vpack.c.b16 %v567, %v566
        %v577 = vpack.c.b16 %v569, %v568
        %v578 = vpack.c.b16 %v571, %v570
        %v579 = vpack.c.b16 %v573, %v572
        %vm580 = vcmask 261120
        %v582 = vsel %vm580, %v574, 0
        %v585 = vsel %vm580, %v575, 0
        %v588 = vsel %vm580, %v576, 0
        %v591 = vsel %vm580, %v577, 0
        %v594 = vsel %vm580, %v578, 0
        %v597 = vsel %vm580, %v579, 0
        %599 = vmatprep.subr.bf16.mxu0 %v463
        %600 = vmatpush1.bf16.msra.mxu0 %v462
        %601 = vmatprep.subr.bf16.mxu0 %v465
        %602 = vmatpush1.bf16.msra.mxu0 %v464
        %603 = vmatprep.subr.bf16.mxu0 0
        %604 = vmatpush1.bf16.msra.mxu0 0
        %605 = vmatprep.subr.bf16.mxu0 0
        %606 = vmatpush1.bf16.msra.mxu0 0
        %607 = vmatprep.subr.bf16.mxu0 0
        %608 = vmatpush1.bf16.msra.mxu0 0
        %609 = vmatprep.subr.bf16.mxu0 0
        %610 = vmatpush1.bf16.msra.mxu0 0
        %611 = vmatprep.subr.bf16.mxu0 0
        %612 = vmatpush1.bf16.msra.mxu0 0
        %613 = vmatprep.subr.bf16.mxu0 0
        %614 = vmatpush1.bf16.msra.mxu0 0
        %615 = vmatprep.subr.bf16.mxu0 0
        %616 = vmatpush1.bf16.msra.mxu0 0
        %617 = vmatprep.subr.bf16.mxu0 0
        %618 = vmatpush1.bf16.msra.mxu0 0
        %619 = vmatprep.subr.bf16.mxu0 0
        %620 = vmatpush1.bf16.msra.mxu0 0
        %621 = vmatprep.subr.bf16.mxu0 0
        %622 = vmatpush1.bf16.msra.mxu0 0
        %623 = vmatprep.subr.bf16.mxu0 0
        %624 = vmatpush1.bf16.msra.mxu0 0
        %625 = vmatprep.subr.bf16.mxu0 0
        %626 = vmatpush1.bf16.msra.mxu0 0
        %627 = vmatprep.subr.bf16.mxu0 0
        %628 = vmatpush1.bf16.msra.mxu0 0
        %629 = vmatprep.subr.bf16.mxu0 0
        %630 = vmatpush1.bf16.msra.mxu0 0
        %631 = vmatprep.mubr.bf16.mxu0 0
        %632 = vmatmul.mubr.bf16.gmra.mrb[0].mxu0 %v582
        %v633 = vpop.f32.mrb[0].mxu0
        %v634 = vadd.f32 %v493, %v633
        %v635 = vpop.f32.mrb[0].mxu0
        %v636 = vadd.f32 %v493, %v635
        %v637 = vpop.f32.mrb[0].mxu0
        %v638 = vadd.f32 %v498, %v637
        %v639 = vpop.f32.mrb[0].mxu0
        %v640 = vadd.f32 %v498, %v639
        %641 = vmatprep.mubr.bf16.mxu0 0
        %642 = vmatmul.mubr.bf16.gmra.mrb[0].mxu0 %v585
        %v643 = vpop.f32.mrb[0].mxu0
        %v644 = vadd.f32 %v503, %v643
        %v645 = vpop.f32.mrb[0].mxu0
        %v646 = vadd.f32 %v503, %v645
        %v647 = vpop.f32.mrb[0].mxu0
        %v648 = vadd.f32 %v508, %v647
        %v649 = vpop.f32.mrb[0].mxu0
        %v650 = vadd.f32 %v508, %v649
        %651 = vmatprep.mubr.bf16.mxu0 0
        %652 = vmatmul.mubr.bf16.gmra.mrb[0].mxu0 %v588
        %v653 = vpop.f32.mrb[0].mxu0
        %v654 = vadd.f32 %v513, %v653
        %v655 = vpop.f32.mrb[0].mxu0
        %v656 = vadd.f32 %v513, %v655
        %v657 = vpop.f32.mrb[0].mxu0
        %v658 = vadd.f32 %v518, %v657
        %v659 = vpop.f32.mrb[0].mxu0
        %v660 = vadd.f32 %v518, %v659
        %661 = vmatprep.mubr.bf16.mxu0 0
        %662 = vmatmul.mubr.bf16.gmra.mrb[0].mxu0 %v591
        %v663 = vpop.f32.mrb[0].mxu0
        %v664 = vadd.f32 %v523, %v663
        %v665 = vpop.f32.mrb[0].mxu0
        %v666 = vadd.f32 %v523, %v665
        %v667 = vpop.f32.mrb[0].mxu0
        %v668 = vadd.f32 %v528, %v667
        %v669 = vpop.f32.mrb[0].mxu0
        %v670 = vadd.f32 %v528, %v669
        %671 = vmatprep.mubr.bf16.mxu0 0
        %672 = vmatmul.mubr.bf16.gmra.mrb[0].mxu0 %v594
        %v673 = vpop.f32.mrb[0].mxu0
        %v674 = vadd.f32 %v533, %v673
        %v675 = vpop.f32.mrb[0].mxu0
        %v676 = vadd.f32 %v533, %v675
        %v677 = vpop.f32.mrb[0].mxu0
        %v678 = vadd.f32 %v538, %v677
        %v679 = vpop.f32.mrb[0].mxu0
        %v680 = vadd.f32 %v538, %v679
        %681 = vmatprep.mubr.bf16.mxu0 0
        %682 = vmatmul.mubr.bf16.gmra.mrb[0].mxu0 %v597
        %v683 = vpop.f32.mrb[0].mxu0
        %v684 = vadd.f32 %v543, %v683
        %v685 = vpop.f32.mrb[0].mxu0
        %v686 = vadd.f32 %v543, %v685
        %v687 = vpop.f32.mrb[0].mxu0
        %v688 = vadd.f32 %v548, %v687
        %v689 = vpop.f32.mrb[0].mxu0
        %v690 = vadd.f32 %v548, %v689
        %691 = vdwg.mxu0
        %v692 = vpack.c.bf16 %v634, %v634
        %v693 = vpack.c.bf16 %v636, %v636
        %v694 = vpack.c.bf16 %v638, %v638
        %v695 = vpack.c.bf16 %v640, %v640
        %v696 = vpack.c.bf16 %v644, %v644
        %v697 = vpack.c.bf16 %v646, %v646
        %v698 = vpack.c.bf16 %v648, %v648
        %v699 = vpack.c.bf16 %v650, %v650
        %v700 = vpack.c.bf16 %v654, %v654
        %v701 = vpack.c.bf16 %v656, %v656
        %v702 = vpack.c.bf16 %v658, %v658
        %v703 = vpack.c.bf16 %v660, %v660
        %v704 = vpack.c.bf16 %v664, %v664
        %v705 = vpack.c.bf16 %v666, %v666
        %v706 = vpack.c.bf16 %v668, %v668
        %v707 = vpack.c.bf16 %v670, %v670
        %v708 = vpack.c.bf16 %v674, %v674
        %v709 = vpack.c.bf16 %v676, %v676
        %v710 = vpack.c.bf16 %v678, %v678
        %v711 = vpack.c.bf16 %v680, %v680
        %v712 = vpack.c.bf16 %v684, %v684
        %v713 = vpack.c.bf16 %v686, %v686
        %v714 = vpack.c.bf16 %v688, %v688
        %v715 = vpack.c.bf16 %v690, %v690
        %716 = vxpose.xlu0.c.b16.start [1/8] %v692, 128
        %717 = vxpose.xlu0.c.b16.cont [2/8] 0, 128
        %718 = vxpose.xlu0.c.b16.cont [3/8] 0, 128
        %719 = vxpose.xlu0.c.b16.cont [4/8] 0, 128
        %720 = vxpose.xlu0.c.b16.cont [5/8] 0, 128
        %721 = vxpose.xlu0.c.b16.cont [6/8] 0, 128
        %722 = vxpose.xlu0.c.b16.cont [7/8] 0, 128
        %723 = vxpose.xlu0.c.b16.end [8/8] 0, 128
        %v724 = vpop.trf.xlu0
        %v725 = vpop.trf.xlu0
        %v726 = vpop.trf.xlu0
        %v727 = vpop.trf.xlu0
        %v728 = vpop.trf.xlu0
        %v729 = vpop.trf.xlu0
        %v730 = vpop.trf.xlu0
        %v731 = vpop.trf.xlu0
        %732 = vxpose.xlu0.c.b16.start [1/8] %v693, 128
        %733 = vxpose.xlu0.c.b16.cont [2/8] 0, 128
        %734 = vxpose.xlu0.c.b16.cont [3/8] 0, 128
        %735 = vxpose.xlu0.c.b16.cont [4/8] 0, 128
        %736 = vxpose.xlu0.c.b16.cont [5/8] 0, 128
        %737 = vxpose.xlu0.c.b16.cont [6/8] 0, 128
        %738 = vxpose.xlu0.c.b16.cont [7/8] 0, 128
        %739 = vxpose.xlu0.c.b16.end [8/8] 0, 128
        %v740 = vpop.trf.xlu0
        %v741 = vpop.trf.xlu0
        %v742 = vpop.trf.xlu0
        %v743 = vpop.trf.xlu0
        %v744 = vpop.trf.xlu0
        %v745 = vpop.trf.xlu0
        %v746 = vpop.trf.xlu0
        %v747 = vpop.trf.xlu0
        %vm748 = vcmask 64512
        %v750 = vsel %vm748, %v724, 0
        %v753 = vsel %vm748, %v725, 0
        %v756 = vsel %vm748, %v726, 0
        %v759 = vsel %vm748, %v727, 0
        %v762 = vsel %vm748, %v728, 0
        %v765 = vsel %vm748, %v729, 0
        %v768 = vsel %vm748, %v730, 0
        %v771 = vsel %vm748, %v731, 0
        %v774 = vsel %vm748, %v740, 0
        %v777 = vsel %vm748, %v741, 0
        %v780 = vsel %vm748, %v742, 0
        %v783 = vsel %vm748, %v743, 0
        %v786 = vsel %vm748, %v744, 0
        %v789 = vsel %vm748, %v745, 0
        %v792 = vsel %vm748, %v746, 0
        %v795 = vsel %vm748, %v747, 0
        %vm797 = vcmask 1043456
        %v799 = vsel %vm797, %v700, 0
        %v802 = vsel %vm797, %v701, 0
        %804 = vmatprep.subr.bf16.mxu0 %v802
        %805 = vmatpush1.bf16.msra.mxu0 %v799
        %806 = vmatprep.subr.bf16.mxu0 0
        %807 = vmatpush1.bf16.msra.mxu0 0
        %808 = vmatprep.subr.bf16.mxu0 0
        %809 = vmatpush1.bf16.msra.mxu0 0
        %810 = vmatprep.subr.bf16.mxu0 0
        %811 = vmatpush1.bf16.msra.mxu0 0
        %812 = vmatprep.subr.bf16.mxu0 0
        %813 = vmatpush1.bf16.msra.mxu0 0
        %814 = vmatprep.subr.bf16.mxu0 0
        %815 = vmatpush1.bf16.msra.mxu0 0
        %816 = vmatprep.subr.bf16.mxu0 0
        %817 = vmatpush1.bf16.msra.mxu0 0
        %818 = vmatprep.subr.bf16.mxu0 0
        %819 = vmatpush1.bf16.msra.mxu0 0
        %820 = vmatprep.subr.bf16.mxu0 0
        %821 = vmatpush1.bf16.msra.mxu0 0
        %822 = vmatprep.subr.bf16.mxu0 0
        %823 = vmatpush1.bf16.msra.mxu0 0
        %824 = vmatprep.subr.bf16.mxu0 0
        %825 = vmatpush1.bf16.msra.mxu0 0
        %826 = vmatprep.subr.bf16.mxu0 0
        %827 = vmatpush1.bf16.msra.mxu0 0
        %828 = vmatprep.subr.bf16.mxu0 0
        %829 = vmatpush1.bf16.msra.mxu0 0
        %830 = vmatprep.subr.bf16.mxu0 0
        %831 = vmatpush1.bf16.msra.mxu0 0
        %832 = vmatprep.subr.bf16.mxu0 0
        %833 = vmatpush1.bf16.msra.mxu0 0
        %834 = vmatprep.subr.bf16.mxu0 0
        %835 = vmatpush1.bf16.msra.mxu0 0
        %836 = vmatprep.mubr.bf16.mxu0 0
        %837 = vmatmul.mubr.bf16.gmra.mrb[0].mxu0 %v750
        %v838 = vpop.f32.mrb[0].mxu0
        %v839 = vadd.f32 0.0, %v838
        %v840 = vpop.f32.mrb[0].mxu0
        %v841 = vadd.f32 0.0, %v840
        %v842 = vpop.f32.mrb[0].mxu0
        %v843 = vadd.f32 0.0, %v842
        %v844 = vpop.f32.mrb[0].mxu0
        %v845 = vadd.f32 0.0, %v844
        %846 = vmatprep.mubr.bf16.mxu0 0
        %847 = vmatmul.mubr.bf16.gmra.mrb[0].mxu0 %v753
        %v848 = vpop.f32.mrb[0].mxu0
        %v849 = vadd.f32 0.0, %v848
        %v850 = vpop.f32.mrb[0].mxu0
        %v851 = vadd.f32 0.0, %v850
        %v852 = vpop.f32.mrb[0].mxu0
        %v853 = vadd.f32 0.0, %v852
        %v854 = vpop.f32.mrb[0].mxu0
        %v855 = vadd.f32 0.0, %v854
        %856 = vmatprep.mubr.bf16.mxu0 0
        %857 = vmatmul.mubr.bf16.gmra.mrb[0].mxu0 %v756
        %v858 = vpop.f32.mrb[0].mxu0
        %v859 = vadd.f32 0.0, %v858
        %v860 = vpop.f32.mrb[0].mxu0
        %v861 = vadd.f32 0.0, %v860
        %v862 = vpop.f32.mrb[0].mxu0
        %v863 = vadd.f32 0.0, %v862
        %v864 = vpop.f32.mrb[0].mxu0
        %v865 = vadd.f32 0.0, %v864
        %866 = vmatprep.mubr.bf16.mxu0 0
        %867 = vmatmul.mubr.bf16.gmra.mrb[0].mxu0 %v759
        %v868 = vpop.f32.mrb[0].mxu0
        %v869 = vadd.f32 0.0, %v868
        %v870 = vpop.f32.mrb[0].mxu0
        %v871 = vadd.f32 0.0, %v870
        %v872 = vpop.f32.mrb[0].mxu0
        %v873 = vadd.f32 0.0, %v872
        %v874 = vpop.f32.mrb[0].mxu0
        %v875 = vadd.f32 0.0, %v874
        %876 = vmatprep.mubr.bf16.mxu0 0
        %877 = vmatmul.mubr.bf16.gmra.mrb[0].mxu0 %v762
        %v878 = vpop.f32.mrb[0].mxu0
        %v879 = vadd.f32 0.0, %v878
        %v880 = vpop.f32.mrb[0].mxu0
        %v881 = vadd.f32 0.0, %v880
        %v882 = vpop.f32.mrb[0].mxu0
        %v883 = vadd.f32 0.0, %v882
        %v884 = vpop.f32.mrb[0].mxu0
        %v885 = vadd.f32 0.0, %v884
        %886 = vmatprep.mubr.bf16.mxu0 0
        %887 = vmatmul.mubr.bf16.gmra.mrb[0].mxu0 %v765
        %v888 = vpop.f32.mrb[0].mxu0
        %v889 = vadd.f32 0.0, %v888
        %v890 = vpop.f32.mrb[0].mxu0
        %v891 = vadd.f32 0.0, %v890
        %v892 = vpop.f32.mrb[0].mxu0
        %v893 = vadd.f32 0.0, %v892
        %v894 = vpop.f32.mrb[0].mxu0
        %v895 = vadd.f32 0.0, %v894
        %896 = vmatprep.mubr.bf16.mxu0 0
        %897 = vmatmul.mubr.bf16.gmra.mrb[0].mxu0 %v768
        %v898 = vpop.f32.mrb[0].mxu0
        %v899 = vadd.f32 0.0, %v898
        %v900 = vpop.f32.mrb[0].mxu0
        %v901 = vadd.f32 0.0, %v900
        %v902 = vpop.f32.mrb[0].mxu0
        %v903 = vadd.f32 0.0, %v902
        %v904 = vpop.f32.mrb[0].mxu0
        %v905 = vadd.f32 0.0, %v904
        %906 = vmatprep.mubr.bf16.mxu0 0
        %907 = vmatmul.mubr.bf16.gmra.mrb[0].mxu0 %v771
        %v908 = vpop.f32.mrb[0].mxu0
        %v909 = vadd.f32 0.0, %v908
        %v910 = vpop.f32.mrb[0].mxu0
        %v911 = vadd.f32 0.0, %v910
        %v912 = vpop.f32.mrb[0].mxu0
        %v913 = vadd.f32 0.0, %v912
        %v914 = vpop.f32.mrb[0].mxu0
        %v915 = vadd.f32 0.0, %v914
        %916 = vmatprep.mubr.bf16.mxu0 0
        %917 = vmatmul.mubr.bf16.gmra.mrb[0].mxu0 %v774
        %v918 = vpop.f32.mrb[0].mxu0
        %v919 = vadd.f32 0.0, %v918
        %v920 = vpop.f32.mrb[0].mxu0
        %v921 = vadd.f32 0.0, %v920
        %v922 = vpop.f32.mrb[0].mxu0
        %v923 = vadd.f32 0.0, %v922
        %v924 = vpop.f32.mrb[0].mxu0
        %v925 = vadd.f32 0.0, %v924
        %926 = vmatprep.mubr.bf16.mxu0 0
        %927 = vmatmul.mubr.bf16.gmra.mrb[0].mxu0 %v777
        %v928 = vpop.f32.mrb[0].mxu0
        %v929 = vadd.f32 0.0, %v928
        %v930 = vpop.f32.mrb[0].mxu0
        %v931 = vadd.f32 0.0, %v930
        %v932 = vpop.f32.mrb[0].mxu0
        %v933 = vadd.f32 0.0, %v932
        %v934 = vpop.f32.mrb[0].mxu0
        %v935 = vadd.f32 0.0, %v934
        %936 = vmatprep.mubr.bf16.mxu0 0
        %937 = vmatmul.mubr.bf16.gmra.mrb[0].mxu0 %v780
        %v938 = vpop.f32.mrb[0].mxu0
        %v939 = vadd.f32 0.0, %v938
        %v940 = vpop.f32.mrb[0].mxu0
        %v941 = vadd.f32 0.0, %v940
        %v942 = vpop.f32.mrb[0].mxu0
        %v943 = vadd.f32 0.0, %v942
        %v944 = vpop.f32.mrb[0].mxu0
        %v945 = vadd.f32 0.0, %v944
        %946 = vmatprep.mubr.bf16.mxu0 0
        %947 = vmatmul.mubr.bf16.gmra.mrb[0].mxu0 %v783
        %v948 = vpop.f32.mrb[0].mxu0
        %v949 = vadd.f32 0.0, %v948
        %v950 = vpop.f32.mrb[0].mxu0
        %v951 = vadd.f32 0.0, %v950
        %v952 = vpop.f32.mrb[0].mxu0
        %v953 = vadd.f32 0.0, %v952
        %v954 = vpop.f32.mrb[0].mxu0
        %v955 = vadd.f32 0.0, %v954
        %956 = vmatprep.mubr.bf16.mxu0 0
        %957 = vmatmul.mubr.bf16.gmra.mrb[0].mxu0 %v786
        %v958 = vpop.f32.mrb[0].mxu0
        %v959 = vadd.f32 0.0, %v958
        %v960 = vpop.f32.mrb[0].mxu0
        %v961 = vadd.f32 0.0, %v960
        %v962 = vpop.f32.mrb[0].mxu0
        %v963 = vadd.f32 0.0, %v962
        %v964 = vpop.f32.mrb[0].mxu0
        %v965 = vadd.f32 0.0, %v964
        %966 = vmatprep.mubr.bf16.mxu0 0
        %967 = vmatmul.mubr.bf16.gmra.mrb[0].mxu0 %v789
        %v968 = vpop.f32.mrb[0].mxu0
        %v969 = vadd.f32 0.0, %v968
        %v970 = vpop.f32.mrb[0].mxu0
        %v971 = vadd.f32 0.0, %v970
        %v972 = vpop.f32.mrb[0].mxu0
        %v973 = vadd.f32 0.0, %v972
        %v974 = vpop.f32.mrb[0].mxu0
        %v975 = vadd.f32 0.0, %v974
        %976 = vmatprep.mubr.bf16.mxu0 0
        %977 = vmatmul.mubr.bf16.gmra.mrb[0].mxu0 %v792
        %v978 = vpop.f32.mrb[0].mxu0
        %v979 = vadd.f32 0.0, %v978
        %v980 = vpop.f32.mrb[0].mxu0
        %v981 = vadd.f32 0.0, %v980
        %v982 = vpop.f32.mrb[0].mxu0
        %v983 = vadd.f32 0.0, %v982
        %v984 = vpop.f32.mrb[0].mxu0
        %v985 = vadd.f32 0.0, %v984
        %986 = vmatprep.mubr.bf16.mxu0 0
        %987 = vmatmul.mubr.bf16.gmra.mrb[0].mxu0 %v795
        %v988 = vpop.f32.mrb[0].mxu0
        %v989 = vadd.f32 0.0, %v988
        %v990 = vpop.f32.mrb[0].mxu0
        %v991 = vadd.f32 0.0, %v990
        %v992 = vpop.f32.mrb[0].mxu0
        %v993 = vadd.f32 0.0, %v992
        %v994 = vpop.f32.mrb[0].mxu0
        %v995 = vadd.f32 0.0, %v994
        %996 = vdwg.mxu0
        %997 = vxpose.xlu0.c.b16.start [1/8] %v694, 128
        %998 = vxpose.xlu0.c.b16.cont [2/8] 0, 128
        %999 = vxpose.xlu0.c.b16.cont [3/8] 0, 128
        %1000 = vxpose.xlu0.c.b16.cont [4/8] 0, 128
        %1001 = vxpose.xlu0.c.b16.cont [5/8] 0, 128
        %1002 = vxpose.xlu0.c.b16.cont [6/8] 0, 128
        %1003 = vxpose.xlu0.c.b16.cont [7/8] 0, 128
        %1004 = vxpose.xlu0.c.b16.end [8/8] 0, 128
        %v1005 = vpop.trf.xlu0
        %v1006 = vpop.trf.xlu0
        %v1007 = vpop.trf.xlu0
        %v1008 = vpop.trf.xlu0
        %v1009 = vpop.trf.xlu0
        %v1010 = vpop.trf.xlu0
        %v1011 = vpop.trf.xlu0
        %v1012 = vpop.trf.xlu0
        %1013 = vxpose.xlu0.c.b16.start [1/8] %v695, 128
        %1014 = vxpose.xlu0.c.b16.cont [2/8] 0, 128
        %1015 = vxpose.xlu0.c.b16.cont [3/8] 0, 128
        %1016 = vxpose.xlu0.c.b16.cont [4/8] 0, 128
        %1017 = vxpose.xlu0.c.b16.cont [5/8] 0, 128
        %1018 = vxpose.xlu0.c.b16.cont [6/8] 0, 128
        %1019 = vxpose.xlu0.c.b16.cont [7/8] 0, 128
        %1020 = vxpose.xlu0.c.b16.end [8/8] 0, 128
        %v1021 = vpop.trf.xlu0
        %v1022 = vpop.trf.xlu0
        %v1023 = vpop.trf.xlu0
        %v1024 = vpop.trf.xlu0
        %v1025 = vpop.trf.xlu0
        %v1026 = vpop.trf.xlu0
        %v1027 = vpop.trf.xlu0
        %v1028 = vpop.trf.xlu0
        %v1030 = vsel %vm748, %v1005, 0
        %v1033 = vsel %vm748, %v1006, 0
        %v1036 = vsel %vm748, %v1007, 0
        %v1039 = vsel %vm748, %v1008, 0
        %v1042 = vsel %vm748, %v1009, 0
        %v1045 = vsel %vm748, %v1010, 0
        %v1048 = vsel %vm748, %v1011, 0
        %v1051 = vsel %vm748, %v1012, 0
        %v1054 = vsel %vm748, %v1021, 0
        %v1057 = vsel %vm748, %v1022, 0
        %v1060 = vsel %vm748, %v1023, 0
        %v1063 = vsel %vm748, %v1024, 0
        %v1066 = vsel %vm748, %v1025, 0
        %v1069 = vsel %vm748, %v1026, 0
        %v1072 = vsel %vm748, %v1027, 0
        %v1075 = vsel %vm748, %v1028, 0
        %v1078 = vsel %vm797, %v702, 0
        %v1081 = vsel %vm797, %v703, 0
        %1083 = vmatprep.subr.bf16.mxu0 %v1081
        %1084 = vmatpush1.bf16.msra.mxu0 %v1078
        %1085 = vmatprep.subr.bf16.mxu0 0
        %1086 = vmatpush1.bf16.msra.mxu0 0
        %1087 = vmatprep.subr.bf16.mxu0 0
        %1088 = vmatpush1.bf16.msra.mxu0 0
        %1089 = vmatprep.subr.bf16.mxu0 0
        %1090 = vmatpush1.bf16.msra.mxu0 0
        %1091 = vmatprep.subr.bf16.mxu0 0
        %1092 = vmatpush1.bf16.msra.mxu0 0
        %1093 = vmatprep.subr.bf16.mxu0 0
        %1094 = vmatpush1.bf16.msra.mxu0 0
        %1095 = vmatprep.subr.bf16.mxu0 0
        %1096 = vmatpush1.bf16.msra.mxu0 0
        %1097 = vmatprep.subr.bf16.mxu0 0
        %1098 = vmatpush1.bf16.msra.mxu0 0
        %1099 = vmatprep.subr.bf16.mxu0 0
        %1100 = vmatpush1.bf16.msra.mxu0 0
        %1101 = vmatprep.subr.bf16.mxu0 0
        %1102 = vmatpush1.bf16.msra.mxu0 0
        %1103 = vmatprep.subr.bf16.mxu0 0
        %1104 = vmatpush1.bf16.msra.mxu0 0
        %1105 = vmatprep.subr.bf16.mxu0 0
        %1106 = vmatpush1.bf16.msra.mxu0 0
        %1107 = vmatprep.subr.bf16.mxu0 0
        %1108 = vmatpush1.bf16.msra.mxu0 0
        %1109 = vmatprep.subr.bf16.mxu0 0
        %1110 = vmatpush1.bf16.msra.mxu0 0
        %1111 = vmatprep.subr.bf16.mxu0 0
        %1112 = vmatpush1.bf16.msra.mxu0 0
        %1113 = vmatprep.subr.bf16.mxu0 0
        %1114 = vmatpush1.bf16.msra.mxu0 0
        %1115 = vmatprep.mubr.bf16.mxu0 0
        %1116 = vmatmul.mubr.bf16.gmra.mrb[0].mxu0 %v1030
        %v1117 = vpop.f32.mrb[0].mxu0
        %v1118 = vadd.f32 0.0, %v1117
        %v1119 = vpop.f32.mrb[0].mxu0
        %v1120 = vadd.f32 0.0, %v1119
        %v1121 = vpop.f32.mrb[0].mxu0
        %v1122 = vadd.f32 0.0, %v1121
        %v1123 = vpop.f32.mrb[0].mxu0
        %v1124 = vadd.f32 0.0, %v1123
        %1125 = vmatprep.mubr.bf16.mxu0 0
        %1126 = vmatmul.mubr.bf16.gmra.mrb[0].mxu0 %v1033
        %v1127 = vpop.f32.mrb[0].mxu0
        %v1128 = vadd.f32 0.0, %v1127
        %v1129 = vpop.f32.mrb[0].mxu0
        %v1130 = vadd.f32 0.0, %v1129
        %v1131 = vpop.f32.mrb[0].mxu0
        %v1132 = vadd.f32 0.0, %v1131
        %v1133 = vpop.f32.mrb[0].mxu0
        %v1134 = vadd.f32 0.0, %v1133
        %1135 = vmatprep.mubr.bf16.mxu0 0
        %1136 = vmatmul.mubr.bf16.gmra.mrb[0].mxu0 %v1036
        %v1137 = vpop.f32.mrb[0].mxu0
        %v1138 = vadd.f32 0.0, %v1137
        %v1139 = vpop.f32.mrb[0].mxu0
        %v1140 = vadd.f32 0.0, %v1139
        %v1141 = vpop.f32.mrb[0].mxu0
        %v1142 = vadd.f32 0.0, %v1141
        %v1143 = vpop.f32.mrb[0].mxu0
        %v1144 = vadd.f32 0.0, %v1143
        %1145 = vmatprep.mubr.bf16.mxu0 0
        %1146 = vmatmul.mubr.bf16.gmra.mrb[0].mxu0 %v1039
        %v1147 = vpop.f32.mrb[0].mxu0
        %v1148 = vadd.f32 0.0, %v1147
        %v1149 = vpop.f32.mrb[0].mxu0
        %v1150 = vadd.f32 0.0, %v1149
        %v1151 = vpop.f32.mrb[0].mxu0
        %v1152 = vadd.f32 0.0, %v1151
        %v1153 = vpop.f32.mrb[0].mxu0
        %v1154 = vadd.f32 0.0, %v1153
        %1155 = vmatprep.mubr.bf16.mxu0 0
        %1156 = vmatmul.mubr.bf16.gmra.mrb[0].mxu0 %v1042
        %v1157 = vpop.f32.mrb[0].mxu0
        %v1158 = vadd.f32 0.0, %v1157
        %v1159 = vpop.f32.mrb[0].mxu0
        %v1160 = vadd.f32 0.0, %v1159
        %v1161 = vpop.f32.mrb[0].mxu0
        %v1162 = vadd.f32 0.0, %v1161
        %v1163 = vpop.f32.mrb[0].mxu0
        %v1164 = vadd.f32 0.0, %v1163
        %1165 = vmatprep.mubr.bf16.mxu0 0
        %1166 = vmatmul.mubr.bf16.gmra.mrb[0].mxu0 %v1045
        %v1167 = vpop.f32.mrb[0].mxu0
        %v1168 = vadd.f32 0.0, %v1167
        %v1169 = vpop.f32.mrb[0].mxu0
        %v1170 = vadd.f32 0.0, %v1169
        %v1171 = vpop.f32.mrb[0].mxu0
        %v1172 = vadd.f32 0.0, %v1171
        %v1173 = vpop.f32.mrb[0].mxu0
        %v1174 = vadd.f32 0.0, %v1173
        %1175 = vmatprep.mubr.bf16.mxu0 0
        %1176 = vmatmul.mubr.bf16.gmra.mrb[0].mxu0 %v1048
        %v1177 = vpop.f32.mrb[0].mxu0
        %v1178 = vadd.f32 0.0, %v1177
        %v1179 = vpop.f32.mrb[0].mxu0
        %v1180 = vadd.f32 0.0, %v1179
        %v1181 = vpop.f32.mrb[0].mxu0
        %v1182 = vadd.f32 0.0, %v1181
        %v1183 = vpop.f32.mrb[0].mxu0
        %v1184 = vadd.f32 0.0, %v1183
        %1185 = vmatprep.mubr.bf16.mxu0 0
        %1186 = vmatmul.mubr.bf16.gmra.mrb[0].mxu0 %v1051
        %v1187 = vpop.f32.mrb[0].mxu0
        %v1188 = vadd.f32 0.0, %v1187
        %v1189 = vpop.f32.mrb[0].mxu0
        %v1190 = vadd.f32 0.0, %v1189
        %v1191 = vpop.f32.mrb[0].mxu0
        %v1192 = vadd.f32 0.0, %v1191
        %v1193 = vpop.f32.mrb[0].mxu0
        %v1194 = vadd.f32 0.0, %v1193
        %1195 = vmatprep.mubr.bf16.mxu0 0
        %1196 = vmatmul.mubr.bf16.gmra.mrb[0].mxu0 %v1054
        %v1197 = vpop.f32.mrb[0].mxu0
        %v1198 = vadd.f32 0.0, %v1197
        %v1199 = vpop.f32.mrb[0].mxu0
        %v1200 = vadd.f32 0.0, %v1199
        %v1201 = vpop.f32.mrb[0].mxu0
        %v1202 = vadd.f32 0.0, %v1201
        %v1203 = vpop.f32.mrb[0].mxu0
        %v1204 = vadd.f32 0.0, %v1203
        %1205 = vmatprep.mubr.bf16.mxu0 0
        %1206 = vmatmul.mubr.bf16.gmra.mrb[0].mxu0 %v1057
        %v1207 = vpop.f32.mrb[0].mxu0
        %v1208 = vadd.f32 0.0, %v1207
        %v1209 = vpop.f32.mrb[0].mxu0
        %v1210 = vadd.f32 0.0, %v1209
        %v1211 = vpop.f32.mrb[0].mxu0
        %v1212 = vadd.f32 0.0, %v1211
        %v1213 = vpop.f32.mrb[0].mxu0
        %v1214 = vadd.f32 0.0, %v1213
        %1215 = vmatprep.mubr.bf16.mxu0 0
        %1216 = vmatmul.mubr.bf16.gmra.mrb[0].mxu0 %v1060
        %v1217 = vpop.f32.mrb[0].mxu0
        %v1218 = vadd.f32 0.0, %v1217
        %v1219 = vpop.f32.mrb[0].mxu0
        %v1220 = vadd.f32 0.0, %v1219
        %v1221 = vpop.f32.mrb[0].mxu0
        %v1222 = vadd.f32 0.0, %v1221
        %v1223 = vpop.f32.mrb[0].mxu0
        %v1224 = vadd.f32 0.0, %v1223
        %1225 = vmatprep.mubr.bf16.mxu0 0
        %1226 = vmatmul.mubr.bf16.gmra.mrb[0].mxu0 %v1063
        %v1227 = vpop.f32.mrb[0].mxu0
        %v1228 = vadd.f32 0.0, %v1227
        %v1229 = vpop.f32.mrb[0].mxu0
        %v1230 = vadd.f32 0.0, %v1229
        %v1231 = vpop.f32.mrb[0].mxu0
        %v1232 = vadd.f32 0.0, %v1231
        %v1233 = vpop.f32.mrb[0].mxu0
        %v1234 = vadd.f32 0.0, %v1233
        %1235 = vmatprep.mubr.bf16.mxu0 0
        %1236 = vmatmul.mubr.bf16.gmra.mrb[0].mxu0 %v1066
        %v1237 = vpop.f32.mrb[0].mxu0
        %v1238 = vadd.f32 0.0, %v1237
        %v1239 = vpop.f32.mrb[0].mxu0
        %v1240 = vadd.f32 0.0, %v1239
        %v1241 = vpop.f32.mrb[0].mxu0
        %v1242 = vadd.f32 0.0, %v1241
        %v1243 = vpop.f32.mrb[0].mxu0
        %v1244 = vadd.f32 0.0, %v1243
        %1245 = vmatprep.mubr.bf16.mxu0 0
        %1246 = vmatmul.mubr.bf16.gmra.mrb[0].mxu0 %v1069
        %v1247 = vpop.f32.mrb[0].mxu0
        %v1248 = vadd.f32 0.0, %v1247
        %v1249 = vpop.f32.mrb[0].mxu0
        %v1250 = vadd.f32 0.0, %v1249
        %v1251 = vpop.f32.mrb[0].mxu0
        %v1252 = vadd.f32 0.0, %v1251
        %v1253 = vpop.f32.mrb[0].mxu0
        %v1254 = vadd.f32 0.0, %v1253
        %1255 = vmatprep.mubr.bf16.mxu0 0
        %1256 = vmatmul.mubr.bf16.gmra.mrb[0].mxu0 %v1072
        %v1257 = vpop.f32.mrb[0].mxu0
        %v1258 = vadd.f32 0.0, %v1257
        %v1259 = vpop.f32.mrb[0].mxu0
        %v1260 = vadd.f32 0.0, %v1259
        %v1261 = vpop.f32.mrb[0].mxu0
        %v1262 = vadd.f32 0.0, %v1261
        %v1263 = vpop.f32.mrb[0].mxu0
        %v1264 = vadd.f32 0.0, %v1263
        %1265 = vmatprep.mubr.bf16.mxu0 0
        %1266 = vmatmul.mubr.bf16.gmra.mrb[0].mxu0 %v1075
        %v1267 = vpop.f32.mrb[0].mxu0
        %v1268 = vadd.f32 0.0, %v1267
        %v1269 = vpop.f32.mrb[0].mxu0
        %v1270 = vadd.f32 0.0, %v1269
        %v1271 = vpop.f32.mrb[0].mxu0
        %v1272 = vadd.f32 0.0, %v1271
        %v1273 = vpop.f32.mrb[0].mxu0
        %v1274 = vadd.f32 0.0, %v1273
        %1275 = vdwg.mxu0
        %1276 = vxpose.xlu0.c.b16.start [1/8] %v696, 128
        %1277 = vxpose.xlu0.c.b16.cont [2/8] 0, 128
        %1278 = vxpose.xlu0.c.b16.cont [3/8] 0, 128
        %1279 = vxpose.xlu0.c.b16.cont [4/8] 0, 128
        %1280 = vxpose.xlu0.c.b16.cont [5/8] 0, 128
        %1281 = vxpose.xlu0.c.b16.cont [6/8] 0, 128
        %1282 = vxpose.xlu0.c.b16.cont [7/8] 0, 128
        %1283 = vxpose.xlu0.c.b16.end [8/8] 0, 128
        %v1284 = vpop.trf.xlu0
        %v1285 = vpop.trf.xlu0
        %v1286 = vpop.trf.xlu0
        %v1287 = vpop.trf.xlu0
        %v1288 = vpop.trf.xlu0
        %v1289 = vpop.trf.xlu0
        %v1290 = vpop.trf.xlu0
        %v1291 = vpop.trf.xlu0
        %1292 = vxpose.xlu0.c.b16.start [1/8] %v697, 128
        %1293 = vxpose.xlu0.c.b16.cont [2/8] 0, 128
        %1294 = vxpose.xlu0.c.b16.cont [3/8] 0, 128
        %1295 = vxpose.xlu0.c.b16.cont [4/8] 0, 128
        %1296 = vxpose.xlu0.c.b16.cont [5/8] 0, 128
        %1297 = vxpose.xlu0.c.b16.cont [6/8] 0, 128
        %1298 = vxpose.xlu0.c.b16.cont [7/8] 0, 128
        %1299 = vxpose.xlu0.c.b16.end [8/8] 0, 128
        %v1300 = vpop.trf.xlu0
        %v1301 = vpop.trf.xlu0
        %v1302 = vpop.trf.xlu0
        %v1303 = vpop.trf.xlu0
        %v1304 = vpop.trf.xlu0
        %v1305 = vpop.trf.xlu0
        %v1306 = vpop.trf.xlu0
        %v1307 = vpop.trf.xlu0
        %v1309 = vsel %vm748, %v1284, 0
        %v1312 = vsel %vm748, %v1285, 0
        %v1315 = vsel %vm748, %v1286, 0
        %v1318 = vsel %vm748, %v1287, 0
        %v1321 = vsel %vm748, %v1288, 0
        %v1324 = vsel %vm748, %v1289, 0
        %v1327 = vsel %vm748, %v1290, 0
        %v1330 = vsel %vm748, %v1291, 0
        %v1333 = vsel %vm748, %v1300, 0
        %v1336 = vsel %vm748, %v1301, 0
        %v1339 = vsel %vm748, %v1302, 0
        %v1342 = vsel %vm748, %v1303, 0
        %v1345 = vsel %vm748, %v1304, 0
        %v1348 = vsel %vm748, %v1305, 0
        %v1351 = vsel %vm748, %v1306, 0
        %v1354 = vsel %vm748, %v1307, 0
        %v1357 = vsel %vm797, %v704, 0
        %v1360 = vsel %vm797, %v705, 0
        %1362 = vmatprep.subr.bf16.mxu0 %v1360
        %1363 = vmatpush1.bf16.msra.mxu0 %v1357
        %1364 = vmatprep.subr.bf16.mxu0 0
        %1365 = vmatpush1.bf16.msra.mxu0 0
        %1366 = vmatprep.subr.bf16.mxu0 0
        %1367 = vmatpush1.bf16.msra.mxu0 0
        %1368 = vmatprep.subr.bf16.mxu0 0
        %1369 = vmatpush1.bf16.msra.mxu0 0
        %1370 = vmatprep.subr.bf16.mxu0 0
        %1371 = vmatpush1.bf16.msra.mxu0 0
        %1372 = vmatprep.subr.bf16.mxu0 0
        %1373 = vmatpush1.bf16.msra.mxu0 0
        %1374 = vmatprep.subr.bf16.mxu0 0
        %1375 = vmatpush1.bf16.msra.mxu0 0
        %1376 = vmatprep.subr.bf16.mxu0 0
        %1377 = vmatpush1.bf16.msra.mxu0 0
        %1378 = vmatprep.subr.bf16.mxu0 0
        %1379 = vmatpush1.bf16.msra.mxu0 0
        %1380 = vmatprep.subr.bf16.mxu0 0
        %1381 = vmatpush1.bf16.msra.mxu0 0
        %1382 = vmatprep.subr.bf16.mxu0 0
        %1383 = vmatpush1.bf16.msra.mxu0 0
        %1384 = vmatprep.subr.bf16.mxu0 0
        %1385 = vmatpush1.bf16.msra.mxu0 0
        %1386 = vmatprep.subr.bf16.mxu0 0
        %1387 = vmatpush1.bf16.msra.mxu0 0
        %1388 = vmatprep.subr.bf16.mxu0 0
        %1389 = vmatpush1.bf16.msra.mxu0 0
        %1390 = vmatprep.subr.bf16.mxu0 0
        %1391 = vmatpush1.bf16.msra.mxu0 0
        %1392 = vmatprep.subr.bf16.mxu0 0
        %1393 = vmatpush1.bf16.msra.mxu0 0
        %1394 = vmatprep.mubr.bf16.mxu0 0
        %1395 = vmatmul.mubr.bf16.gmra.mrb[0].mxu0 %v1309
        %v1396 = vpop.f32.mrb[0].mxu0
        %v1397 = vadd.f32 0.0, %v1396
        %v1398 = vpop.f32.mrb[0].mxu0
        %v1399 = vadd.f32 0.0, %v1398
        %v1400 = vpop.f32.mrb[0].mxu0
        %v1401 = vadd.f32 0.0, %v1400
        %v1402 = vpop.f32.mrb[0].mxu0
        %v1403 = vadd.f32 0.0, %v1402
        %1404 = vmatprep.mubr.bf16.mxu0 0
        %1405 = vmatmul.mubr.bf16.gmra.mrb[0].mxu0 %v1312
        %v1406 = vpop.f32.mrb[0].mxu0
        %v1407 = vadd.f32 0.0, %v1406
        %v1408 = vpop.f32.mrb[0].mxu0
        %v1409 = vadd.f32 0.0, %v1408
        %v1410 = vpop.f32.mrb[0].mxu0
        %v1411 = vadd.f32 0.0, %v1410
        %v1412 = vpop.f32.mrb[0].mxu0
        %v1413 = vadd.f32 0.0, %v1412
        %1414 = vmatprep.mubr.bf16.mxu0 0
        %1415 = vmatmul.mubr.bf16.gmra.mrb[0].mxu0 %v1315
        %v1416 = vpop.f32.mrb[0].mxu0
        %v1417 = vadd.f32 0.0, %v1416
        %v1418 = vpop.f32.mrb[0].mxu0
        %v1419 = vadd.f32 0.0, %v1418
        %v1420 = vpop.f32.mrb[0].mxu0
        %v1421 = vadd.f32 0.0, %v1420
        %v1422 = vpop.f32.mrb[0].mxu0
        %v1423 = vadd.f32 0.0, %v1422
        %1424 = vmatprep.mubr.bf16.mxu0 0
        %1425 = vmatmul.mubr.bf16.gmra.mrb[0].mxu0 %v1318
        %v1426 = vpop.f32.mrb[0].mxu0
        %v1427 = vadd.f32 0.0, %v1426
        %v1428 = vpop.f32.mrb[0].mxu0
        %v1429 = vadd.f32 0.0, %v1428
        %v1430 = vpop.f32.mrb[0].mxu0
        %v1431 = vadd.f32 0.0, %v1430
        %v1432 = vpop.f32.mrb[0].mxu0
        %v1433 = vadd.f32 0.0, %v1432
        %1434 = vmatprep.mubr.bf16.mxu0 0
        %1435 = vmatmul.mubr.bf16.gmra.mrb[0].mxu0 %v1321
        %v1436 = vpop.f32.mrb[0].mxu0
        %v1437 = vadd.f32 0.0, %v1436
        %v1438 = vpop.f32.mrb[0].mxu0
        %v1439 = vadd.f32 0.0, %v1438
        %v1440 = vpop.f32.mrb[0].mxu0
        %v1441 = vadd.f32 0.0, %v1440
        %v1442 = vpop.f32.mrb[0].mxu0
        %v1443 = vadd.f32 0.0, %v1442
        %1444 = vmatprep.mubr.bf16.mxu0 0
        %1445 = vmatmul.mubr.bf16.gmra.mrb[0].mxu0 %v1324
        %v1446 = vpop.f32.mrb[0].mxu0
        %v1447 = vadd.f32 0.0, %v1446
        %v1448 = vpop.f32.mrb[0].mxu0
        %v1449 = vadd.f32 0.0, %v1448
        %v1450 = vpop.f32.mrb[0].mxu0
        %v1451 = vadd.f32 0.0, %v1450
        %v1452 = vpop.f32.mrb[0].mxu0
        %v1453 = vadd.f32 0.0, %v1452
        %1454 = vmatprep.mubr.bf16.mxu0 0
        %1455 = vmatmul.mubr.bf16.gmra.mrb[0].mxu0 %v1327
        %v1456 = vpop.f32.mrb[0].mxu0
        %v1457 = vadd.f32 0.0, %v1456
        %v1458 = vpop.f32.mrb[0].mxu0
        %v1459 = vadd.f32 0.0, %v1458
        %v1460 = vpop.f32.mrb[0].mxu0
        %v1461 = vadd.f32 0.0, %v1460
        %v1462 = vpop.f32.mrb[0].mxu0
        %v1463 = vadd.f32 0.0, %v1462
        %1464 = vmatprep.mubr.bf16.mxu0 0
        %1465 = vmatmul.mubr.bf16.gmra.mrb[0].mxu0 %v1330
        %v1466 = vpop.f32.mrb[0].mxu0
        %v1467 = vadd.f32 0.0, %v1466
        %v1468 = vpop.f32.mrb[0].mxu0
        %v1469 = vadd.f32 0.0, %v1468
        %v1470 = vpop.f32.mrb[0].mxu0
        %v1471 = vadd.f32 0.0, %v1470
        %v1472 = vpop.f32.mrb[0].mxu0
        %v1473 = vadd.f32 0.0, %v1472
        %1474 = vmatprep.mubr.bf16.mxu0 0
        %1475 = vmatmul.mubr.bf16.gmra.mrb[0].mxu0 %v1333
        %v1476 = vpop.f32.mrb[0].mxu0
        %v1477 = vadd.f32 0.0, %v1476
        %v1478 = vpop.f32.mrb[0].mxu0
        %v1479 = vadd.f32 0.0, %v1478
        %v1480 = vpop.f32.mrb[0].mxu0
        %v1481 = vadd.f32 0.0, %v1480
        %v1482 = vpop.f32.mrb[0].mxu0
        %v1483 = vadd.f32 0.0, %v1482
        %1484 = vmatprep.mubr.bf16.mxu0 0
        %1485 = vmatmul.mubr.bf16.gmra.mrb[0].mxu0 %v1336
        %v1486 = vpop.f32.mrb[0].mxu0
        %v1487 = vadd.f32 0.0, %v1486
        %v1488 = vpop.f32.mrb[0].mxu0
        %v1489 = vadd.f32 0.0, %v1488
        %v1490 = vpop.f32.mrb[0].mxu0
        %v1491 = vadd.f32 0.0, %v1490
        %v1492 = vpop.f32.mrb[0].mxu0
        %v1493 = vadd.f32 0.0, %v1492
        %1494 = vmatprep.mubr.bf16.mxu0 0
        %1495 = vmatmul.mubr.bf16.gmra.mrb[0].mxu0 %v1339
        %v1496 = vpop.f32.mrb[0].mxu0
        %v1497 = vadd.f32 0.0, %v1496
        %v1498 = vpop.f32.mrb[0].mxu0
        %v1499 = vadd.f32 0.0, %v1498
        %v1500 = vpop.f32.mrb[0].mxu0
        %v1501 = vadd.f32 0.0, %v1500
        %v1502 = vpop.f32.mrb[0].mxu0
        %v1503 = vadd.f32 0.0, %v1502
        %1504 = vmatprep.mubr.bf16.mxu0 0
        %1505 = vmatmul.mubr.bf16.gmra.mrb[0].mxu0 %v1342
        %v1506 = vpop.f32.mrb[0].mxu0
        %v1507 = vadd.f32 0.0, %v1506
        %v1508 = vpop.f32.mrb[0].mxu0
        %v1509 = vadd.f32 0.0, %v1508
        %v1510 = vpop.f32.mrb[0].mxu0
        %v1511 = vadd.f32 0.0, %v1510
        %v1512 = vpop.f32.mrb[0].mxu0
        %v1513 = vadd.f32 0.0, %v1512
        %1514 = vmatprep.mubr.bf16.mxu0 0
        %1515 = vmatmul.mubr.bf16.gmra.mrb[0].mxu0 %v1345
        %v1516 = vpop.f32.mrb[0].mxu0
        %v1517 = vadd.f32 0.0, %v1516
        %v1518 = vpop.f32.mrb[0].mxu0
        %v1519 = vadd.f32 0.0, %v1518
        %v1520 = vpop.f32.mrb[0].mxu0
        %v1521 = vadd.f32 0.0, %v1520
        %v1522 = vpop.f32.mrb[0].mxu0
        %v1523 = vadd.f32 0.0, %v1522
        %1524 = vmatprep.mubr.bf16.mxu0 0
        %1525 = vmatmul.mubr.bf16.gmra.mrb[0].mxu0 %v1348
        %v1526 = vpop.f32.mrb[0].mxu0
        %v1527 = vadd.f32 0.0, %v1526
        %v1528 = vpop.f32.mrb[0].mxu0
        %v1529 = vadd.f32 0.0, %v1528
        %v1530 = vpop.f32.mrb[0].mxu0
        %v1531 = vadd.f32 0.0, %v1530
        %v1532 = vpop.f32.mrb[0].mxu0
        %v1533 = vadd.f32 0.0, %v1532
        %1534 = vmatprep.mubr.bf16.mxu0 0
        %1535 = vmatmul.mubr.bf16.gmra.mrb[0].mxu0 %v1351
        %v1536 = vpop.f32.mrb[0].mxu0
        %v1537 = vadd.f32 0.0, %v1536
        %v1538 = vpop.f32.mrb[0].mxu0
        %v1539 = vadd.f32 0.0, %v1538
        %v1540 = vpop.f32.mrb[0].mxu0
        %v1541 = vadd.f32 0.0, %v1540
        %v1542 = vpop.f32.mrb[0].mxu0
        %v1543 = vadd.f32 0.0, %v1542
        %1544 = vmatprep.mubr.bf16.mxu0 0
        %1545 = vmatmul.mubr.bf16.gmra.mrb[0].mxu0 %v1354
        %v1546 = vpop.f32.mrb[0].mxu0
        %v1547 = vadd.f32 0.0, %v1546
        %v1548 = vpop.f32.mrb[0].mxu0
        %v1549 = vadd.f32 0.0, %v1548
        %v1550 = vpop.f32.mrb[0].mxu0
        %v1551 = vadd.f32 0.0, %v1550
        %v1552 = vpop.f32.mrb[0].mxu0
        %v1553 = vadd.f32 0.0, %v1552
        %1554 = vdwg.mxu0
        %1555 = vxpose.xlu0.c.b16.start [1/8] %v698, 128
        %1556 = vxpose.xlu0.c.b16.cont [2/8] 0, 128
        %1557 = vxpose.xlu0.c.b16.cont [3/8] 0, 128
        %1558 = vxpose.xlu0.c.b16.cont [4/8] 0, 128
        %1559 = vxpose.xlu0.c.b16.cont [5/8] 0, 128
        %1560 = vxpose.xlu0.c.b16.cont [6/8] 0, 128
        %1561 = vxpose.xlu0.c.b16.cont [7/8] 0, 128
        %1562 = vxpose.xlu0.c.b16.end [8/8] 0, 128
        %v1563 = vpop.trf.xlu0
        %v1564 = vpop.trf.xlu0
        %v1565 = vpop.trf.xlu0
        %v1566 = vpop.trf.xlu0
        %v1567 = vpop.trf.xlu0
        %v1568 = vpop.trf.xlu0
        %v1569 = vpop.trf.xlu0
        %v1570 = vpop.trf.xlu0
        %1571 = vxpose.xlu0.c.b16.start [1/8] %v699, 128
        %1572 = vxpose.xlu0.c.b16.cont [2/8] 0, 128
        %1573 = vxpose.xlu0.c.b16.cont [3/8] 0, 128
        %1574 = vxpose.xlu0.c.b16.cont [4/8] 0, 128
        %1575 = vxpose.xlu0.c.b16.cont [5/8] 0, 128
        %1576 = vxpose.xlu0.c.b16.cont [6/8] 0, 128
        %1577 = vxpose.xlu0.c.b16.cont [7/8] 0, 128
        %1578 = vxpose.xlu0.c.b16.end [8/8] 0, 128
        %v1579 = vpop.trf.xlu0
        %v1580 = vpop.trf.xlu0
        %v1581 = vpop.trf.xlu0
        %v1582 = vpop.trf.xlu0
        %v1583 = vpop.trf.xlu0
        %v1584 = vpop.trf.xlu0
        %v1585 = vpop.trf.xlu0
        %v1586 = vpop.trf.xlu0
        %v1588 = vsel %vm748, %v1563, 0
        %v1591 = vsel %vm748, %v1564, 0
        %v1594 = vsel %vm748, %v1565, 0
        %v1597 = vsel %vm748, %v1566, 0
        %v1600 = vsel %vm748, %v1567, 0
        %v1603 = vsel %vm748, %v1568, 0
        %v1606 = vsel %vm748, %v1569, 0
        %v1609 = vsel %vm748, %v1570, 0
        %v1612 = vsel %vm748, %v1579, 0
        %v1615 = vsel %vm748, %v1580, 0
        %v1618 = vsel %vm748, %v1581, 0
        %v1621 = vsel %vm748, %v1582, 0
        %v1624 = vsel %vm748, %v1583, 0
        %v1627 = vsel %vm748, %v1584, 0
        %v1630 = vsel %vm748, %v1585, 0
        %v1633 = vsel %vm748, %v1586, 0
        %v1636 = vsel %vm797, %v706, 0
        %v1639 = vsel %vm797, %v707, 0
        %1641 = vmatprep.subr.bf16.mxu0 %v1639
        %1642 = vmatpush1.bf16.msra.mxu0 %v1636
        %1643 = vmatprep.subr.bf16.mxu0 0
        %1644 = vmatpush1.bf16.msra.mxu0 0
        %1645 = vmatprep.subr.bf16.mxu0 0
        %1646 = vmatpush1.bf16.msra.mxu0 0
        %1647 = vmatprep.subr.bf16.mxu0 0
        %1648 = vmatpush1.bf16.msra.mxu0 0
        %1649 = vmatprep.subr.bf16.mxu0 0
        %1650 = vmatpush1.bf16.msra.mxu0 0
        %1651 = vmatprep.subr.bf16.mxu0 0
        %1652 = vmatpush1.bf16.msra.mxu0 0
        %1653 = vmatprep.subr.bf16.mxu0 0
        %1654 = vmatpush1.bf16.msra.mxu0 0
        %1655 = vmatprep.subr.bf16.mxu0 0
        %1656 = vmatpush1.bf16.msra.mxu0 0
        %1657 = vmatprep.subr.bf16.mxu0 0
        %1658 = vmatpush1.bf16.msra.mxu0 0
        %1659 = vmatprep.subr.bf16.mxu0 0
        %1660 = vmatpush1.bf16.msra.mxu0 0
        %1661 = vmatprep.subr.bf16.mxu0 0
        %1662 = vmatpush1.bf16.msra.mxu0 0
        %1663 = vmatprep.subr.bf16.mxu0 0
        %1664 = vmatpush1.bf16.msra.mxu0 0
        %1665 = vmatprep.subr.bf16.mxu0 0
        %1666 = vmatpush1.bf16.msra.mxu0 0
        %1667 = vmatprep.subr.bf16.mxu0 0
        %1668 = vmatpush1.bf16.msra.mxu0 0
        %1669 = vmatprep.subr.bf16.mxu0 0
        %1670 = vmatpush1.bf16.msra.mxu0 0
        %1671 = vmatprep.subr.bf16.mxu0 0
        %1672 = vmatpush1.bf16.msra.mxu0 0
        %1673 = vmatprep.mubr.bf16.mxu0 0
        %1674 = vmatmul.mubr.bf16.gmra.mrb[0].mxu0 %v1588
        %v1675 = vpop.f32.mrb[0].mxu0
        %v1676 = vadd.f32 0.0, %v1675
        %v1677 = vpop.f32.mrb[0].mxu0
        %v1678 = vadd.f32 0.0, %v1677
        %v1679 = vpop.f32.mrb[0].mxu0
        %v1680 = vadd.f32 0.0, %v1679
        %v1681 = vpop.f32.mrb[0].mxu0
        %v1682 = vadd.f32 0.0, %v1681
        %1683 = vmatprep.mubr.bf16.mxu0 0
        %1684 = vmatmul.mubr.bf16.gmra.mrb[0].mxu0 %v1591
        %v1685 = vpop.f32.mrb[0].mxu0
        %v1686 = vadd.f32 0.0, %v1685
        %v1687 = vpop.f32.mrb[0].mxu0
        %v1688 = vadd.f32 0.0, %v1687
        %v1689 = vpop.f32.mrb[0].mxu0
        %v1690 = vadd.f32 0.0, %v1689
        %v1691 = vpop.f32.mrb[0].mxu0
        %v1692 = vadd.f32 0.0, %v1691
        %1693 = vmatprep.mubr.bf16.mxu0 0
        %1694 = vmatmul.mubr.bf16.gmra.mrb[0].mxu0 %v1594
        %v1695 = vpop.f32.mrb[0].mxu0
        %v1696 = vadd.f32 0.0, %v1695
        %v1697 = vpop.f32.mrb[0].mxu0
        %v1698 = vadd.f32 0.0, %v1697
        %v1699 = vpop.f32.mrb[0].mxu0
        %v1700 = vadd.f32 0.0, %v1699
        %v1701 = vpop.f32.mrb[0].mxu0
        %v1702 = vadd.f32 0.0, %v1701
        %1703 = vmatprep.mubr.bf16.mxu0 0
        %1704 = vmatmul.mubr.bf16.gmra.mrb[0].mxu0 %v1597
        %v1705 = vpop.f32.mrb[0].mxu0
        %v1706 = vadd.f32 0.0, %v1705
        %v1707 = vpop.f32.mrb[0].mxu0
        %v1708 = vadd.f32 0.0, %v1707
        %v1709 = vpop.f32.mrb[0].mxu0
        %v1710 = vadd.f32 0.0, %v1709
        %v1711 = vpop.f32.mrb[0].mxu0
        %v1712 = vadd.f32 0.0, %v1711
        %1713 = vmatprep.mubr.bf16.mxu0 0
        %1714 = vmatmul.mubr.bf16.gmra.mrb[0].mxu0 %v1600
        %v1715 = vpop.f32.mrb[0].mxu0
        %v1716 = vadd.f32 0.0, %v1715
        %v1717 = vpop.f32.mrb[0].mxu0
        %v1718 = vadd.f32 0.0, %v1717
        %v1719 = vpop.f32.mrb[0].mxu0
        %v1720 = vadd.f32 0.0, %v1719
        %v1721 = vpop.f32.mrb[0].mxu0
        %v1722 = vadd.f32 0.0, %v1721
        %1723 = vmatprep.mubr.bf16.mxu0 0
        %1724 = vmatmul.mubr.bf16.gmra.mrb[0].mxu0 %v1603
        %v1725 = vpop.f32.mrb[0].mxu0
        %v1726 = vadd.f32 0.0, %v1725
        %v1727 = vpop.f32.mrb[0].mxu0
        %v1728 = vadd.f32 0.0, %v1727
        %v1729 = vpop.f32.mrb[0].mxu0
        %v1730 = vadd.f32 0.0, %v1729
        %v1731 = vpop.f32.mrb[0].mxu0
        %v1732 = vadd.f32 0.0, %v1731
        %1733 = vmatprep.mubr.bf16.mxu0 0
        %1734 = vmatmul.mubr.bf16.gmra.mrb[0].mxu0 %v1606
        %v1735 = vpop.f32.mrb[0].mxu0
        %v1736 = vadd.f32 0.0, %v1735
        %v1737 = vpop.f32.mrb[0].mxu0
        %v1738 = vadd.f32 0.0, %v1737
        %v1739 = vpop.f32.mrb[0].mxu0
        %v1740 = vadd.f32 0.0, %v1739
        %v1741 = vpop.f32.mrb[0].mxu0
        %v1742 = vadd.f32 0.0, %v1741
        %1743 = vmatprep.mubr.bf16.mxu0 0
        %1744 = vmatmul.mubr.bf16.gmra.mrb[0].mxu0 %v1609
        %v1745 = vpop.f32.mrb[0].mxu0
        %v1746 = vadd.f32 0.0, %v1745
        %v1747 = vpop.f32.mrb[0].mxu0
        %v1748 = vadd.f32 0.0, %v1747
        %v1749 = vpop.f32.mrb[0].mxu0
        %v1750 = vadd.f32 0.0, %v1749
        %v1751 = vpop.f32.mrb[0].mxu0
        %v1752 = vadd.f32 0.0, %v1751
        %1753 = vmatprep.mubr.bf16.mxu0 0
        %1754 = vmatmul.mubr.bf16.gmra.mrb[0].mxu0 %v1612
        %v1755 = vpop.f32.mrb[0].mxu0
        %v1756 = vadd.f32 0.0, %v1755
        %v1757 = vpop.f32.mrb[0].mxu0
        %v1758 = vadd.f32 0.0, %v1757
        %v1759 = vpop.f32.mrb[0].mxu0
        %v1760 = vadd.f32 0.0, %v1759
        %v1761 = vpop.f32.mrb[0].mxu0
        %v1762 = vadd.f32 0.0, %v1761
        %1763 = vmatprep.mubr.bf16.mxu0 0
        %1764 = vmatmul.mubr.bf16.gmra.mrb[0].mxu0 %v1615
        %v1765 = vpop.f32.mrb[0].mxu0
        %v1766 = vadd.f32 0.0, %v1765
        %v1767 = vpop.f32.mrb[0].mxu0
        %v1768 = vadd.f32 0.0, %v1767
        %v1769 = vpop.f32.mrb[0].mxu0
        %v1770 = vadd.f32 0.0, %v1769
        %v1771 = vpop.f32.mrb[0].mxu0
        %v1772 = vadd.f32 0.0, %v1771
        %1773 = vmatprep.mubr.bf16.mxu0 0
        %1774 = vmatmul.mubr.bf16.gmra.mrb[0].mxu0 %v1618
        %v1775 = vpop.f32.mrb[0].mxu0
        %v1776 = vadd.f32 0.0, %v1775
        %v1777 = vpop.f32.mrb[0].mxu0
        %v1778 = vadd.f32 0.0, %v1777
        %v1779 = vpop.f32.mrb[0].mxu0
        %v1780 = vadd.f32 0.0, %v1779
        %v1781 = vpop.f32.mrb[0].mxu0
        %v1782 = vadd.f32 0.0, %v1781
        %1783 = vmatprep.mubr.bf16.mxu0 0
        %1784 = vmatmul.mubr.bf16.gmra.mrb[0].mxu0 %v1621
        %v1785 = vpop.f32.mrb[0].mxu0
        %v1786 = vadd.f32 0.0, %v1785
        %v1787 = vpop.f32.mrb[0].mxu0
        %v1788 = vadd.f32 0.0, %v1787
        %v1789 = vpop.f32.mrb[0].mxu0
        %v1790 = vadd.f32 0.0, %v1789
        %v1791 = vpop.f32.mrb[0].mxu0
        %v1792 = vadd.f32 0.0, %v1791
        %1793 = vmatprep.mubr.bf16.mxu0 0
        %1794 = vmatmul.mubr.bf16.gmra.mrb[0].mxu0 %v1624
        %v1795 = vpop.f32.mrb[0].mxu0
        %v1796 = vadd.f32 0.0, %v1795
        %v1797 = vpop.f32.mrb[0].mxu0
        %v1798 = vadd.f32 0.0, %v1797
        %v1799 = vpop.f32.mrb[0].mxu0
        %v1800 = vadd.f32 0.0, %v1799
        %v1801 = vpop.f32.mrb[0].mxu0
        %v1802 = vadd.f32 0.0, %v1801
        %1803 = vmatprep.mubr.bf16.mxu0 0
        %1804 = vmatmul.mubr.bf16.gmra.mrb[0].mxu0 %v1627
        %v1805 = vpop.f32.mrb[0].mxu0
        %v1806 = vadd.f32 0.0, %v1805
        %v1807 = vpop.f32.mrb[0].mxu0
        %v1808 = vadd.f32 0.0, %v1807
        %v1809 = vpop.f32.mrb[0].mxu0
        %v1810 = vadd.f32 0.0, %v1809
        %v1811 = vpop.f32.mrb[0].mxu0
        %v1812 = vadd.f32 0.0, %v1811
        %1813 = vmatprep.mubr.bf16.mxu0 0
        %1814 = vmatmul.mubr.bf16.gmra.mrb[0].mxu0 %v1630
        %v1815 = vpop.f32.mrb[0].mxu0
        %v1816 = vadd.f32 0.0, %v1815
        %v1817 = vpop.f32.mrb[0].mxu0
        %v1818 = vadd.f32 0.0, %v1817
        %v1819 = vpop.f32.mrb[0].mxu0
        %v1820 = vadd.f32 0.0, %v1819
        %v1821 = vpop.f32.mrb[0].mxu0
        %v1822 = vadd.f32 0.0, %v1821
        %1823 = vmatprep.mubr.bf16.mxu0 0
        %1824 = vmatmul.mubr.bf16.gmra.mrb[0].mxu0 %v1633
        %v1825 = vpop.f32.mrb[0].mxu0
        %v1826 = vadd.f32 0.0, %v1825
        %v1827 = vpop.f32.mrb[0].mxu0
        %v1828 = vadd.f32 0.0, %v1827
        %v1829 = vpop.f32.mrb[0].mxu0
        %v1830 = vadd.f32 0.0, %v1829
        %v1831 = vpop.f32.mrb[0].mxu0
        %v1832 = vadd.f32 0.0, %v1831
        %1833 = vdwg.mxu0
        %v1834 = vmax.f32 %v839, %v841
        %1835 = vmax.xlane.f32.xlu0 %v1834
        %v1836 = vpop.xlane.xlu0 %1835
        %v1837 = vmax.f32 %v843, %v845
        %1838 = vmax.xlane.f32.xlu0 %v1837
        %v1839 = vpop.xlane.xlu0 %1838
        %v1840 = vmax.f32 %v849, %v851
        %1841 = vmax.xlane.f32.xlu0 %v1840
        %v1842 = vpop.xlane.xlu0 %1841
        %v1843 = vmax.f32 %v853, %v855
        %1844 = vmax.xlane.f32.xlu0 %v1843
        %v1845 = vpop.xlane.xlu0 %1844
        %v1846 = vmax.f32 %v859, %v861
        %1847 = vmax.xlane.f32.xlu0 %v1846
        %v1848 = vpop.xlane.xlu0 %1847
        %v1849 = vmax.f32 %v863, %v865
        %1850 = vmax.xlane.f32.xlu0 %v1849
        %v1851 = vpop.xlane.xlu0 %1850
        %v1852 = vmax.f32 %v869, %v871
        %1853 = vmax.xlane.f32.xlu0 %v1852
        %v1854 = vpop.xlane.xlu0 %1853
        %v1855 = vmax.f32 %v873, %v875
        %1856 = vmax.xlane.f32.xlu0 %v1855
        %v1857 = vpop.xlane.xlu0 %1856
        %v1858 = vmax.f32 %v879, %v881
        %1859 = vmax.xlane.f32.xlu0 %v1858
        %v1860 = vpop.xlane.xlu0 %1859
        %v1861 = vmax.f32 %v883, %v885
        %1862 = vmax.xlane.f32.xlu0 %v1861
        %v1863 = vpop.xlane.xlu0 %1862
        %v1864 = vmax.f32 %v889, %v891
        %1865 = vmax.xlane.f32.xlu0 %v1864
        %v1866 = vpop.xlane.xlu0 %1865
        %v1867 = vmax.f32 %v893, %v895
        %1868 = vmax.xlane.f32.xlu0 %v1867
        %v1869 = vpop.xlane.xlu0 %1868
        %v1870 = vmax.f32 %v899, %v901
        %1871 = vmax.xlane.f32.xlu0 %v1870
        %v1872 = vpop.xlane.xlu0 %1871
        %v1873 = vmax.f32 %v903, %v905
        %1874 = vmax.xlane.f32.xlu0 %v1873
        %v1875 = vpop.xlane.xlu0 %1874
        %v1876 = vmax.f32 %v909, %v911
        %1877 = vmax.xlane.f32.xlu0 %v1876
        %v1878 = vpop.xlane.xlu0 %1877
        %v1879 = vmax.f32 %v913, %v915
        %1880 = vmax.xlane.f32.xlu0 %v1879
        %v1881 = vpop.xlane.xlu0 %1880
        %v1882 = vmax.f32 %v919, %v921
        %1883 = vmax.xlane.f32.xlu0 %v1882
        %v1884 = vpop.xlane.xlu0 %1883
        %v1885 = vmax.f32 %v923, %v925
        %1886 = vmax.xlane.f32.xlu0 %v1885
        %v1887 = vpop.xlane.xlu0 %1886
        %v1888 = vmax.f32 %v929, %v931
        %1889 = vmax.xlane.f32.xlu0 %v1888
        %v1890 = vpop.xlane.xlu0 %1889
        %v1891 = vmax.f32 %v933, %v935
        %1892 = vmax.xlane.f32.xlu0 %v1891
        %v1893 = vpop.xlane.xlu0 %1892
        %v1894 = vmax.f32 %v939, %v941
        %1895 = vmax.xlane.f32.xlu0 %v1894
        %v1896 = vpop.xlane.xlu0 %1895
        %v1897 = vmax.f32 %v943, %v945
        %1898 = vmax.xlane.f32.xlu0 %v1897
        %v1899 = vpop.xlane.xlu0 %1898
        %v1900 = vmax.f32 %v949, %v951
        %1901 = vmax.xlane.f32.xlu0 %v1900
        %v1902 = vpop.xlane.xlu0 %1901
        %v1903 = vmax.f32 %v953, %v955
        %1904 = vmax.xlane.f32.xlu0 %v1903
        %v1905 = vpop.xlane.xlu0 %1904
        %v1906 = vmax.f32 %v959, %v961
        %1907 = vmax.xlane.f32.xlu0 %v1906
        %v1908 = vpop.xlane.xlu0 %1907
        %v1909 = vmax.f32 %v963, %v965
        %1910 = vmax.xlane.f32.xlu0 %v1909
        %v1911 = vpop.xlane.xlu0 %1910
        %v1912 = vmax.f32 %v969, %v971
        %1913 = vmax.xlane.f32.xlu0 %v1912
        %v1914 = vpop.xlane.xlu0 %1913
        %v1915 = vmax.f32 %v973, %v975
        %1916 = vmax.xlane.f32.xlu0 %v1915
        %v1917 = vpop.xlane.xlu0 %1916
        %v1918 = vmax.f32 %v979, %v981
        %1919 = vmax.xlane.f32.xlu0 %v1918
        %v1920 = vpop.xlane.xlu0 %1919
        %v1921 = vmax.f32 %v983, %v985
        %1922 = vmax.xlane.f32.xlu0 %v1921
        %v1923 = vpop.xlane.xlu0 %1922
        %v1924 = vmax.f32 %v989, %v991
        %1925 = vmax.xlane.f32.xlu0 %v1924
        %v1926 = vpop.xlane.xlu0 %1925
        %v1927 = vmax.f32 %v993, %v995
        %1928 = vmax.xlane.f32.xlu0 %v1927
        %v1929 = vpop.xlane.xlu0 %1928
        %v1930 = vmax.f32 %v1118, %v1120
        %1931 = vmax.xlane.f32.xlu0 %v1930
        %v1932 = vpop.xlane.xlu0 %1931
        %v1933 = vmax.f32 %v1122, %v1124
        %1934 = vmax.xlane.f32.xlu0 %v1933
        %v1935 = vpop.xlane.xlu0 %1934
        %v1936 = vmax.f32 %v1128, %v1130
        %1937 = vmax.xlane.f32.xlu0 %v1936
        %v1938 = vpop.xlane.xlu0 %1937
        %v1939 = vmax.f32 %v1132, %v1134
        %1940 = vmax.xlane.f32.xlu0 %v1939
        %v1941 = vpop.xlane.xlu0 %1940
        %v1942 = vmax.f32 %v1138, %v1140
        %1943 = vmax.xlane.f32.xlu0 %v1942
        %v1944 = vpop.xlane.xlu0 %1943
        %v1945 = vmax.f32 %v1142, %v1144
        %1946 = vmax.xlane.f32.xlu0 %v1945
        %v1947 = vpop.xlane.xlu0 %1946
        %v1948 = vmax.f32 %v1148, %v1150
        %1949 = vmax.xlane.f32.xlu0 %v1948
        %v1950 = vpop.xlane.xlu0 %1949
        %v1951 = vmax.f32 %v1152, %v1154
        %1952 = vmax.xlane.f32.xlu0 %v1951
        %v1953 = vpop.xlane.xlu0 %1952
        %v1954 = vmax.f32 %v1158, %v1160
        %1955 = vmax.xlane.f32.xlu0 %v1954
        %v1956 = vpop.xlane.xlu0 %1955
        %v1957 = vmax.f32 %v1162, %v1164
        %1958 = vmax.xlane.f32.xlu0 %v1957
        %v1959 = vpop.xlane.xlu0 %1958
        %v1960 = vmax.f32 %v1168, %v1170
        %1961 = vmax.xlane.f32.xlu0 %v1960
        %v1962 = vpop.xlane.xlu0 %1961
        %v1963 = vmax.f32 %v1172, %v1174
        %1964 = vmax.xlane.f32.xlu0 %v1963
        %v1965 = vpop.xlane.xlu0 %1964
        %v1966 = vmax.f32 %v1178, %v1180
        %1967 = vmax.xlane.f32.xlu0 %v1966
        %v1968 = vpop.xlane.xlu0 %1967
        %v1969 = vmax.f32 %v1182, %v1184
        %1970 = vmax.xlane.f32.xlu0 %v1969
        %v1971 = vpop.xlane.xlu0 %1970
        %v1972 = vmax.f32 %v1188, %v1190
        %1973 = vmax.xlane.f32.xlu0 %v1972
        %v1974 = vpop.xlane.xlu0 %1973
        %v1975 = vmax.f32 %v1192, %v1194
        %1976 = vmax.xlane.f32.xlu0 %v1975
        %v1977 = vpop.xlane.xlu0 %1976
        %v1978 = vmax.f32 %v1198, %v1200
        %1979 = vmax.xlane.f32.xlu0 %v1978
        %v1980 = vpop.xlane.xlu0 %1979
        %v1981 = vmax.f32 %v1202, %v1204
        %1982 = vmax.xlane.f32.xlu0 %v1981
        %v1983 = vpop.xlane.xlu0 %1982
        %v1984 = vmax.f32 %v1208, %v1210
        %1985 = vmax.xlane.f32.xlu0 %v1984
        %v1986 = vpop.xlane.xlu0 %1985
        %v1987 = vmax.f32 %v1212, %v1214
        %1988 = vmax.xlane.f32.xlu0 %v1987
        %v1989 = vpop.xlane.xlu0 %1988
        %v1990 = vmax.f32 %v1218, %v1220
        %1991 = vmax.xlane.f32.xlu0 %v1990
        %v1992 = vpop.xlane.xlu0 %1991
        %v1993 = vmax.f32 %v1222, %v1224
        %1994 = vmax.xlane.f32.xlu0 %v1993
        %v1995 = vpop.xlane.xlu0 %1994
        %v1996 = vmax.f32 %v1228, %v1230
        %1997 = vmax.xlane.f32.xlu0 %v1996
        %v1998 = vpop.xlane.xlu0 %1997
        %v1999 = vmax.f32 %v1232, %v1234
        %2000 = vmax.xlane.f32.xlu0 %v1999
        %v2001 = vpop.xlane.xlu0 %2000
        %v2002 = vmax.f32 %v1238, %v1240
        %2003 = vmax.xlane.f32.xlu0 %v2002
        %v2004 = vpop.xlane.xlu0 %2003
        %v2005 = vmax.f32 %v1242, %v1244
        %2006 = vmax.xlane.f32.xlu0 %v2005
        %v2007 = vpop.xlane.xlu0 %2006
        %v2008 = vmax.f32 %v1248, %v1250
        %2009 = vmax.xlane.f32.xlu0 %v2008
        %v2010 = vpop.xlane.xlu0 %2009
        %v2011 = vmax.f32 %v1252, %v1254
        %2012 = vmax.xlane.f32.xlu0 %v2011
        %v2013 = vpop.xlane.xlu0 %2012
        %v2014 = vmax.f32 %v1258, %v1260
        %2015 = vmax.xlane.f32.xlu0 %v2014
        %v2016 = vpop.xlane.xlu0 %2015
        %v2017 = vmax.f32 %v1262, %v1264
        %2018 = vmax.xlane.f32.xlu0 %v2017
        %v2019 = vpop.xlane.xlu0 %2018
        %v2020 = vmax.f32 %v1268, %v1270
        %2021 = vmax.xlane.f32.xlu0 %v2020
        %v2022 = vpop.xlane.xlu0 %2021
        %v2023 = vmax.f32 %v1272, %v1274
        %2024 = vmax.xlane.f32.xlu0 %v2023
        %v2025 = vpop.xlane.xlu0 %2024
        %v2026 = vmax.f32 %v1397, %v1399
        %2027 = vmax.xlane.f32.xlu0 %v2026
        %v2028 = vpop.xlane.xlu0 %2027
        %v2029 = vmax.f32 %v1401, %v1403
        %2030 = vmax.xlane.f32.xlu0 %v2029
        %v2031 = vpop.xlane.xlu0 %2030
        %v2032 = vmax.f32 %v1407, %v1409
        %2033 = vmax.xlane.f32.xlu0 %v2032
        %v2034 = vpop.xlane.xlu0 %2033
        %v2035 = vmax.f32 %v1411, %v1413
        %2036 = vmax.xlane.f32.xlu0 %v2035
        %v2037 = vpop.xlane.xlu0 %2036
        %v2038 = vmax.f32 %v1417, %v1419
        %2039 = vmax.xlane.f32.xlu0 %v2038
        %v2040 = vpop.xlane.xlu0 %2039
        %v2041 = vmax.f32 %v1421, %v1423
        %2042 = vmax.xlane.f32.xlu0 %v2041
        %v2043 = vpop.xlane.xlu0 %2042
        %v2044 = vmax.f32 %v1427, %v1429
        %2045 = vmax.xlane.f32.xlu0 %v2044
        %v2046 = vpop.xlane.xlu0 %2045
        %v2047 = vmax.f32 %v1431, %v1433
        %2048 = vmax.xlane.f32.xlu0 %v2047
        %v2049 = vpop.xlane.xlu0 %2048
        %v2050 = vmax.f32 %v1437, %v1439
        %2051 = vmax.xlane.f32.xlu0 %v2050
        %v2052 = vpop.xlane.xlu0 %2051
        %v2053 = vmax.f32 %v1441, %v1443
        %2054 = vmax.xlane.f32.xlu0 %v2053
        %v2055 = vpop.xlane.xlu0 %2054
        %v2056 = vmax.f32 %v1447, %v1449
        %2057 = vmax.xlane.f32.xlu0 %v2056
        %v2058 = vpop.xlane.xlu0 %2057
        %v2059 = vmax.f32 %v1451, %v1453
        %2060 = vmax.xlane.f32.xlu0 %v2059
        %v2061 = vpop.xlane.xlu0 %2060
        %v2062 = vmax.f32 %v1457, %v1459
        %2063 = vmax.xlane.f32.xlu0 %v2062
        %v2064 = vpop.xlane.xlu0 %2063
        %v2065 = vmax.f32 %v1461, %v1463
        %2066 = vmax.xlane.f32.xlu0 %v2065
        %v2067 = vpop.xlane.xlu0 %2066
        %v2068 = vmax.f32 %v1467, %v1469
        %2069 = vmax.xlane.f32.xlu0 %v2068
        %v2070 = vpop.xlane.xlu0 %2069
        %v2071 = vmax.f32 %v1471, %v1473
        %2072 = vmax.xlane.f32.xlu0 %v2071
        %v2073 = vpop.xlane.xlu0 %2072
        %v2074 = vmax.f32 %v1477, %v1479
        %2075 = vmax.xlane.f32.xlu0 %v2074
        %v2076 = vpop.xlane.xlu0 %2075
        %v2077 = vmax.f32 %v1481, %v1483
        %2078 = vmax.xlane.f32.xlu0 %v2077
        %v2079 = vpop.xlane.xlu0 %2078
        %v2080 = vmax.f32 %v1487, %v1489
        %2081 = vmax.xlane.f32.xlu0 %v2080
        %v2082 = vpop.xlane.xlu0 %2081
        %v2083 = vmax.f32 %v1491, %v1493
        %2084 = vmax.xlane.f32.xlu0 %v2083
        %v2085 = vpop.xlane.xlu0 %2084
        %v2086 = vmax.f32 %v1497, %v1499
        %2087 = vmax.xlane.f32.xlu0 %v2086
        %v2088 = vpop.xlane.xlu0 %2087
        %v2089 = vmax.f32 %v1501, %v1503
        %2090 = vmax.xlane.f32.xlu0 %v2089
        %v2091 = vpop.xlane.xlu0 %2090
        %v2092 = vmax.f32 %v1507, %v1509
        %2093 = vmax.xlane.f32.xlu0 %v2092
        %v2094 = vpop.xlane.xlu0 %2093
        %v2095 = vmax.f32 %v1511, %v1513
        %2096 = vmax.xlane.f32.xlu0 %v2095
        %v2097 = vpop.xlane.xlu0 %2096
        %v2098 = vmax.f32 %v1517, %v1519
        %2099 = vmax.xlane.f32.xlu0 %v2098
        %v2100 = vpop.xlane.xlu0 %2099
        %v2101 = vmax.f32 %v1521, %v1523
        %2102 = vmax.xlane.f32.xlu0 %v2101
        %v2103 = vpop.xlane.xlu0 %2102
        %v2104 = vmax.f32 %v1527, %v1529
        %2105 = vmax.xlane.f32.xlu0 %v2104
        %v2106 = vpop.xlane.xlu0 %2105
        %v2107 = vmax.f32 %v1531, %v1533
        %2108 = vmax.xlane.f32.xlu0 %v2107
        %v2109 = vpop.xlane.xlu0 %2108
        %v2110 = vmax.f32 %v1537, %v1539
        %2111 = vmax.xlane.f32.xlu0 %v2110
        %v2112 = vpop.xlane.xlu0 %2111
        %v2113 = vmax.f32 %v1541, %v1543
        %2114 = vmax.xlane.f32.xlu0 %v2113
        %v2115 = vpop.xlane.xlu0 %2114
        %v2116 = vmax.f32 %v1547, %v1549
        %2117 = vmax.xlane.f32.xlu0 %v2116
        %v2118 = vpop.xlane.xlu0 %2117
        %v2119 = vmax.f32 %v1551, %v1553
        %2120 = vmax.xlane.f32.xlu0 %v2119
        %v2121 = vpop.xlane.xlu0 %2120
        %v2122 = vmax.f32 %v1676, %v1678
        %2123 = vmax.xlane.f32.xlu0 %v2122
        %v2124 = vpop.xlane.xlu0 %2123
        %v2125 = vmax.f32 %v1680, %v1682
        %2126 = vmax.xlane.f32.xlu0 %v2125
        %v2127 = vpop.xlane.xlu0 %2126
        %v2128 = vmax.f32 %v1686, %v1688
        %2129 = vmax.xlane.f32.xlu0 %v2128
        %v2130 = vpop.xlane.xlu0 %2129
        %v2131 = vmax.f32 %v1690, %v1692
        %2132 = vmax.xlane.f32.xlu0 %v2131
        %v2133 = vpop.xlane.xlu0 %2132
        %v2134 = vmax.f32 %v1696, %v1698
        %2135 = vmax.xlane.f32.xlu0 %v2134
        %v2136 = vpop.xlane.xlu0 %2135
        %v2137 = vmax.f32 %v1700, %v1702
        %2138 = vmax.xlane.f32.xlu0 %v2137
        %v2139 = vpop.xlane.xlu0 %2138
        %v2140 = vmax.f32 %v1706, %v1708
        %2141 = vmax.xlane.f32.xlu0 %v2140
        %v2142 = vpop.xlane.xlu0 %2141
        %v2143 = vmax.f32 %v1710, %v1712
        %2144 = vmax.xlane.f32.xlu0 %v2143
        %v2145 = vpop.xlane.xlu0 %2144
        %v2146 = vmax.f32 %v1716, %v1718
        %2147 = vmax.xlane.f32.xlu0 %v2146
        %v2148 = vpop.xlane.xlu0 %2147
        %v2149 = vmax.f32 %v1720, %v1722
        %2150 = vmax.xlane.f32.xlu0 %v2149
        %v2151 = vpop.xlane.xlu0 %2150
        %v2152 = vmax.f32 %v1726, %v1728
        %2153 = vmax.xlane.f32.xlu0 %v2152
        %v2154 = vpop.xlane.xlu0 %2153
        %v2155 = vmax.f32 %v1730, %v1732
        %2156 = vmax.xlane.f32.xlu0 %v2155
        %v2157 = vpop.xlane.xlu0 %2156
        %v2158 = vmax.f32 %v1736, %v1738
        %2159 = vmax.xlane.f32.xlu0 %v2158
        %v2160 = vpop.xlane.xlu0 %2159
        %v2161 = vmax.f32 %v1740, %v1742
        %2162 = vmax.xlane.f32.xlu0 %v2161
        %v2163 = vpop.xlane.xlu0 %2162
        %v2164 = vmax.f32 %v1746, %v1748
        %2165 = vmax.xlane.f32.xlu0 %v2164
        %v2166 = vpop.xlane.xlu0 %2165
        %v2167 = vmax.f32 %v1750, %v1752
        %2168 = vmax.xlane.f32.xlu0 %v2167
        %v2169 = vpop.xlane.xlu0 %2168
        %v2170 = vmax.f32 %v1756, %v1758
        %2171 = vmax.xlane.f32.xlu0 %v2170
        %v2172 = vpop.xlane.xlu0 %2171
        %v2173 = vmax.f32 %v1760, %v1762
        %2174 = vmax.xlane.f32.xlu0 %v2173
        %v2175 = vpop.xlane.xlu0 %2174
        %v2176 = vmax.f32 %v1766, %v1768
        %2177 = vmax.xlane.f32.xlu0 %v2176
        %v2178 = vpop.xlane.xlu0 %2177
        %v2179 = vmax.f32 %v1770, %v1772
        %2180 = vmax.xlane.f32.xlu0 %v2179
        %v2181 = vpop.xlane.xlu0 %2180
        %v2182 = vmax.f32 %v1776, %v1778
        %2183 = vmax.xlane.f32.xlu0 %v2182
        %v2184 = vpop.xlane.xlu0 %2183
        %v2185 = vmax.f32 %v1780, %v1782
        %2186 = vmax.xlane.f32.xlu0 %v2185
        %v2187 = vpop.xlane.xlu0 %2186
        %v2188 = vmax.f32 %v1786, %v1788
        %2189 = vmax.xlane.f32.xlu0 %v2188
        %v2190 = vpop.xlane.xlu0 %2189
        %v2191 = vmax.f32 %v1790, %v1792
        %2192 = vmax.xlane.f32.xlu0 %v2191
        %v2193 = vpop.xlane.xlu0 %2192
        %v2194 = vmax.f32 %v1796, %v1798
        %2195 = vmax.xlane.f32.xlu0 %v2194
        %v2196 = vpop.xlane.xlu0 %2195
        %v2197 = vmax.f32 %v1800, %v1802
        %2198 = vmax.xlane.f32.xlu0 %v2197
        %v2199 = vpop.xlane.xlu0 %2198
        %v2200 = vmax.f32 %v1806, %v1808
        %2201 = vmax.xlane.f32.xlu0 %v2200
        %v2202 = vpop.xlane.xlu0 %2201
        %v2203 = vmax.f32 %v1810, %v1812
        %2204 = vmax.xlane.f32.xlu0 %v2203
        %v2205 = vpop.xlane.xlu0 %2204
        %v2206 = vmax.f32 %v1816, %v1818
        %2207 = vmax.xlane.f32.xlu0 %v2206
        %v2208 = vpop.xlane.xlu0 %2207
        %v2209 = vmax.f32 %v1820, %v1822
        %2210 = vmax.xlane.f32.xlu0 %v2209
        %v2211 = vpop.xlane.xlu0 %2210
        %v2212 = vmax.f32 %v1826, %v1828
        %2213 = vmax.xlane.f32.xlu0 %v2212
        %v2214 = vpop.xlane.xlu0 %2213
        %v2215 = vmax.f32 %v1830, %v1832
        %2216 = vmax.xlane.f32.xlu0 %v2215
        %v2217 = vpop.xlane.xlu0 %2216
        %v2218 = vsub.f32 %v839, %v1836
        %v2219 = vsub.f32 %v841, %v1836
        %v2220 = vsub.f32 %v843, %v1839
        %v2221 = vsub.f32 %v845, %v1839
        %v2222 = vsub.f32 %v849, %v1842
        %v2223 = vsub.f32 %v851, %v1842
        %v2224 = vsub.f32 %v853, %v1845
        %v2225 = vsub.f32 %v855, %v1845
        %v2226 = vsub.f32 %v859, %v1848
        %v2227 = vsub.f32 %v861, %v1848
        %v2228 = vsub.f32 %v863, %v1851
        %v2229 = vsub.f32 %v865, %v1851
        %v2230 = vsub.f32 %v869, %v1854
        %v2231 = vsub.f32 %v871, %v1854
        %v2232 = vsub.f32 %v873, %v1857
        %v2233 = vsub.f32 %v875, %v1857
        %v2234 = vsub.f32 %v879, %v1860
        %v2235 = vsub.f32 %v881, %v1860
        %v2236 = vsub.f32 %v883, %v1863
        %v2237 = vsub.f32 %v885, %v1863
        %v2238 = vsub.f32 %v889, %v1866
        %v2239 = vsub.f32 %v891, %v1866
        %v2240 = vsub.f32 %v893, %v1869
        %v2241 = vsub.f32 %v895, %v1869
        %v2242 = vsub.f32 %v899, %v1872
        %v2243 = vsub.f32 %v901, %v1872
        %v2244 = vsub.f32 %v903, %v1875
        %v2245 = vsub.f32 %v905, %v1875
        %v2246 = vsub.f32 %v909, %v1878
        %v2247 = vsub.f32 %v911, %v1878
        %v2248 = vsub.f32 %v913, %v1881
        %v2249 = vsub.f32 %v915, %v1881
        %v2250 = vsub.f32 %v919, %v1884
        %v2251 = vsub.f32 %v921, %v1884
        %v2252 = vsub.f32 %v923, %v1887
        %v2253 = vsub.f32 %v925, %v1887
        %v2254 = vsub.f32 %v929, %v1890
        %v2255 = vsub.f32 %v931, %v1890
        %v2256 = vsub.f32 %v933, %v1893
        %v2257 = vsub.f32 %v935, %v1893
        %v2258 = vsub.f32 %v939, %v1896
        %v2259 = vsub.f32 %v941, %v1896
        %v2260 = vsub.f32 %v943, %v1899
        %v2261 = vsub.f32 %v945, %v1899
        %v2262 = vsub.f32 %v949, %v1902
        %v2263 = vsub.f32 %v951, %v1902
        %v2264 = vsub.f32 %v953, %v1905
        %v2265 = vsub.f32 %v955, %v1905
        %v2266 = vsub.f32 %v959, %v1908
        %v2267 = vsub.f32 %v961, %v1908
        %v2268 = vsub.f32 %v963, %v1911
        %v2269 = vsub.f32 %v965, %v1911
        %v2270 = vsub.f32 %v969, %v1914
        %v2271 = vsub.f32 %v971, %v1914
        %v2272 = vsub.f32 %v973, %v1917
        %v2273 = vsub.f32 %v975, %v1917
        %v2274 = vsub.f32 %v979, %v1920
        %v2275 = vsub.f32 %v981, %v1920
        %v2276 = vsub.f32 %v983, %v1923
        %v2277 = vsub.f32 %v985, %v1923
        %v2278 = vsub.f32 %v989, %v1926
        %v2279 = vsub.f32 %v991, %v1926
        %v2280 = vsub.f32 %v993, %v1929
        %v2281 = vsub.f32 %v995, %v1929
        %v2282 = vsub.f32 %v1118, %v1932
        %v2283 = vsub.f32 %v1120, %v1932
        %v2284 = vsub.f32 %v1122, %v1935
        %v2285 = vsub.f32 %v1124, %v1935
        %v2286 = vsub.f32 %v1128, %v1938
        %v2287 = vsub.f32 %v1130, %v1938
        %v2288 = vsub.f32 %v1132, %v1941
        %v2289 = vsub.f32 %v1134, %v1941
        %v2290 = vsub.f32 %v1138, %v1944
        %v2291 = vsub.f32 %v1140, %v1944
        %v2292 = vsub.f32 %v1142, %v1947
        %v2293 = vsub.f32 %v1144, %v1947
        %v2294 = vsub.f32 %v1148, %v1950
        %v2295 = vsub.f32 %v1150, %v1950
        %v2296 = vsub.f32 %v1152, %v1953
        %v2297 = vsub.f32 %v1154, %v1953
        %v2298 = vsub.f32 %v1158, %v1956
        %v2299 = vsub.f32 %v1160, %v1956
        %v2300 = vsub.f32 %v1162, %v1959
        %v2301 = vsub.f32 %v1164, %v1959
        %v2302 = vsub.f32 %v1168, %v1962
        %v2303 = vsub.f32 %v1170, %v1962
        %v2304 = vsub.f32 %v1172, %v1965
        %v2305 = vsub.f32 %v1174, %v1965
        %v2306 = vsub.f32 %v1178, %v1968
        %v2307 = vsub.f32 %v1180, %v1968
        %v2308 = vsub.f32 %v1182, %v1971
        %v2309 = vsub.f32 %v1184, %v1971
        %v2310 = vsub.f32 %v1188, %v1974
        %v2311 = vsub.f32 %v1190, %v1974
        %v2312 = vsub.f32 %v1192, %v1977
        %v2313 = vsub.f32 %v1194, %v1977
        %v2314 = vsub.f32 %v1198, %v1980
        %v2315 = vsub.f32 %v1200, %v1980
        %v2316 = vsub.f32 %v1202, %v1983
        %v2317 = vsub.f32 %v1204, %v1983
        %v2318 = vsub.f32 %v1208, %v1986
        %v2319 = vsub.f32 %v1210, %v1986
        %v2320 = vsub.f32 %v1212, %v1989
        %v2321 = vsub.f32 %v1214, %v1989
        %v2322 = vsub.f32 %v1218, %v1992
        %v2323 = vsub.f32 %v1220, %v1992
        %v2324 = vsub.f32 %v1222, %v1995
        %v2325 = vsub.f32 %v1224, %v1995
        %v2326 = vsub.f32 %v1228, %v1998
        %v2327 = vsub.f32 %v1230, %v1998
        %v2328 = vsub.f32 %v1232, %v2001
        %v2329 = vsub.f32 %v1234, %v2001
        %v2330 = vsub.f32 %v1238, %v2004
        %v2331 = vsub.f32 %v1240, %v2004
        %v2332 = vsub.f32 %v1242, %v2007
        %v2333 = vsub.f32 %v1244, %v2007
        %v2334 = vsub.f32 %v1248, %v2010
        %v2335 = vsub.f32 %v1250, %v2010
        %v2336 = vsub.f32 %v1252, %v2013
        %v2337 = vsub.f32 %v1254, %v2013
        %v2338 = vsub.f32 %v1258, %v2016
        %v2339 = vsub.f32 %v1260, %v2016
        %v2340 = vsub.f32 %v1262, %v2019
        %v2341 = vsub.f32 %v1264, %v2019
        %v2342 = vsub.f32 %v1268, %v2022
        %v2343 = vsub.f32 %v1270, %v2022
        %v2344 = vsub.f32 %v1272, %v2025
        %v2345 = vsub.f32 %v1274, %v2025
        %v2346 = vsub.f32 %v1397, %v2028
        %v2347 = vsub.f32 %v1399, %v2028
        %v2348 = vsub.f32 %v1401, %v2031
        %v2349 = vsub.f32 %v1403, %v2031
        %v2350 = vsub.f32 %v1407, %v2034
        %v2351 = vsub.f32 %v1409, %v2034
        %v2352 = vsub.f32 %v1411, %v2037
        %v2353 = vsub.f32 %v1413, %v2037
        %v2354 = vsub.f32 %v1417, %v2040
        %v2355 = vsub.f32 %v1419, %v2040
        %v2356 = vsub.f32 %v1421, %v2043
        %v2357 = vsub.f32 %v1423, %v2043
        %v2358 = vsub.f32 %v1427, %v2046
        %v2359 = vsub.f32 %v1429, %v2046
        %v2360 = vsub.f32 %v1431, %v2049
        %v2361 = vsub.f32 %v1433, %v2049
        %v2362 = vsub.f32 %v1437, %v2052
        %v2363 = vsub.f32 %v1439, %v2052
        %v2364 = vsub.f32 %v1441, %v2055
        %v2365 = vsub.f32 %v1443, %v2055
        %v2366 = vsub.f32 %v1447, %v2058
        %v2367 = vsub.f32 %v1449, %v2058
        %v2368 = vsub.f32 %v1451, %v2061
        %v2369 = vsub.f32 %v1453, %v2061
        %v2370 = vsub.f32 %v1457, %v2064
        %v2371 = vsub.f32 %v1459, %v2064
        %v2372 = vsub.f32 %v1461, %v2067
        %v2373 = vsub.f32 %v1463, %v2067
        %v2374 = vsub.f32 %v1467, %v2070
        %v2375 = vsub.f32 %v1469, %v2070
        %v2376 = vsub.f32 %v1471, %v2073
        %v2377 = vsub.f32 %v1473, %v2073
        %v2378 = vsub.f32 %v1477, %v2076
        %v2379 = vsub.f32 %v1479, %v2076
        %v2380 = vsub.f32 %v1481, %v2079
        %v2381 = vsub.f32 %v1483, %v2079
        %v2382 = vsub.f32 %v1487, %v2082
        %v2383 = vsub.f32 %v1489, %v2082
        %v2384 = vsub.f32 %v1491, %v2085
        %v2385 = vsub.f32 %v1493, %v2085
        %v2386 = vsub.f32 %v1497, %v2088
        %v2387 = vsub.f32 %v1499, %v2088
        %v2388 = vsub.f32 %v1501, %v2091
        %v2389 = vsub.f32 %v1503, %v2091
        %v2390 = vsub.f32 %v1507, %v2094
        %v2391 = vsub.f32 %v1509, %v2094
        %v2392 = vsub.f32 %v1511, %v2097
        %v2393 = vsub.f32 %v1513, %v2097
        %v2394 = vsub.f32 %v1517, %v2100
        %v2395 = vsub.f32 %v1519, %v2100
        %v2396 = vsub.f32 %v1521, %v2103
        %v2397 = vsub.f32 %v1523, %v2103
        %v2398 = vsub.f32 %v1527, %v2106
        %v2399 = vsub.f32 %v1529, %v2106
        %v2400 = vsub.f32 %v1531, %v2109
        %v2401 = vsub.f32 %v1533, %v2109
        %v2402 = vsub.f32 %v1537, %v2112
        %v2403 = vsub.f32 %v1539, %v2112
        %v2404 = vsub.f32 %v1541, %v2115
        %v2405 = vsub.f32 %v1543, %v2115
        %v2406 = vsub.f32 %v1547, %v2118
        %v2407 = vsub.f32 %v1549, %v2118
        %v2408 = vsub.f32 %v1551, %v2121
        %v2409 = vsub.f32 %v1553, %v2121
        %v2410 = vsub.f32 %v1676, %v2124
        %v2411 = vsub.f32 %v1678, %v2124
        %v2412 = vsub.f32 %v1680, %v2127
        %v2413 = vsub.f32 %v1682, %v2127
        %v2414 = vsub.f32 %v1686, %v2130
        %v2415 = vsub.f32 %v1688, %v2130
        %v2416 = vsub.f32 %v1690, %v2133
        %v2417 = vsub.f32 %v1692, %v2133
        %v2418 = vsub.f32 %v1696, %v2136
        %v2419 = vsub.f32 %v1698, %v2136
        %v2420 = vsub.f32 %v1700, %v2139
        %v2421 = vsub.f32 %v1702, %v2139
        %v2422 = vsub.f32 %v1706, %v2142
        %v2423 = vsub.f32 %v1708, %v2142
        %v2424 = vsub.f32 %v1710, %v2145
        %v2425 = vsub.f32 %v1712, %v2145
        %v2426 = vsub.f32 %v1716, %v2148
        %v2427 = vsub.f32 %v1718, %v2148
        %v2428 = vsub.f32 %v1720, %v2151
        %v2429 = vsub.f32 %v1722, %v2151
        %v2430 = vsub.f32 %v1726, %v2154
        %v2431 = vsub.f32 %v1728, %v2154
        %v2432 = vsub.f32 %v1730, %v2157
        %v2433 = vsub.f32 %v1732, %v2157
        %v2434 = vsub.f32 %v1736, %v2160
        %v2435 = vsub.f32 %v1738, %v2160
        %v2436 = vsub.f32 %v1740, %v2163
        %v2437 = vsub.f32 %v1742, %v2163
        %v2438 = vsub.f32 %v1746, %v2166
        %v2439 = vsub.f32 %v1748, %v2166
        %v2440 = vsub.f32 %v1750, %v2169
        %v2441 = vsub.f32 %v1752, %v2169
        %v2442 = vsub.f32 %v1756, %v2172
        %v2443 = vsub.f32 %v1758, %v2172
        %v2444 = vsub.f32 %v1760, %v2175
        %v2445 = vsub.f32 %v1762, %v2175
        %v2446 = vsub.f32 %v1766, %v2178
        %v2447 = vsub.f32 %v1768, %v2178
        %v2448 = vsub.f32 %v1770, %v2181
        %v2449 = vsub.f32 %v1772, %v2181
        %v2450 = vsub.f32 %v1776, %v2184
        %v2451 = vsub.f32 %v1778, %v2184
        %v2452 = vsub.f32 %v1780, %v2187
        %v2453 = vsub.f32 %v1782, %v2187
        %v2454 = vsub.f32 %v1786, %v2190
        %v2455 = vsub.f32 %v1788, %v2190
        %v2456 = vsub.f32 %v1790, %v2193
        %v2457 = vsub.f32 %v1792, %v2193
        %v2458 = vsub.f32 %v1796, %v2196
        %v2459 = vsub.f32 %v1798, %v2196
        %v2460 = vsub.f32 %v1800, %v2199
        %v2461 = vsub.f32 %v1802, %v2199
        %v2462 = vsub.f32 %v1806, %v2202
        %v2463 = vsub.f32 %v1808, %v2202
        %v2464 = vsub.f32 %v1810, %v2205
        %v2465 = vsub.f32 %v1812, %v2205
        %v2466 = vsub.f32 %v1816, %v2208
        %v2467 = vsub.f32 %v1818, %v2208
        %v2468 = vsub.f32 %v1820, %v2211
        %v2469 = vsub.f32 %v1822, %v2211
        %v2470 = vsub.f32 %v1826, %v2214
        %v2471 = vsub.f32 %v1828, %v2214
        %v2472 = vsub.f32 %v1830, %v2217
        %v2473 = vsub.f32 %v1832, %v2217
        %v2474 = vmul.f32 %v2218, 1.442695
        %v2475 = vpow.pop %v2474
        %v2476 = vmul.f32 %v2219, 1.442695
        %v2477 = vpow.pop %v2476
        %v2478 = vmul.f32 %v2220, 1.442695
        %v2479 = vpow.pop %v2478
        %v2480 = vmul.f32 %v2221, 1.442695
        %v2481 = vpow.pop %v2480
        %v2482 = vmul.f32 %v2222, 1.442695
        %v2483 = vpow.pop %v2482
        %v2484 = vmul.f32 %v2223, 1.442695
        %v2485 = vpow.pop %v2484
        %v2486 = vmul.f32 %v2224, 1.442695
        %v2487 = vpow.pop %v2486
        %v2488 = vmul.f32 %v2225, 1.442695
        %v2489 = vpow.pop %v2488
        %v2490 = vmul.f32 %v2226, 1.442695
        %v2491 = vpow.pop %v2490
        %v2492 = vmul.f32 %v2227, 1.442695
        %v2493 = vpow.pop %v2492
        %v2494 = vmul.f32 %v2228, 1.442695
        %v2495 = vpow.pop %v2494
        %v2496 = vmul.f32 %v2229, 1.442695
        %v2497 = vpow.pop %v2496
        %v2498 = vmul.f32 %v2230, 1.442695
        %v2499 = vpow.pop %v2498
        %v2500 = vmul.f32 %v2231, 1.442695
        %v2501 = vpow.pop %v2500
        %v2502 = vmul.f32 %v2232, 1.442695
        %v2503 = vpow.pop %v2502
        %v2504 = vmul.f32 %v2233, 1.442695
        %v2505 = vpow.pop %v2504
        %v2506 = vmul.f32 %v2234, 1.442695
        %v2507 = vpow.pop %v2506
        %v2508 = vmul.f32 %v2235, 1.442695
        %v2509 = vpow.pop %v2508
        %v2510 = vmul.f32 %v2236, 1.442695
        %v2511 = vpow.pop %v2510
        %v2512 = vmul.f32 %v2237, 1.442695
        %v2513 = vpow.pop %v2512
        %v2514 = vmul.f32 %v2238, 1.442695
        %v2515 = vpow.pop %v2514
        %v2516 = vmul.f32 %v2239, 1.442695
        %v2517 = vpow.pop %v2516
        %v2518 = vmul.f32 %v2240, 1.442695
        %v2519 = vpow.pop %v2518
        %v2520 = vmul.f32 %v2241, 1.442695
        %v2521 = vpow.pop %v2520
        %v2522 = vmul.f32 %v2242, 1.442695
        %v2523 = vpow.pop %v2522
        %v2524 = vmul.f32 %v2243, 1.442695
        %v2525 = vpow.pop %v2524
        %v2526 = vmul.f32 %v2244, 1.442695
        %v2527 = vpow.pop %v2526
        %v2528 = vmul.f32 %v2245, 1.442695
        %v2529 = vpow.pop %v2528
        %v2530 = vmul.f32 %v2246, 1.442695
        %v2531 = vpow.pop %v2530
        %v2532 = vmul.f32 %v2247, 1.442695
        %v2533 = vpow.pop %v2532
        %v2534 = vmul.f32 %v2248, 1.442695
        %v2535 = vpow.pop %v2534
        %v2536 = vmul.f32 %v2249, 1.442695
        %v2537 = vpow.pop %v2536
        %v2538 = vmul.f32 %v2250, 1.442695
        %v2539 = vpow.pop %v2538
        %v2540 = vmul.f32 %v2251, 1.442695
        %v2541 = vpow.pop %v2540
        %v2542 = vmul.f32 %v2252, 1.442695
        %v2543 = vpow.pop %v2542
        %v2544 = vmul.f32 %v2253, 1.442695
        %v2545 = vpow.pop %v2544
        %v2546 = vmul.f32 %v2254, 1.442695
        %v2547 = vpow.pop %v2546
        %v2548 = vmul.f32 %v2255, 1.442695
        %v2549 = vpow.pop %v2548
        %v2550 = vmul.f32 %v2256, 1.442695
        %v2551 = vpow.pop %v2550
        %v2552 = vmul.f32 %v2257, 1.442695
        %v2553 = vpow.pop %v2552
        %v2554 = vmul.f32 %v2258, 1.442695
        %v2555 = vpow.pop %v2554
        %v2556 = vmul.f32 %v2259, 1.442695
        %v2557 = vpow.pop %v2556
        %v2558 = vmul.f32 %v2260, 1.442695
        %v2559 = vpow.pop %v2558
        %v2560 = vmul.f32 %v2261, 1.442695
        %v2561 = vpow.pop %v2560
        %v2562 = vmul.f32 %v2262, 1.442695
        %v2563 = vpow.pop %v2562
        %v2564 = vmul.f32 %v2263, 1.442695
        %v2565 = vpow.pop %v2564
        %v2566 = vmul.f32 %v2264, 1.442695
        %v2567 = vpow.pop %v2566
        %v2568 = vmul.f32 %v2265, 1.442695
        %v2569 = vpow.pop %v2568
        %v2570 = vmul.f32 %v2266, 1.442695
        %v2571 = vpow.pop %v2570
        %v2572 = vmul.f32 %v2267, 1.442695
        %v2573 = vpow.pop %v2572
        %v2574 = vmul.f32 %v2268, 1.442695
        %v2575 = vpow.pop %v2574
        %v2576 = vmul.f32 %v2269, 1.442695
        %v2577 = vpow.pop %v2576
        %v2578 = vmul.f32 %v2270, 1.442695
        %v2579 = vpow.pop %v2578
        %v2580 = vmul.f32 %v2271, 1.442695
        %v2581 = vpow.pop %v2580
        %v2582 = vmul.f32 %v2272, 1.442695
        %v2583 = vpow.pop %v2582
        %v2584 = vmul.f32 %v2273, 1.442695
        %v2585 = vpow.pop %v2584
        %v2586 = vmul.f32 %v2274, 1.442695
        %v2587 = vpow.pop %v2586
        %v2588 = vmul.f32 %v2275, 1.442695
        %v2589 = vpow.pop %v2588
        %v2590 = vmul.f32 %v2276, 1.442695
        %v2591 = vpow.pop %v2590
        %v2592 = vmul.f32 %v2277, 1.442695
        %v2593 = vpow.pop %v2592
        %v2594 = vmul.f32 %v2278, 1.442695
        %v2595 = vpow.pop %v2594
        %v2596 = vmul.f32 %v2279, 1.442695
        %v2597 = vpow.pop %v2596
        %v2598 = vmul.f32 %v2280, 1.442695
        %v2599 = vpow.pop %v2598
        %v2600 = vmul.f32 %v2281, 1.442695
        %v2601 = vpow.pop %v2600
        %v2602 = vmul.f32 %v2282, 1.442695
        %v2603 = vpow.pop %v2602
        %v2604 = vmul.f32 %v2283, 1.442695
        %v2605 = vpow.pop %v2604
        %v2606 = vmul.f32 %v2284, 1.442695
        %v2607 = vpow.pop %v2606
        %v2608 = vmul.f32 %v2285, 1.442695
        %v2609 = vpow.pop %v2608
        %v2610 = vmul.f32 %v2286, 1.442695
        %v2611 = vpow.pop %v2610
        %v2612 = vmul.f32 %v2287, 1.442695
        %v2613 = vpow.pop %v2612
        %v2614 = vmul.f32 %v2288, 1.442695
        %v2615 = vpow.pop %v2614
        %v2616 = vmul.f32 %v2289, 1.442695
        %v2617 = vpow.pop %v2616
        %v2618 = vmul.f32 %v2290, 1.442695
        %v2619 = vpow.pop %v2618
        %v2620 = vmul.f32 %v2291, 1.442695
        %v2621 = vpow.pop %v2620
        %v2622 = vmul.f32 %v2292, 1.442695
        %v2623 = vpow.pop %v2622
        %v2624 = vmul.f32 %v2293, 1.442695
        %v2625 = vpow.pop %v2624
        %v2626 = vmul.f32 %v2294, 1.442695
        %v2627 = vpow.pop %v2626
        %v2628 = vmul.f32 %v2295, 1.442695
        %v2629 = vpow.pop %v2628
        %v2630 = vmul.f32 %v2296, 1.442695
        %v2631 = vpow.pop %v2630
        %v2632 = vmul.f32 %v2297, 1.442695
        %v2633 = vpow.pop %v2632
        %v2634 = vmul.f32 %v2298, 1.442695
        %v2635 = vpow.pop %v2634
        %v2636 = vmul.f32 %v2299, 1.442695
        %v2637 = vpow.pop %v2636
        %v2638 = vmul.f32 %v2300, 1.442695
        %v2639 = vpow.pop %v2638
        %v2640 = vmul.f32 %v2301, 1.442695
        %v2641 = vpow.pop %v2640
        %v2642 = vmul.f32 %v2302, 1.442695
        %v2643 = vpow.pop %v2642
        %v2644 = vmul.f32 %v2303, 1.442695
        %v2645 = vpow.pop %v2644
        %v2646 = vmul.f32 %v2304, 1.442695
        %v2647 = vpow.pop %v2646
        %v2648 = vmul.f32 %v2305, 1.442695
        %v2649 = vpow.pop %v2648
        %v2650 = vmul.f32 %v2306, 1.442695
        %v2651 = vpow.pop %v2650
        %v2652 = vmul.f32 %v2307, 1.442695
        %v2653 = vpow.pop %v2652
        %v2654 = vmul.f32 %v2308, 1.442695
        %v2655 = vpow.pop %v2654
        %v2656 = vmul.f32 %v2309, 1.442695
        %v2657 = vpow.pop %v2656
        %v2658 = vmul.f32 %v2310, 1.442695
        %v2659 = vpow.pop %v2658
        %v2660 = vmul.f32 %v2311, 1.442695
        %v2661 = vpow.pop %v2660
        %v2662 = vmul.f32 %v2312, 1.442695
        %v2663 = vpow.pop %v2662
        %v2664 = vmul.f32 %v2313, 1.442695
        %v2665 = vpow.pop %v2664
        %v2666 = vmul.f32 %v2314, 1.442695
        %v2667 = vpow.pop %v2666
        %v2668 = vmul.f32 %v2315, 1.442695
        %v2669 = vpow.pop %v2668
        %v2670 = vmul.f32 %v2316, 1.442695
        %v2671 = vpow.pop %v2670
        %v2672 = vmul.f32 %v2317, 1.442695
        %v2673 = vpow.pop %v2672
        %v2674 = vmul.f32 %v2318, 1.442695
        %v2675 = vpow.pop %v2674
        %v2676 = vmul.f32 %v2319, 1.442695
        %v2677 = vpow.pop %v2676
        %v2678 = vmul.f32 %v2320, 1.442695
        %v2679 = vpow.pop %v2678
        %v2680 = vmul.f32 %v2321, 1.442695
        %v2681 = vpow.pop %v2680
        %v2682 = vmul.f32 %v2322, 1.442695
        %v2683 = vpow.pop %v2682
        %v2684 = vmul.f32 %v2323, 1.442695
        %v2685 = vpow.pop %v2684
        %v2686 = vmul.f32 %v2324, 1.442695
        %v2687 = vpow.pop %v2686
        %v2688 = vmul.f32 %v2325, 1.442695
        %v2689 = vpow.pop %v2688
        %v2690 = vmul.f32 %v2326, 1.442695
        %v2691 = vpow.pop %v2690
        %v2692 = vmul.f32 %v2327, 1.442695
        %v2693 = vpow.pop %v2692
        %v2694 = vmul.f32 %v2328, 1.442695
        %v2695 = vpow.pop %v2694
        %v2696 = vmul.f32 %v2329, 1.442695
        %v2697 = vpow.pop %v2696
        %v2698 = vmul.f32 %v2330, 1.442695
        %v2699 = vpow.pop %v2698
        %v2700 = vmul.f32 %v2331, 1.442695
        %v2701 = vpow.pop %v2700
        %v2702 = vmul.f32 %v2332, 1.442695
        %v2703 = vpow.pop %v2702
        %v2704 = vmul.f32 %v2333, 1.442695
        %v2705 = vpow.pop %v2704
        %v2706 = vmul.f32 %v2334, 1.442695
        %v2707 = vpow.pop %v2706
        %v2708 = vmul.f32 %v2335, 1.442695
        %v2709 = vpow.pop %v2708
        %v2710 = vmul.f32 %v2336, 1.442695
        %v2711 = vpow.pop %v2710
        %v2712 = vmul.f32 %v2337, 1.442695
        %v2713 = vpow.pop %v2712
        %v2714 = vmul.f32 %v2338, 1.442695
        %v2715 = vpow.pop %v2714
        %v2716 = vmul.f32 %v2339, 1.442695
        %v2717 = vpow.pop %v2716
        %v2718 = vmul.f32 %v2340, 1.442695
        %v2719 = vpow.pop %v2718
        %v2720 = vmul.f32 %v2341, 1.442695
        %v2721 = vpow.pop %v2720
        %v2722 = vmul.f32 %v2342, 1.442695
        %v2723 = vpow.pop %v2722
        %v2724 = vmul.f32 %v2343, 1.442695
        %v2725 = vpow.pop %v2724
        %v2726 = vmul.f32 %v2344, 1.442695
        %v2727 = vpow.pop %v2726
        %v2728 = vmul.f32 %v2345, 1.442695
        %v2729 = vpow.pop %v2728
        %v2730 = vmul.f32 %v2346, 1.442695
        %v2731 = vpow.pop %v2730
        %v2732 = vmul.f32 %v2347, 1.442695
        %v2733 = vpow.pop %v2732
        %v2734 = vmul.f32 %v2348, 1.442695
        %v2735 = vpow.pop %v2734
        %v2736 = vmul.f32 %v2349, 1.442695
        %v2737 = vpow.pop %v2736
        %v2738 = vmul.f32 %v2350, 1.442695
        %v2739 = vpow.pop %v2738
        %v2740 = vmul.f32 %v2351, 1.442695
        %v2741 = vpow.pop %v2740
        %v2742 = vmul.f32 %v2352, 1.442695
        %v2743 = vpow.pop %v2742
        %v2744 = vmul.f32 %v2353, 1.442695
        %v2745 = vpow.pop %v2744
        %v2746 = vmul.f32 %v2354, 1.442695
        %v2747 = vpow.pop %v2746
        %v2748 = vmul.f32 %v2355, 1.442695
        %v2749 = vpow.pop %v2748
        %v2750 = vmul.f32 %v2356, 1.442695
        %v2751 = vpow.pop %v2750
        %v2752 = vmul.f32 %v2357, 1.442695
        %v2753 = vpow.pop %v2752
        %v2754 = vmul.f32 %v2358, 1.442695
        %v2755 = vpow.pop %v2754
        %v2756 = vmul.f32 %v2359, 1.442695
        %v2757 = vpow.pop %v2756
        %v2758 = vmul.f32 %v2360, 1.442695
        %v2759 = vpow.pop %v2758
        %v2760 = vmul.f32 %v2361, 1.442695
        %v2761 = vpow.pop %v2760
        %v2762 = vmul.f32 %v2362, 1.442695
        %v2763 = vpow.pop %v2762
        %v2764 = vmul.f32 %v2363, 1.442695
        %v2765 = vpow.pop %v2764
        %v2766 = vmul.f32 %v2364, 1.442695
        %v2767 = vpow.pop %v2766
        %v2768 = vmul.f32 %v2365, 1.442695
        %v2769 = vpow.pop %v2768
        %v2770 = vmul.f32 %v2366, 1.442695
        %v2771 = vpow.pop %v2770
        %v2772 = vmul.f32 %v2367, 1.442695
        %v2773 = vpow.pop %v2772
        %v2774 = vmul.f32 %v2368, 1.442695
        %v2775 = vpow.pop %v2774
        %v2776 = vmul.f32 %v2369, 1.442695
        %v2777 = vpow.pop %v2776
        %v2778 = vmul.f32 %v2370, 1.442695
        %v2779 = vpow.pop %v2778
        %v2780 = vmul.f32 %v2371, 1.442695
        %v2781 = vpow.pop %v2780
        %v2782 = vmul.f32 %v2372, 1.442695
        %v2783 = vpow.pop %v2782
        %v2784 = vmul.f32 %v2373, 1.442695
        %v2785 = vpow.pop %v2784
        %v2786 = vmul.f32 %v2374, 1.442695
        %v2787 = vpow.pop %v2786
        %v2788 = vmul.f32 %v2375, 1.442695
        %v2789 = vpow.pop %v2788
        %v2790 = vmul.f32 %v2376, 1.442695
        %v2791 = vpow.pop %v2790
        %v2792 = vmul.f32 %v2377, 1.442695
        %v2793 = vpow.pop %v2792
        %v2794 = vmul.f32 %v2378, 1.442695
        %v2795 = vpow.pop %v2794
        %v2796 = vmul.f32 %v2379, 1.442695
        %v2797 = vpow.pop %v2796
        %v2798 = vmul.f32 %v2380, 1.442695
        %v2799 = vpow.pop %v2798
        %v2800 = vmul.f32 %v2381, 1.442695
        %v2801 = vpow.pop %v2800
        %v2802 = vmul.f32 %v2382, 1.442695
        %v2803 = vpow.pop %v2802
        %v2804 = vmul.f32 %v2383, 1.442695
        %v2805 = vpow.pop %v2804
        %v2806 = vmul.f32 %v2384, 1.442695
        %v2807 = vpow.pop %v2806
        %v2808 = vmul.f32 %v2385, 1.442695
        %v2809 = vpow.pop %v2808
        %v2810 = vmul.f32 %v2386, 1.442695
        %v2811 = vpow.pop %v2810
        %v2812 = vmul.f32 %v2387, 1.442695
        %v2813 = vpow.pop %v2812
        %v2814 = vmul.f32 %v2388, 1.442695
        %v2815 = vpow.pop %v2814
        %v2816 = vmul.f32 %v2389, 1.442695
        %v2817 = vpow.pop %v2816
        %v2818 = vmul.f32 %v2390, 1.442695
        %v2819 = vpow.pop %v2818
        %v2820 = vmul.f32 %v2391, 1.442695
        %v2821 = vpow.pop %v2820
        %v2822 = vmul.f32 %v2392, 1.442695
        %v2823 = vpow.pop %v2822
        %v2824 = vmul.f32 %v2393, 1.442695
        %v2825 = vpow.pop %v2824
        %v2826 = vmul.f32 %v2394, 1.442695
        %v2827 = vpow.pop %v2826
        %v2828 = vmul.f32 %v2395, 1.442695
        %v2829 = vpow.pop %v2828
        %v2830 = vmul.f32 %v2396, 1.442695
        %v2831 = vpow.pop %v2830
        %v2832 = vmul.f32 %v2397, 1.442695
        %v2833 = vpow.pop %v2832
        %v2834 = vmul.f32 %v2398, 1.442695
        %v2835 = vpow.pop %v2834
        %v2836 = vmul.f32 %v2399, 1.442695
        %v2837 = vpow.pop %v2836
        %v2838 = vmul.f32 %v2400, 1.442695
        %v2839 = vpow.pop %v2838
        %v2840 = vmul.f32 %v2401, 1.442695
        %v2841 = vpow.pop %v2840
        %v2842 = vmul.f32 %v2402, 1.442695
        %v2843 = vpow.pop %v2842
        %v2844 = vmul.f32 %v2403, 1.442695
        %v2845 = vpow.pop %v2844
        %v2846 = vmul.f32 %v2404, 1.442695
        %v2847 = vpow.pop %v2846
        %v2848 = vmul.f32 %v2405, 1.442695
        %v2849 = vpow.pop %v2848
        %v2850 = vmul.f32 %v2406, 1.442695
        %v2851 = vpow.pop %v2850
        %v2852 = vmul.f32 %v2407, 1.442695
        %v2853 = vpow.pop %v2852
        %v2854 = vmul.f32 %v2408, 1.442695
        %v2855 = vpow.pop %v2854
        %v2856 = vmul.f32 %v2409, 1.442695
        %v2857 = vpow.pop %v2856
        %v2858 = vmul.f32 %v2410, 1.442695
        %v2859 = vpow.pop %v2858
        %v2860 = vmul.f32 %v2411, 1.442695
        %v2861 = vpow.pop %v2860
        %v2862 = vmul.f32 %v2412, 1.442695
        %v2863 = vpow.pop %v2862
        %v2864 = vmul.f32 %v2413, 1.442695
        %v2865 = vpow.pop %v2864
        %v2866 = vmul.f32 %v2414, 1.442695
        %v2867 = vpow.pop %v2866
        %v2868 = vmul.f32 %v2415, 1.442695
        %v2869 = vpow.pop %v2868
        %v2870 = vmul.f32 %v2416, 1.442695
        %v2871 = vpow.pop %v2870
        %v2872 = vmul.f32 %v2417, 1.442695
        %v2873 = vpow.pop %v2872
        %v2874 = vmul.f32 %v2418, 1.442695
        %v2875 = vpow.pop %v2874
        %v2876 = vmul.f32 %v2419, 1.442695
        %v2877 = vpow.pop %v2876
        %v2878 = vmul.f32 %v2420, 1.442695
        %v2879 = vpow.pop %v2878
        %v2880 = vmul.f32 %v2421, 1.442695
        %v2881 = vpow.pop %v2880
        %v2882 = vmul.f32 %v2422, 1.442695
        %v2883 = vpow.pop %v2882
        %v2884 = vmul.f32 %v2423, 1.442695
        %v2885 = vpow.pop %v2884
        %v2886 = vmul.f32 %v2424, 1.442695
        %v2887 = vpow.pop %v2886
        %v2888 = vmul.f32 %v2425, 1.442695
        %v2889 = vpow.pop %v2888
        %v2890 = vmul.f32 %v2426, 1.442695
        %v2891 = vpow.pop %v2890
        %v2892 = vmul.f32 %v2427, 1.442695
        %v2893 = vpow.pop %v2892
        %v2894 = vmul.f32 %v2428, 1.442695
        %v2895 = vpow.pop %v2894
        %v2896 = vmul.f32 %v2429, 1.442695
        %v2897 = vpow.pop %v2896
        %v2898 = vmul.f32 %v2430, 1.442695
        %v2899 = vpow.pop %v2898
        %v2900 = vmul.f32 %v2431, 1.442695
        %v2901 = vpow.pop %v2900
        %v2902 = vmul.f32 %v2432, 1.442695
        %v2903 = vpow.pop %v2902
        %v2904 = vmul.f32 %v2433, 1.442695
        %v2905 = vpow.pop %v2904
        %v2906 = vmul.f32 %v2434, 1.442695
        %v2907 = vpow.pop %v2906
        %v2908 = vmul.f32 %v2435, 1.442695
        %v2909 = vpow.pop %v2908
        %v2910 = vmul.f32 %v2436, 1.442695
        %v2911 = vpow.pop %v2910
        %v2912 = vmul.f32 %v2437, 1.442695
        %v2913 = vpow.pop %v2912
        %v2914 = vmul.f32 %v2438, 1.442695
        %v2915 = vpow.pop %v2914
        %v2916 = vmul.f32 %v2439, 1.442695
        %v2917 = vpow.pop %v2916
        %v2918 = vmul.f32 %v2440, 1.442695
        %v2919 = vpow.pop %v2918
        %v2920 = vmul.f32 %v2441, 1.442695
        %v2921 = vpow.pop %v2920
        %v2922 = vmul.f32 %v2442, 1.442695
        %v2923 = vpow.pop %v2922
        %v2924 = vmul.f32 %v2443, 1.442695
        %v2925 = vpow.pop %v2924
        %v2926 = vmul.f32 %v2444, 1.442695
        %v2927 = vpow.pop %v2926
        %v2928 = vmul.f32 %v2445, 1.442695
        %v2929 = vpow.pop %v2928
        %v2930 = vmul.f32 %v2446, 1.442695
        %v2931 = vpow.pop %v2930
        %v2932 = vmul.f32 %v2447, 1.442695
        %v2933 = vpow.pop %v2932
        %v2934 = vmul.f32 %v2448, 1.442695
        %v2935 = vpow.pop %v2934
        %v2936 = vmul.f32 %v2449, 1.442695
        %v2937 = vpow.pop %v2936
        %v2938 = vmul.f32 %v2450, 1.442695
        %v2939 = vpow.pop %v2938
        %v2940 = vmul.f32 %v2451, 1.442695
        %v2941 = vpow.pop %v2940
        %v2942 = vmul.f32 %v2452, 1.442695
        %v2943 = vpow.pop %v2942
        %v2944 = vmul.f32 %v2453, 1.442695
        %v2945 = vpow.pop %v2944
        %v2946 = vmul.f32 %v2454, 1.442695
        %v2947 = vpow.pop %v2946
        %v2948 = vmul.f32 %v2455, 1.442695
        %v2949 = vpow.pop %v2948
        %v2950 = vmul.f32 %v2456, 1.442695
        %v2951 = vpow.pop %v2950
        %v2952 = vmul.f32 %v2457, 1.442695
        %v2953 = vpow.pop %v2952
        %v2954 = vmul.f32 %v2458, 1.442695
        %v2955 = vpow.pop %v2954
        %v2956 = vmul.f32 %v2459, 1.442695
        %v2957 = vpow.pop %v2956
        %v2958 = vmul.f32 %v2460, 1.442695
        %v2959 = vpow.pop %v2958
        %v2960 = vmul.f32 %v2461, 1.442695
        %v2961 = vpow.pop %v2960
        %v2962 = vmul.f32 %v2462, 1.442695
        %v2963 = vpow.pop %v2962
        %v2964 = vmul.f32 %v2463, 1.442695
        %v2965 = vpow.pop %v2964
        %v2966 = vmul.f32 %v2464, 1.442695
        %v2967 = vpow.pop %v2966
        %v2968 = vmul.f32 %v2465, 1.442695
        %v2969 = vpow.pop %v2968
        %v2970 = vmul.f32 %v2466, 1.442695
        %v2971 = vpow.pop %v2970
        %v2972 = vmul.f32 %v2467, 1.442695
        %v2973 = vpow.pop %v2972
        %v2974 = vmul.f32 %v2468, 1.442695
        %v2975 = vpow.pop %v2974
        %v2976 = vmul.f32 %v2469, 1.442695
        %v2977 = vpow.pop %v2976
        %v2978 = vmul.f32 %v2470, 1.442695
        %v2979 = vpow.pop %v2978
        %v2980 = vmul.f32 %v2471, 1.442695
        %v2981 = vpow.pop %v2980
        %v2982 = vmul.f32 %v2472, 1.442695
        %v2983 = vpow.pop %v2982
        %v2984 = vmul.f32 %v2473, 1.442695
        %v2985 = vpow.pop %v2984
        %v2986 = vadd.f32 %v2475, %v2477
        %2987 = vadd.xlane.f32.xlu0 %v2986
        %v2988 = vpop.xlane.xlu0 %2987
        %v2989 = vadd.f32 %v2479, %v2481
        %2990 = vadd.xlane.f32.xlu0 %v2989
        %v2991 = vpop.xlane.xlu0 %2990
        %v2992 = vadd.f32 %v2483, %v2485
        %2993 = vadd.xlane.f32.xlu0 %v2992
        %v2994 = vpop.xlane.xlu0 %2993
        %v2995 = vadd.f32 %v2487, %v2489
        %2996 = vadd.xlane.f32.xlu0 %v2995
        %v2997 = vpop.xlane.xlu0 %2996
        %v2998 = vadd.f32 %v2491, %v2493
        %2999 = vadd.xlane.f32.xlu0 %v2998
        %v3000 = vpop.xlane.xlu0 %2999
        %v3001 = vadd.f32 %v2495, %v2497
        %3002 = vadd.xlane.f32.xlu0 %v3001
        %v3003 = vpop.xlane.xlu0 %3002
        %v3004 = vadd.f32 %v2499, %v2501
        %3005 = vadd.xlane.f32.xlu0 %v3004
        %v3006 = vpop.xlane.xlu0 %3005
        %v3007 = vadd.f32 %v2503, %v2505
        %3008 = vadd.xlane.f32.xlu0 %v3007
        %v3009 = vpop.xlane.xlu0 %3008
        %v3010 = vadd.f32 %v2507, %v2509
        %3011 = vadd.xlane.f32.xlu0 %v3010
        %v3012 = vpop.xlane.xlu0 %3011
        %v3013 = vadd.f32 %v2511, %v2513
        %3014 = vadd.xlane.f32.xlu0 %v3013
        %v3015 = vpop.xlane.xlu0 %3014
        %v3016 = vadd.f32 %v2515, %v2517
        %3017 = vadd.xlane.f32.xlu0 %v3016
        %v3018 = vpop.xlane.xlu0 %3017
        %v3019 = vadd.f32 %v2519, %v2521
        %3020 = vadd.xlane.f32.xlu0 %v3019
        %v3021 = vpop.xlane.xlu0 %3020
        %v3022 = vadd.f32 %v2523, %v2525
        %3023 = vadd.xlane.f32.xlu0 %v3022
        %v3024 = vpop.xlane.xlu0 %3023
        %v3025 = vadd.f32 %v2527, %v2529
        %3026 = vadd.xlane.f32.xlu0 %v3025
        %v3027 = vpop.xlane.xlu0 %3026
        %v3028 = vadd.f32 %v2531, %v2533
        %3029 = vadd.xlane.f32.xlu0 %v3028
        %v3030 = vpop.xlane.xlu0 %3029
        %v3031 = vadd.f32 %v2535, %v2537
        %3032 = vadd.xlane.f32.xlu0 %v3031
        %v3033 = vpop.xlane.xlu0 %3032
        %v3034 = vadd.f32 %v2539, %v2541
        %3035 = vadd.xlane.f32.xlu0 %v3034
        %v3036 = vpop.xlane.xlu0 %3035
        %v3037 = vadd.f32 %v2543, %v2545
        %3038 = vadd.xlane.f32.xlu0 %v3037
        %v3039 = vpop.xlane.xlu0 %3038
        %v3040 = vadd.f32 %v2547, %v2549
        %3041 = vadd.xlane.f32.xlu0 %v3040
        %v3042 = vpop.xlane.xlu0 %3041
        %v3043 = vadd.f32 %v2551, %v2553
        %3044 = vadd.xlane.f32.xlu0 %v3043
        %v3045 = vpop.xlane.xlu0 %3044
        %v3046 = vadd.f32 %v2555, %v2557
        %3047 = vadd.xlane.f32.xlu0 %v3046
        %v3048 = vpop.xlane.xlu0 %3047
        %v3049 = vadd.f32 %v2559, %v2561
        %3050 = vadd.xlane.f32.xlu0 %v3049
        %v3051 = vpop.xlane.xlu0 %3050
        %v3052 = vadd.f32 %v2563, %v2565
        %3053 = vadd.xlane.f32.xlu0 %v3052
        %v3054 = vpop.xlane.xlu0 %3053
        %v3055 = vadd.f32 %v2567, %v2569
        %3056 = vadd.xlane.f32.xlu0 %v3055
        %v3057 = vpop.xlane.xlu0 %3056
        %v3058 = vadd.f32 %v2571, %v2573
        %3059 = vadd.xlane.f32.xlu0 %v3058
        %v3060 = vpop.xlane.xlu0 %3059
        %v3061 = vadd.f32 %v2575, %v2577
        %3062 = vadd.xlane.f32.xlu0 %v3061
        %v3063 = vpop.xlane.xlu0 %3062
        %v3064 = vadd.f32 %v2579, %v2581
        %3065 = vadd.xlane.f32.xlu0 %v3064
        %v3066 = vpop.xlane.xlu0 %3065
        %v3067 = vadd.f32 %v2583, %v2585
        %3068 = vadd.xlane.f32.xlu0 %v3067
        %v3069 = vpop.xlane.xlu0 %3068
        %v3070 = vadd.f32 %v2587, %v2589
        %3071 = vadd.xlane.f32.xlu0 %v3070
        %v3072 = vpop.xlane.xlu0 %3071
        %v3073 = vadd.f32 %v2591, %v2593
        %3074 = vadd.xlane.f32.xlu0 %v3073
        %v3075 = vpop.xlane.xlu0 %3074
        %v3076 = vadd.f32 %v2595, %v2597
        %3077 = vadd.xlane.f32.xlu0 %v3076
        %v3078 = vpop.xlane.xlu0 %3077
        %v3079 = vadd.f32 %v2599, %v2601
        %3080 = vadd.xlane.f32.xlu0 %v3079
        %v3081 = vpop.xlane.xlu0 %3080
        %v3082 = vadd.f32 %v2603, %v2605
        %3083 = vadd.xlane.f32.xlu0 %v3082
        %v3084 = vpop.xlane.xlu0 %3083
        %v3085 = vadd.f32 %v2607, %v2609
        %3086 = vadd.xlane.f32.xlu0 %v3085
        %v3087 = vpop.xlane.xlu0 %3086
        %v3088 = vadd.f32 %v2611, %v2613
        %3089 = vadd.xlane.f32.xlu0 %v3088
        %v3090 = vpop.xlane.xlu0 %3089
        %v3091 = vadd.f32 %v2615, %v2617
        %3092 = vadd.xlane.f32.xlu0 %v3091
        %v3093 = vpop.xlane.xlu0 %3092
        %v3094 = vadd.f32 %v2619, %v2621
        %3095 = vadd.xlane.f32.xlu0 %v3094
        %v3096 = vpop.xlane.xlu0 %3095
        %v3097 = vadd.f32 %v2623, %v2625
        %3098 = vadd.xlane.f32.xlu0 %v3097
        %v3099 = vpop.xlane.xlu0 %3098
        %v3100 = vadd.f32 %v2627, %v2629
        %3101 = vadd.xlane.f32.xlu0 %v3100
        %v3102 = vpop.xlane.xlu0 %3101
        %v3103 = vadd.f32 %v2631, %v2633
        %3104 = vadd.xlane.f32.xlu0 %v3103
        %v3105 = vpop.xlane.xlu0 %3104
        %v3106 = vadd.f32 %v2635, %v2637
        %3107 = vadd.xlane.f32.xlu0 %v3106
        %v3108 = vpop.xlane.xlu0 %3107
        %v3109 = vadd.f32 %v2639, %v2641
        %3110 = vadd.xlane.f32.xlu0 %v3109
        %v3111 = vpop.xlane.xlu0 %3110
        %v3112 = vadd.f32 %v2643, %v2645
        %3113 = vadd.xlane.f32.xlu0 %v3112
        %v3114 = vpop.xlane.xlu0 %3113
        %v3115 = vadd.f32 %v2647, %v2649
        %3116 = vadd.xlane.f32.xlu0 %v3115
        %v3117 = vpop.xlane.xlu0 %3116
        %v3118 = vadd.f32 %v2651, %v2653
        %3119 = vadd.xlane.f32.xlu0 %v3118
        %v3120 = vpop.xlane.xlu0 %3119
        %v3121 = vadd.f32 %v2655, %v2657
        %3122 = vadd.xlane.f32.xlu0 %v3121
        %v3123 = vpop.xlane.xlu0 %3122
        %v3124 = vadd.f32 %v2659, %v2661
        %3125 = vadd.xlane.f32.xlu0 %v3124
        %v3126 = vpop.xlane.xlu0 %3125
        %v3127 = vadd.f32 %v2663, %v2665
        %3128 = vadd.xlane.f32.xlu0 %v3127
        %v3129 = vpop.xlane.xlu0 %3128
        %v3130 = vadd.f32 %v2667, %v2669
        %3131 = vadd.xlane.f32.xlu0 %v3130
        %v3132 = vpop.xlane.xlu0 %3131
        %v3133 = vadd.f32 %v2671, %v2673
        %3134 = vadd.xlane.f32.xlu0 %v3133
        %v3135 = vpop.xlane.xlu0 %3134
        %v3136 = vadd.f32 %v2675, %v2677
        %3137 = vadd.xlane.f32.xlu0 %v3136
        %v3138 = vpop.xlane.xlu0 %3137
        %v3139 = vadd.f32 %v2679, %v2681
        %3140 = vadd.xlane.f32.xlu0 %v3139
        %v3141 = vpop.xlane.xlu0 %3140
        %v3142 = vadd.f32 %v2683, %v2685
        %3143 = vadd.xlane.f32.xlu0 %v3142
        %v3144 = vpop.xlane.xlu0 %3143
        %v3145 = vadd.f32 %v2687, %v2689
        %3146 = vadd.xlane.f32.xlu0 %v3145
        %v3147 = vpop.xlane.xlu0 %3146
        %v3148 = vadd.f32 %v2691, %v2693
        %3149 = vadd.xlane.f32.xlu0 %v3148
        %v3150 = vpop.xlane.xlu0 %3149
        %v3151 = vadd.f32 %v2695, %v2697
        %3152 = vadd.xlane.f32.xlu0 %v3151
        %v3153 = vpop.xlane.xlu0 %3152
        %v3154 = vadd.f32 %v2699, %v2701
        %3155 = vadd.xlane.f32.xlu0 %v3154
        %v3156 = vpop.xlane.xlu0 %3155
        %v3157 = vadd.f32 %v2703, %v2705
        %3158 = vadd.xlane.f32.xlu0 %v3157
        %v3159 = vpop.xlane.xlu0 %3158
        %v3160 = vadd.f32 %v2707, %v2709
        %3161 = vadd.xlane.f32.xlu0 %v3160
        %v3162 = vpop.xlane.xlu0 %3161
        %v3163 = vadd.f32 %v2711, %v2713
        %3164 = vadd.xlane.f32.xlu0 %v3163
        %v3165 = vpop.xlane.xlu0 %3164
        %v3166 = vadd.f32 %v2715, %v2717
        %3167 = vadd.xlane.f32.xlu0 %v3166
        %v3168 = vpop.xlane.xlu0 %3167
        %v3169 = vadd.f32 %v2719, %v2721
        %3170 = vadd.xlane.f32.xlu0 %v3169
        %v3171 = vpop.xlane.xlu0 %3170
        %v3172 = vadd.f32 %v2723, %v2725
        %3173 = vadd.xlane.f32.xlu0 %v3172
        %v3174 = vpop.xlane.xlu0 %3173
        %v3175 = vadd.f32 %v2727, %v2729
        %3176 = vadd.xlane.f32.xlu0 %v3175
        %v3177 = vpop.xlane.xlu0 %3176
        %v3178 = vadd.f32 %v2731, %v2733
        %3179 = vadd.xlane.f32.xlu0 %v3178
        %v3180 = vpop.xlane.xlu0 %3179
        %v3181 = vadd.f32 %v2735, %v2737
        %3182 = vadd.xlane.f32.xlu0 %v3181
        %v3183 = vpop.xlane.xlu0 %3182
        %v3184 = vadd.f32 %v2739, %v2741
        %3185 = vadd.xlane.f32.xlu0 %v3184
        %v3186 = vpop.xlane.xlu0 %3185
        %v3187 = vadd.f32 %v2743, %v2745
        %3188 = vadd.xlane.f32.xlu0 %v3187
        %v3189 = vpop.xlane.xlu0 %3188
        %v3190 = vadd.f32 %v2747, %v2749
        %3191 = vadd.xlane.f32.xlu0 %v3190
        %v3192 = vpop.xlane.xlu0 %3191
        %v3193 = vadd.f32 %v2751, %v2753
        %3194 = vadd.xlane.f32.xlu0 %v3193
        %v3195 = vpop.xlane.xlu0 %3194
        %v3196 = vadd.f32 %v2755, %v2757
        %3197 = vadd.xlane.f32.xlu0 %v3196
        %v3198 = vpop.xlane.xlu0 %3197
        %v3199 = vadd.f32 %v2759, %v2761
        %3200 = vadd.xlane.f32.xlu0 %v3199
        %v3201 = vpop.xlane.xlu0 %3200
        %v3202 = vadd.f32 %v2763, %v2765
        %3203 = vadd.xlane.f32.xlu0 %v3202
        %v3204 = vpop.xlane.xlu0 %3203
        %v3205 = vadd.f32 %v2767, %v2769
        %3206 = vadd.xlane.f32.xlu0 %v3205
        %v3207 = vpop.xlane.xlu0 %3206
        %v3208 = vadd.f32 %v2771, %v2773
        %3209 = vadd.xlane.f32.xlu0 %v3208
        %v3210 = vpop.xlane.xlu0 %3209
        %v3211 = vadd.f32 %v2775, %v2777
        %3212 = vadd.xlane.f32.xlu0 %v3211
        %v3213 = vpop.xlane.xlu0 %3212
        %v3214 = vadd.f32 %v2779, %v2781
        %3215 = vadd.xlane.f32.xlu0 %v3214
        %v3216 = vpop.xlane.xlu0 %3215
        %v3217 = vadd.f32 %v2783, %v2785
        %3218 = vadd.xlane.f32.xlu0 %v3217
        %v3219 = vpop.xlane.xlu0 %3218
        %v3220 = vadd.f32 %v2787, %v2789
        %3221 = vadd.xlane.f32.xlu0 %v3220
        %v3222 = vpop.xlane.xlu0 %3221
        %v3223 = vadd.f32 %v2791, %v2793
        %3224 = vadd.xlane.f32.xlu0 %v3223
        %v3225 = vpop.xlane.xlu0 %3224
        %v3226 = vadd.f32 %v2795, %v2797
        %3227 = vadd.xlane.f32.xlu0 %v3226
        %v3228 = vpop.xlane.xlu0 %3227
        %v3229 = vadd.f32 %v2799, %v2801
        %3230 = vadd.xlane.f32.xlu0 %v3229
        %v3231 = vpop.xlane.xlu0 %3230
        %v3232 = vadd.f32 %v2803, %v2805
        %3233 = vadd.xlane.f32.xlu0 %v3232
        %v3234 = vpop.xlane.xlu0 %3233
        %v3235 = vadd.f32 %v2807, %v2809
        %3236 = vadd.xlane.f32.xlu0 %v3235
        %v3237 = vpop.xlane.xlu0 %3236
        %v3238 = vadd.f32 %v2811, %v2813
        %3239 = vadd.xlane.f32.xlu0 %v3238
        %v3240 = vpop.xlane.xlu0 %3239
        %v3241 = vadd.f32 %v2815, %v2817
        %3242 = vadd.xlane.f32.xlu0 %v3241
        %v3243 = vpop.xlane.xlu0 %3242
        %v3244 = vadd.f32 %v2819, %v2821
        %3245 = vadd.xlane.f32.xlu0 %v3244
        %v3246 = vpop.xlane.xlu0 %3245
        %v3247 = vadd.f32 %v2823, %v2825
        %3248 = vadd.xlane.f32.xlu0 %v3247
        %v3249 = vpop.xlane.xlu0 %3248
        %v3250 = vadd.f32 %v2827, %v2829
        %3251 = vadd.xlane.f32.xlu0 %v3250
        %v3252 = vpop.xlane.xlu0 %3251
        %v3253 = vadd.f32 %v2831, %v2833
        %3254 = vadd.xlane.f32.xlu0 %v3253
        %v3255 = vpop.xlane.xlu0 %3254
        %v3256 = vadd.f32 %v2835, %v2837
        %3257 = vadd.xlane.f32.xlu0 %v3256
        %v3258 = vpop.xlane.xlu0 %3257
        %v3259 = vadd.f32 %v2839, %v2841
        %3260 = vadd.xlane.f32.xlu0 %v3259
        %v3261 = vpop.xlane.xlu0 %3260
        %v3262 = vadd.f32 %v2843, %v2845
        %3263 = vadd.xlane.f32.xlu0 %v3262
        %v3264 = vpop.xlane.xlu0 %3263
        %v3265 = vadd.f32 %v2847, %v2849
        %3266 = vadd.xlane.f32.xlu0 %v3265
        %v3267 = vpop.xlane.xlu0 %3266
        %v3268 = vadd.f32 %v2851, %v2853
        %3269 = vadd.xlane.f32.xlu0 %v3268
        %v3270 = vpop.xlane.xlu0 %3269
        %v3271 = vadd.f32 %v2855, %v2857
        %3272 = vadd.xlane.f32.xlu0 %v3271
        %v3273 = vpop.xlane.xlu0 %3272
        %v3274 = vadd.f32 %v2859, %v2861
        %3275 = vadd.xlane.f32.xlu0 %v3274
        %v3276 = vpop.xlane.xlu0 %3275
        %v3277 = vadd.f32 %v2863, %v2865
        %3278 = vadd.xlane.f32.xlu0 %v3277
        %v3279 = vpop.xlane.xlu0 %3278
        %v3280 = vadd.f32 %v2867, %v2869
        %3281 = vadd.xlane.f32.xlu0 %v3280
        %v3282 = vpop.xlane.xlu0 %3281
        %v3283 = vadd.f32 %v2871, %v2873
        %3284 = vadd.xlane.f32.xlu0 %v3283
        %v3285 = vpop.xlane.xlu0 %3284
        %v3286 = vadd.f32 %v2875, %v2877
        %3287 = vadd.xlane.f32.xlu0 %v3286
        %v3288 = vpop.xlane.xlu0 %3287
        %v3289 = vadd.f32 %v2879, %v2881
        %3290 = vadd.xlane.f32.xlu0 %v3289
        %v3291 = vpop.xlane.xlu0 %3290
        %v3292 = vadd.f32 %v2883, %v2885
        %3293 = vadd.xlane.f32.xlu0 %v3292
        %v3294 = vpop.xlane.xlu0 %3293
        %v3295 = vadd.f32 %v2887, %v2889
        %3296 = vadd.xlane.f32.xlu0 %v3295
        %v3297 = vpop.xlane.xlu0 %3296
        %v3298 = vadd.f32 %v2891, %v2893
        %3299 = vadd.xlane.f32.xlu0 %v3298
        %v3300 = vpop.xlane.xlu0 %3299
        %v3301 = vadd.f32 %v2895, %v2897
        %3302 = vadd.xlane.f32.xlu0 %v3301
        %v3303 = vpop.xlane.xlu0 %3302
        %v3304 = vadd.f32 %v2899, %v2901
        %3305 = vadd.xlane.f32.xlu0 %v3304
        %v3306 = vpop.xlane.xlu0 %3305
        %v3307 = vadd.f32 %v2903, %v2905
        %3308 = vadd.xlane.f32.xlu0 %v3307
        %v3309 = vpop.xlane.xlu0 %3308
        %v3310 = vadd.f32 %v2907, %v2909
        %3311 = vadd.xlane.f32.xlu0 %v3310
        %v3312 = vpop.xlane.xlu0 %3311
        %v3313 = vadd.f32 %v2911, %v2913
        %3314 = vadd.xlane.f32.xlu0 %v3313
        %v3315 = vpop.xlane.xlu0 %3314
        %v3316 = vadd.f32 %v2915, %v2917
        %3317 = vadd.xlane.f32.xlu0 %v3316
        %v3318 = vpop.xlane.xlu0 %3317
        %v3319 = vadd.f32 %v2919, %v2921
        %3320 = vadd.xlane.f32.xlu0 %v3319
        %v3321 = vpop.xlane.xlu0 %3320
        %v3322 = vadd.f32 %v2923, %v2925
        %3323 = vadd.xlane.f32.xlu0 %v3322
        %v3324 = vpop.xlane.xlu0 %3323
        %v3325 = vadd.f32 %v2927, %v2929
        %3326 = vadd.xlane.f32.xlu0 %v3325
        %v3327 = vpop.xlane.xlu0 %3326
        %v3328 = vadd.f32 %v2931, %v2933
        %3329 = vadd.xlane.f32.xlu0 %v3328
        %v3330 = vpop.xlane.xlu0 %3329
        %v3331 = vadd.f32 %v2935, %v2937
        %3332 = vadd.xlane.f32.xlu0 %v3331
        %v3333 = vpop.xlane.xlu0 %3332
        %v3334 = vadd.f32 %v2939, %v2941
        %3335 = vadd.xlane.f32.xlu0 %v3334
        %v3336 = vpop.xlane.xlu0 %3335
        %v3337 = vadd.f32 %v2943, %v2945
        %3338 = vadd.xlane.f32.xlu0 %v3337
        %v3339 = vpop.xlane.xlu0 %3338
        %v3340 = vadd.f32 %v2947, %v2949
        %3341 = vadd.xlane.f32.xlu0 %v3340
        %v3342 = vpop.xlane.xlu0 %3341
        %v3343 = vadd.f32 %v2951, %v2953
        %3344 = vadd.xlane.f32.xlu0 %v3343
        %v3345 = vpop.xlane.xlu0 %3344
        %v3346 = vadd.f32 %v2955, %v2957
        %3347 = vadd.xlane.f32.xlu0 %v3346
        %v3348 = vpop.xlane.xlu0 %3347
        %v3349 = vadd.f32 %v2959, %v2961
        %3350 = vadd.xlane.f32.xlu0 %v3349
        %v3351 = vpop.xlane.xlu0 %3350
        %v3352 = vadd.f32 %v2963, %v2965
        %3353 = vadd.xlane.f32.xlu0 %v3352
        %v3354 = vpop.xlane.xlu0 %3353
        %v3355 = vadd.f32 %v2967, %v2969
        %3356 = vadd.xlane.f32.xlu0 %v3355
        %v3357 = vpop.xlane.xlu0 %3356
        %v3358 = vadd.f32 %v2971, %v2973
        %3359 = vadd.xlane.f32.xlu0 %v3358
        %v3360 = vpop.xlane.xlu0 %3359
        %v3361 = vadd.f32 %v2975, %v2977
        %3362 = vadd.xlane.f32.xlu0 %v3361
        %v3363 = vpop.xlane.xlu0 %3362
        %v3364 = vadd.f32 %v2979, %v2981
        %3365 = vadd.xlane.f32.xlu0 %v3364
        %v3366 = vpop.xlane.xlu0 %3365
        %v3367 = vadd.f32 %v2983, %v2985
        %3368 = vadd.xlane.f32.xlu0 %v3367
        %v3369 = vpop.xlane.xlu0 %3368
        %v3370 = vpack.c.bf16 %v2479, %v2475
        %v3371 = vpack.c.bf16 %v2481, %v2477
        %v3372 = vpack.c.bf16 %v2487, %v2483
        %v3373 = vpack.c.bf16 %v2489, %v2485
        %v3374 = vpack.c.bf16 %v2495, %v2491
        %v3375 = vpack.c.bf16 %v2497, %v2493
        %v3376 = vpack.c.bf16 %v2503, %v2499
        %v3377 = vpack.c.bf16 %v2505, %v2501
        %v3378 = vpack.c.bf16 %v2511, %v2507
        %v3379 = vpack.c.bf16 %v2513, %v2509
        %v3380 = vpack.c.bf16 %v2519, %v2515
        %v3381 = vpack.c.bf16 %v2521, %v2517
        %v3382 = vpack.c.bf16 %v2527, %v2523
        %v3383 = vpack.c.bf16 %v2529, %v2525
        %v3384 = vpack.c.bf16 %v2535, %v2531
        %v3385 = vpack.c.bf16 %v2537, %v2533
        %v3386 = vpack.c.bf16 %v2543, %v2539
        %v3387 = vpack.c.bf16 %v2545, %v2541
        %v3388 = vpack.c.bf16 %v2551, %v2547
        %v3389 = vpack.c.bf16 %v2553, %v2549
        %v3390 = vpack.c.bf16 %v2559, %v2555
        %v3391 = vpack.c.bf16 %v2561, %v2557
        %v3392 = vpack.c.bf16 %v2567, %v2563
        %v3393 = vpack.c.bf16 %v2569, %v2565
        %v3394 = vpack.c.bf16 %v2575, %v2571
        %v3395 = vpack.c.bf16 %v2577, %v2573
        %v3396 = vpack.c.bf16 %v2583, %v2579
        %v3397 = vpack.c.bf16 %v2585, %v2581
        %v3398 = vpack.c.bf16 %v2591, %v2587
        %v3399 = vpack.c.bf16 %v2593, %v2589
        %v3400 = vpack.c.bf16 %v2599, %v2595
        %v3401 = vpack.c.bf16 %v2601, %v2597
        %v3402 = vpack.c.bf16 %v2607, %v2603
        %v3403 = vpack.c.bf16 %v2609, %v2605
        %v3404 = vpack.c.bf16 %v2615, %v2611
        %v3405 = vpack.c.bf16 %v2617, %v2613
        %v3406 = vpack.c.bf16 %v2623, %v2619
        %v3407 = vpack.c.bf16 %v2625, %v2621
        %v3408 = vpack.c.bf16 %v2631, %v2627
        %v3409 = vpack.c.bf16 %v2633, %v2629
        %v3410 = vpack.c.bf16 %v2639, %v2635
        %v3411 = vpack.c.bf16 %v2641, %v2637
        %v3412 = vpack.c.bf16 %v2647, %v2643
        %v3413 = vpack.c.bf16 %v2649, %v2645
        %v3414 = vpack.c.bf16 %v2655, %v2651
        %v3415 = vpack.c.bf16 %v2657, %v2653
        %v3416 = vpack.c.bf16 %v2663, %v2659
        %v3417 = vpack.c.bf16 %v2665, %v2661
        %v3418 = vpack.c.bf16 %v2671, %v2667
        %v3419 = vpack.c.bf16 %v2673, %v2669
        %v3420 = vpack.c.bf16 %v2679, %v2675
        %v3421 = vpack.c.bf16 %v2681, %v2677
        %v3422 = vpack.c.bf16 %v2687, %v2683
        %v3423 = vpack.c.bf16 %v2689, %v2685
        %v3424 = vpack.c.bf16 %v2695, %v2691
        %v3425 = vpack.c.bf16 %v2697, %v2693
        %v3426 = vpack.c.bf16 %v2703, %v2699
        %v3427 = vpack.c.bf16 %v2705, %v2701
        %v3428 = vpack.c.bf16 %v2711, %v2707
        %v3429 = vpack.c.bf16 %v2713, %v2709
        %v3430 = vpack.c.bf16 %v2719, %v2715
        %v3431 = vpack.c.bf16 %v2721, %v2717
        %v3432 = vpack.c.bf16 %v2727, %v2723
        %v3433 = vpack.c.bf16 %v2729, %v2725
        %v3434 = vpack.c.bf16 %v2735, %v2731
        %v3435 = vpack.c.bf16 %v2737, %v2733
        %v3436 = vpack.c.bf16 %v2743, %v2739
        %v3437 = vpack.c.bf16 %v2745, %v2741
        %v3438 = vpack.c.bf16 %v2751, %v2747
        %v3439 = vpack.c.bf16 %v2753, %v2749
        %v3440 = vpack.c.bf16 %v2759, %v2755
        %v3441 = vpack.c.bf16 %v2761, %v2757
        %v3442 = vpack.c.bf16 %v2767, %v2763
        %v3443 = vpack.c.bf16 %v2769, %v2765
        %v3444 = vpack.c.bf16 %v2775, %v2771
        %v3445 = vpack.c.bf16 %v2777, %v2773
        %v3446 = vpack.c.bf16 %v2783, %v2779
        %v3447 = vpack.c.bf16 %v2785, %v2781
        %v3448 = vpack.c.bf16 %v2791, %v2787
        %v3449 = vpack.c.bf16 %v2793, %v2789
        %v3450 = vpack.c.bf16 %v2799, %v2795
        %v3451 = vpack.c.bf16 %v2801, %v2797
        %v3452 = vpack.c.bf16 %v2807, %v2803
        %v3453 = vpack.c.bf16 %v2809, %v2805
        %v3454 = vpack.c.bf16 %v2815, %v2811
        %v3455 = vpack.c.bf16 %v2817, %v2813
        %v3456 = vpack.c.bf16 %v2823, %v2819
        %v3457 = vpack.c.bf16 %v2825, %v2821
        %v3458 = vpack.c.bf16 %v2831, %v2827
        %v3459 = vpack.c.bf16 %v2833, %v2829
        %v3460 = vpack.c.bf16 %v2839, %v2835
        %v3461 = vpack.c.bf16 %v2841, %v2837
        %v3462 = vpack.c.bf16 %v2847, %v2843
        %v3463 = vpack.c.bf16 %v2849, %v2845
        %v3464 = vpack.c.bf16 %v2855, %v2851
        %v3465 = vpack.c.bf16 %v2857, %v2853
        %v3466 = vpack.c.bf16 %v2863, %v2859
        %v3467 = vpack.c.bf16 %v2865, %v2861
        %v3468 = vpack.c.bf16 %v2871, %v2867
        %v3469 = vpack.c.bf16 %v2873, %v2869
        %v3470 = vpack.c.bf16 %v2879, %v2875
        %v3471 = vpack.c.bf16 %v2881, %v2877
        %v3472 = vpack.c.bf16 %v2887, %v2883
        %v3473 = vpack.c.bf16 %v2889, %v2885
        %v3474 = vpack.c.bf16 %v2895, %v2891
        %v3475 = vpack.c.bf16 %v2897, %v2893
        %v3476 = vpack.c.bf16 %v2903, %v2899
        %v3477 = vpack.c.bf16 %v2905, %v2901
        %v3478 = vpack.c.bf16 %v2911, %v2907
        %v3479 = vpack.c.bf16 %v2913, %v2909
        %v3480 = vpack.c.bf16 %v2919, %v2915
        %v3481 = vpack.c.bf16 %v2921, %v2917
        %v3482 = vpack.c.bf16 %v2927, %v2923
        %v3483 = vpack.c.bf16 %v2929, %v2925
        %v3484 = vpack.c.bf16 %v2935, %v2931
        %v3485 = vpack.c.bf16 %v2937, %v2933
        %v3486 = vpack.c.bf16 %v2943, %v2939
        %v3487 = vpack.c.bf16 %v2945, %v2941
        %v3488 = vpack.c.bf16 %v2951, %v2947
        %v3489 = vpack.c.bf16 %v2953, %v2949
        %v3490 = vpack.c.bf16 %v2959, %v2955
        %v3491 = vpack.c.bf16 %v2961, %v2957
        %v3492 = vpack.c.bf16 %v2967, %v2963
        %v3493 = vpack.c.bf16 %v2969, %v2965
        %v3494 = vpack.c.bf16 %v2975, %v2971
        %v3495 = vpack.c.bf16 %v2977, %v2973
        %v3496 = vpack.c.bf16 %v2983, %v2979
        %v3497 = vpack.c.bf16 %v2985, %v2981
        %3498 = vmatprep.subr.bf16.mxu0 %v3371
        %3499 = vmatpush1.bf16.xpose.msra.mxu0 %v3370
        %3500 = vmatprep.subr.bf16.mxu0 %v3373
        %3501 = vmatpush1.bf16.xpose.msra.mxu0 %v3372
        %3502 = vmatprep.subr.bf16.mxu0 %v3375
        %3503 = vmatpush1.bf16.xpose.msra.mxu0 %v3374
        %3504 = vmatprep.subr.bf16.mxu0 %v3377
        %3505 = vmatpush1.bf16.xpose.msra.mxu0 %v3376
        %3506 = vmatprep.subr.bf16.mxu0 %v3379
        %3507 = vmatpush1.bf16.xpose.msra.mxu0 %v3378
        %3508 = vmatprep.subr.bf16.mxu0 %v3381
        %3509 = vmatpush1.bf16.xpose.msra.mxu0 %v3380
        %3510 = vmatprep.subr.bf16.mxu0 %v3383
        %3511 = vmatpush1.bf16.xpose.msra.mxu0 %v3382
        %3512 = vmatprep.subr.bf16.mxu0 %v3385
        %3513 = vmatpush1.bf16.xpose.msra.mxu0 %v3384
        %3514 = vmatprep.subr.bf16.mxu0 %v3387
        %3515 = vmatpush1.bf16.xpose.msra.mxu0 %v3386
        %3516 = vmatprep.subr.bf16.mxu0 %v3389
        %3517 = vmatpush1.bf16.xpose.msra.mxu0 %v3388
        %3518 = vmatprep.subr.bf16.mxu0 %v3391
        %3519 = vmatpush1.bf16.xpose.msra.mxu0 %v3390
        %3520 = vmatprep.subr.bf16.mxu0 %v3393
        %3521 = vmatpush1.bf16.xpose.msra.mxu0 %v3392
        %3522 = vmatprep.subr.bf16.mxu0 %v3395
        %3523 = vmatpush1.bf16.xpose.msra.mxu0 %v3394
        %3524 = vmatprep.subr.bf16.mxu0 %v3397
        %3525 = vmatpush1.bf16.xpose.msra.mxu0 %v3396
        %3526 = vmatprep.subr.bf16.mxu0 %v3399
        %3527 = vmatpush1.bf16.xpose.msra.mxu0 %v3398
        %3528 = vmatprep.subr.bf16.mxu0 %v3401
        %3529 = vmatpush1.bf16.xpose.msra.mxu0 %v3400
        %3530 = vmatprep.mubr.bf16.mxu0 %v709
        %3531 = vmatmul.mubr.bf16.gmra.mrb[0].mxu0 %v708
        %v3532 = vpop.f32.mrb[0].mxu0
        %v3533 = vadd.f32 0.0, %v3532
        %v3534 = vpop.f32.mrb[0].mxu0
        %v3535 = vadd.f32 0.0, %v3534
        %v3536 = vpop.f32.mrb[0].mxu0
        %v3537 = vpop.f32.mrb[0].mxu0
        %3538 = vdwg.mxu0
        %3539 = vmatprep.subr.bf16.mxu0 %v3403
        %3540 = vmatpush1.bf16.xpose.msra.mxu0 %v3402
        %3541 = vmatprep.subr.bf16.mxu0 %v3405
        %3542 = vmatpush1.bf16.xpose.msra.mxu0 %v3404
        %3543 = vmatprep.subr.bf16.mxu0 %v3407
        %3544 = vmatpush1.bf16.xpose.msra.mxu0 %v3406
        %3545 = vmatprep.subr.bf16.mxu0 %v3409
        %3546 = vmatpush1.bf16.xpose.msra.mxu0 %v3408
        %3547 = vmatprep.subr.bf16.mxu0 %v3411
        %3548 = vmatpush1.bf16.xpose.msra.mxu0 %v3410
        %3549 = vmatprep.subr.bf16.mxu0 %v3413
        %3550 = vmatpush1.bf16.xpose.msra.mxu0 %v3412
        %3551 = vmatprep.subr.bf16.mxu0 %v3415
        %3552 = vmatpush1.bf16.xpose.msra.mxu0 %v3414
        %3553 = vmatprep.subr.bf16.mxu0 %v3417
        %3554 = vmatpush1.bf16.xpose.msra.mxu0 %v3416
        %3555 = vmatprep.subr.bf16.mxu0 %v3419
        %3556 = vmatpush1.bf16.xpose.msra.mxu0 %v3418
        %3557 = vmatprep.subr.bf16.mxu0 %v3421
        %3558 = vmatpush1.bf16.xpose.msra.mxu0 %v3420
        %3559 = vmatprep.subr.bf16.mxu0 %v3423
        %3560 = vmatpush1.bf16.xpose.msra.mxu0 %v3422
        %3561 = vmatprep.subr.bf16.mxu0 %v3425
        %3562 = vmatpush1.bf16.xpose.msra.mxu0 %v3424
        %3563 = vmatprep.subr.bf16.mxu0 %v3427
        %3564 = vmatpush1.bf16.xpose.msra.mxu0 %v3426
        %3565 = vmatprep.subr.bf16.mxu0 %v3429
        %3566 = vmatpush1.bf16.xpose.msra.mxu0 %v3428
        %3567 = vmatprep.subr.bf16.mxu0 %v3431
        %3568 = vmatpush1.bf16.xpose.msra.mxu0 %v3430
        %3569 = vmatprep.subr.bf16.mxu0 %v3433
        %3570 = vmatpush1.bf16.xpose.msra.mxu0 %v3432
        %3571 = vmatprep.mubr.bf16.mxu0 %v711
        %3572 = vmatmul.mubr.bf16.gmra.mrb[0].mxu0 %v710
        %v3573 = vpop.f32.mrb[0].mxu0
        %v3574 = vadd.f32 0.0, %v3573
        %v3575 = vpop.f32.mrb[0].mxu0
        %v3576 = vadd.f32 0.0, %v3575
        %v3577 = vpop.f32.mrb[0].mxu0
        %v3578 = vpop.f32.mrb[0].mxu0
        %3579 = vdwg.mxu0
        %3580 = vmatprep.subr.bf16.mxu0 %v3435
        %3581 = vmatpush1.bf16.xpose.msra.mxu0 %v3434
        %3582 = vmatprep.subr.bf16.mxu0 %v3437
        %3583 = vmatpush1.bf16.xpose.msra.mxu0 %v3436
        %3584 = vmatprep.subr.bf16.mxu0 %v3439
        %3585 = vmatpush1.bf16.xpose.msra.mxu0 %v3438
        %3586 = vmatprep.subr.bf16.mxu0 %v3441
        %3587 = vmatpush1.bf16.xpose.msra.mxu0 %v3440
        %3588 = vmatprep.subr.bf16.mxu0 %v3443
        %3589 = vmatpush1.bf16.xpose.msra.mxu0 %v3442
        %3590 = vmatprep.subr.bf16.mxu0 %v3445
        %3591 = vmatpush1.bf16.xpose.msra.mxu0 %v3444
        %3592 = vmatprep.subr.bf16.mxu0 %v3447
        %3593 = vmatpush1.bf16.xpose.msra.mxu0 %v3446
        %3594 = vmatprep.subr.bf16.mxu0 %v3449
        %3595 = vmatpush1.bf16.xpose.msra.mxu0 %v3448
        %3596 = vmatprep.subr.bf16.mxu0 %v3451
        %3597 = vmatpush1.bf16.xpose.msra.mxu0 %v3450
        %3598 = vmatprep.subr.bf16.mxu0 %v3453
        %3599 = vmatpush1.bf16.xpose.msra.mxu0 %v3452
        %3600 = vmatprep.subr.bf16.mxu0 %v3455
        %3601 = vmatpush1.bf16.xpose.msra.mxu0 %v3454
        %3602 = vmatprep.subr.bf16.mxu0 %v3457
        %3603 = vmatpush1.bf16.xpose.msra.mxu0 %v3456
        %3604 = vmatprep.subr.bf16.mxu0 %v3459
        %3605 = vmatpush1.bf16.xpose.msra.mxu0 %v3458
        %3606 = vmatprep.subr.bf16.mxu0 %v3461
        %3607 = vmatpush1.bf16.xpose.msra.mxu0 %v3460
        %3608 = vmatprep.subr.bf16.mxu0 %v3463
        %3609 = vmatpush1.bf16.xpose.msra.mxu0 %v3462
        %3610 = vmatprep.subr.bf16.mxu0 %v3465
        %3611 = vmatpush1.bf16.xpose.msra.mxu0 %v3464
        %3612 = vmatprep.mubr.bf16.mxu0 %v713
        %3613 = vmatmul.mubr.bf16.gmra.mrb[0].mxu0 %v712
        %v3614 = vpop.f32.mrb[0].mxu0
        %v3615 = vadd.f32 0.0, %v3614
        %v3616 = vpop.f32.mrb[0].mxu0
        %v3617 = vadd.f32 0.0, %v3616
        %v3618 = vpop.f32.mrb[0].mxu0
        %v3619 = vpop.f32.mrb[0].mxu0
        %3620 = vdwg.mxu0
        %3621 = vmatprep.subr.bf16.mxu0 %v3467
        %3622 = vmatpush1.bf16.xpose.msra.mxu0 %v3466
        %3623 = vmatprep.subr.bf16.mxu0 %v3469
        %3624 = vmatpush1.bf16.xpose.msra.mxu0 %v3468
        %3625 = vmatprep.subr.bf16.mxu0 %v3471
        %3626 = vmatpush1.bf16.xpose.msra.mxu0 %v3470
        %3627 = vmatprep.subr.bf16.mxu0 %v3473
        %3628 = vmatpush1.bf16.xpose.msra.mxu0 %v3472
        %3629 = vmatprep.subr.bf16.mxu0 %v3475
        %3630 = vmatpush1.bf16.xpose.msra.mxu0 %v3474
        %3631 = vmatprep.subr.bf16.mxu0 %v3477
        %3632 = vmatpush1.bf16.xpose.msra.mxu0 %v3476
        %3633 = vmatprep.subr.bf16.mxu0 %v3479
        %3634 = vmatpush1.bf16.xpose.msra.mxu0 %v3478
        %3635 = vmatprep.subr.bf16.mxu0 %v3481
        %3636 = vmatpush1.bf16.xpose.msra.mxu0 %v3480
        %3637 = vmatprep.subr.bf16.mxu0 %v3483
        %3638 = vmatpush1.bf16.xpose.msra.mxu0 %v3482
        %3639 = vmatprep.subr.bf16.mxu0 %v3485
        %3640 = vmatpush1.bf16.xpose.msra.mxu0 %v3484
        %3641 = vmatprep.subr.bf16.mxu0 %v3487
        %3642 = vmatpush1.bf16.xpose.msra.mxu0 %v3486
        %3643 = vmatprep.subr.bf16.mxu0 %v3489
        %3644 = vmatpush1.bf16.xpose.msra.mxu0 %v3488
        %3645 = vmatprep.subr.bf16.mxu0 %v3491
        %3646 = vmatpush1.bf16.xpose.msra.mxu0 %v3490
        %3647 = vmatprep.subr.bf16.mxu0 %v3493
        %3648 = vmatpush1.bf16.xpose.msra.mxu0 %v3492
        %3649 = vmatprep.subr.bf16.mxu0 %v3495
        %3650 = vmatpush1.bf16.xpose.msra.mxu0 %v3494
        %3651 = vmatprep.subr.bf16.mxu0 %v3497
        %3652 = vmatpush1.bf16.xpose.msra.mxu0 %v3496
        %3653 = vmatprep.mubr.bf16.mxu0 %v715
        %3654 = vmatmul.mubr.bf16.gmra.mrb[0].mxu0 %v714
        %v3655 = vpop.f32.mrb[0].mxu0
        %v3656 = vadd.f32 0.0, %v3655
        %v3657 = vpop.f32.mrb[0].mxu0
        %v3658 = vadd.f32 0.0, %v3657
        %v3659 = vpop.f32.mrb[0].mxu0
        %v3660 = vpop.f32.mrb[0].mxu0
        %3661 = vdwg.mxu0
        %v3662 = vrcp.pop %v2988
        %v3663 = vrcp.pop %v2991
        %v3664 = vrcp.pop %v2994
        %v3665 = vrcp.pop %v2997
        %v3666 = vrcp.pop %v3000
        %v3667 = vrcp.pop %v3003
        %v3668 = vrcp.pop %v3006
        %v3669 = vrcp.pop %v3009
        %v3670 = vrcp.pop %v3012
        %v3671 = vrcp.pop %v3015
        %v3672 = vrcp.pop %v3018
        %v3673 = vrcp.pop %v3021
        %v3674 = vrcp.pop %v3024
        %v3675 = vrcp.pop %v3027
        %v3676 = vrcp.pop %v3030
        %v3677 = vrcp.pop %v3033
        %v3678 = vrcp.pop %v3036
        %v3679 = vrcp.pop %v3039
        %v3680 = vrcp.pop %v3042
        %v3681 = vrcp.pop %v3045
        %v3682 = vrcp.pop %v3048
        %v3683 = vrcp.pop %v3051
        %v3684 = vrcp.pop %v3054
        %v3685 = vrcp.pop %v3057
        %v3686 = vrcp.pop %v3060
        %v3687 = vrcp.pop %v3063
        %v3688 = vrcp.pop %v3066
        %v3689 = vrcp.pop %v3069
        %v3690 = vrcp.pop %v3072
        %v3691 = vrcp.pop %v3075
        %v3692 = vrcp.pop %v3078
        %v3693 = vrcp.pop %v3081
        %v3694 = vrcp.pop %v3084
        %v3695 = vrcp.pop %v3087
        %v3696 = vrcp.pop %v3090
        %v3697 = vrcp.pop %v3093
        %v3698 = vrcp.pop %v3096
        %v3699 = vrcp.pop %v3099
        %v3700 = vrcp.pop %v3102
        %v3701 = vrcp.pop %v3105
        %v3702 = vrcp.pop %v3108
        %v3703 = vrcp.pop %v3111
        %v3704 = vrcp.pop %v3114
        %v3705 = vrcp.pop %v3117
        %v3706 = vrcp.pop %v3120
        %v3707 = vrcp.pop %v3123
        %v3708 = vrcp.pop %v3126
        %v3709 = vrcp.pop %v3129
        %v3710 = vrcp.pop %v3132
        %v3711 = vrcp.pop %v3135
        %v3712 = vrcp.pop %v3138
        %v3713 = vrcp.pop %v3141
        %v3714 = vrcp.pop %v3144
        %v3715 = vrcp.pop %v3147
        %v3716 = vrcp.pop %v3150
        %v3717 = vrcp.pop %v3153
        %v3718 = vrcp.pop %v3156
        %v3719 = vrcp.pop %v3159
        %v3720 = vrcp.pop %v3162
        %v3721 = vrcp.pop %v3165
        %v3722 = vrcp.pop %v3168
        %v3723 = vrcp.pop %v3171
        %v3724 = vrcp.pop %v3174
        %v3725 = vrcp.pop %v3177
        %v3726 = vrcp.pop %v3180
        %v3727 = vrcp.pop %v3183
        %v3728 = vrcp.pop %v3186
        %v3729 = vrcp.pop %v3189
        %v3730 = vrcp.pop %v3192
        %v3731 = vrcp.pop %v3195
        %v3732 = vrcp.pop %v3198
        %v3733 = vrcp.pop %v3201
        %v3734 = vrcp.pop %v3204
        %v3735 = vrcp.pop %v3207
        %v3736 = vrcp.pop %v3210
        %v3737 = vrcp.pop %v3213
        %v3738 = vrcp.pop %v3216
        %v3739 = vrcp.pop %v3219
        %v3740 = vrcp.pop %v3222
        %v3741 = vrcp.pop %v3225
        %v3742 = vrcp.pop %v3228
        %v3743 = vrcp.pop %v3231
        %v3744 = vrcp.pop %v3234
        %v3745 = vrcp.pop %v3237
        %v3746 = vrcp.pop %v3240
        %v3747 = vrcp.pop %v3243
        %v3748 = vrcp.pop %v3246
        %v3749 = vrcp.pop %v3249
        %v3750 = vrcp.pop %v3252
        %v3751 = vrcp.pop %v3255
        %v3752 = vrcp.pop %v3258
        %v3753 = vrcp.pop %v3261
        %v3754 = vrcp.pop %v3264
        %v3755 = vrcp.pop %v3267
        %v3756 = vrcp.pop %v3270
        %v3757 = vrcp.pop %v3273
        %v3758 = vrcp.pop %v3276
        %v3759 = vrcp.pop %v3279
        %v3760 = vrcp.pop %v3282
        %v3761 = vrcp.pop %v3285
        %v3762 = vrcp.pop %v3288
        %v3763 = vrcp.pop %v3291
        %v3764 = vrcp.pop %v3294
        %v3765 = vrcp.pop %v3297
        %v3766 = vrcp.pop %v3300
        %v3767 = vrcp.pop %v3303
        %v3768 = vrcp.pop %v3306
        %v3769 = vrcp.pop %v3309
        %v3770 = vrcp.pop %v3312
        %v3771 = vrcp.pop %v3315
        %v3772 = vrcp.pop %v3318
        %v3773 = vrcp.pop %v3321
        %v3774 = vrcp.pop %v3324
        %v3775 = vrcp.pop %v3327
        %v3776 = vrcp.pop %v3330
        %v3777 = vrcp.pop %v3333
        %v3778 = vrcp.pop %v3336
        %v3779 = vrcp.pop %v3339
        %v3780 = vrcp.pop %v3342
        %v3781 = vrcp.pop %v3345
        %v3782 = vrcp.pop %v3348
        %v3783 = vrcp.pop %v3351
        %v3784 = vrcp.pop %v3354
        %v3785 = vrcp.pop %v3357
        %v3786 = vrcp.pop %v3360
        %v3787 = vrcp.pop %v3363
        %v3788 = vrcp.pop %v3366
        %v3789 = vrcp.pop %v3369
        %v3918 = vlaneseq
        %v3919 = vand.u32 %v3918, 127
        %v3920 = vlaneseq
        %v3921 = vshrl.u32 %v3920, 7
        %v3922 = vsub.s32 %v3919, %v3921
        %v3923 = vrot.slane %v3662, %v3922
        %v3924 = vadd.s32 %v3919, 4294967288
        %v3925 = vlaneseq
        %v3926 = vshrl.u32 %v3925, 7
        %v3927 = vsub.s32 %v3924, %v3926
        %v3928 = vrot.slane %v3663, %v3927
        %vm3929 = vcmask 130112
        %v3930 = vsel %vm3929, %v3928, %v3923
        %v3931 = vadd.s32 %v3919, 4294967280
        %v3932 = vlaneseq
        %v3933 = vshrl.u32 %v3932, 7
        %v3934 = vsub.s32 %v3931, %v3933
        %v3935 = vrot.slane %v3664, %v3934
        %vm3936 = vcmask 195712
        %v3937 = vsel %vm3936, %v3935, %v3930
        %v3938 = vadd.s32 %v3919, 4294967272
        %v3939 = vlaneseq
        %v3940 = vshrl.u32 %v3939, 7
        %v3941 = vsub.s32 %v3938, %v3940
        %v3942 = vrot.slane %v3665, %v3941
        %vm3943 = vcmask 261312
        %v3944 = vsel %vm3943, %v3942, %v3937
        %v3945 = vadd.s32 %v3919, 4294967264
        %v3946 = vlaneseq
        %v3947 = vshrl.u32 %v3946, 7
        %v3948 = vsub.s32 %v3945, %v3947
        %v3949 = vrot.slane %v3666, %v3948
        %vm3950 = vcmask 326912
        %v3951 = vsel %vm3950, %v3949, %v3944
        %v3952 = vadd.s32 %v3919, 4294967256
        %v3953 = vlaneseq
        %v3954 = vshrl.u32 %v3953, 7
        %v3955 = vsub.s32 %v3952, %v3954
        %v3956 = vrot.slane %v3667, %v3955
        %vm3957 = vcmask 392512
        %v3958 = vsel %vm3957, %v3956, %v3951
        %v3959 = vadd.s32 %v3919, 4294967248
        %v3960 = vlaneseq
        %v3961 = vshrl.u32 %v3960, 7
        %v3962 = vsub.s32 %v3959, %v3961
        %v3963 = vrot.slane %v3668, %v3962
        %vm3964 = vcmask 458112
        %v3965 = vsel %vm3964, %v3963, %v3958
        %v3966 = vadd.s32 %v3919, 4294967240
        %v3967 = vlaneseq
        %v3968 = vshrl.u32 %v3967, 7
        %v3969 = vsub.s32 %v3966, %v3968
        %v3970 = vrot.slane %v3669, %v3969
        %vm3971 = vcmask 523712
        %v3972 = vsel %vm3971, %v3970, %v3965
        %v3973 = vadd.s32 %v3919, 4294967232
        %v3974 = vlaneseq
        %v3975 = vshrl.u32 %v3974, 7
        %v3976 = vsub.s32 %v3973, %v3975
        %v3977 = vrot.slane %v3670, %v3976
        %vm3978 = vcmask 589312
        %v3979 = vsel %vm3978, %v3977, %v3972
        %v3980 = vadd.s32 %v3919, 4294967224
        %v3981 = vlaneseq
        %v3982 = vshrl.u32 %v3981, 7
        %v3983 = vsub.s32 %v3980, %v3982
        %v3984 = vrot.slane %v3671, %v3983
        %vm3985 = vcmask 654912
        %v3986 = vsel %vm3985, %v3984, %v3979
        %v3987 = vadd.s32 %v3919, 4294967216
        %v3988 = vlaneseq
        %v3989 = vshrl.u32 %v3988, 7
        %v3990 = vsub.s32 %v3987, %v3989
        %v3991 = vrot.slane %v3672, %v3990
        %vm3992 = vcmask 720512
        %v3993 = vsel %vm3992, %v3991, %v3986
        %v3994 = vadd.s32 %v3919, 4294967208
        %v3995 = vlaneseq
        %v3996 = vshrl.u32 %v3995, 7
        %v3997 = vsub.s32 %v3994, %v3996
        %v3998 = vrot.slane %v3673, %v3997
        %vm3999 = vcmask 786112
        %v4000 = vsel %vm3999, %v3998, %v3993
        %v4001 = vadd.s32 %v3919, 4294967200
        %v4002 = vlaneseq
        %v4003 = vshrl.u32 %v4002, 7
        %v4004 = vsub.s32 %v4001, %v4003
        %v4005 = vrot.slane %v3674, %v4004
        %vm4006 = vcmask 851712
        %v4007 = vsel %vm4006, %v4005, %v4000
        %v4008 = vadd.s32 %v3919, 4294967192
        %v4009 = vlaneseq
        %v4010 = vshrl.u32 %v4009, 7
        %v4011 = vsub.s32 %v4008, %v4010
        %v4012 = vrot.slane %v3675, %v4011
        %vm4013 = vcmask 917312
        %v4014 = vsel %vm4013, %v4012, %v4007
        %v4015 = vadd.s32 %v3919, 4294967184
        %v4016 = vlaneseq
        %v4017 = vshrl.u32 %v4016, 7
        %v4018 = vsub.s32 %v4015, %v4017
        %v4019 = vrot.slane %v3676, %v4018
        %vm4020 = vcmask 982912
        %v4021 = vsel %vm4020, %v4019, %v4014
        %v4022 = vadd.s32 %v3919, 4294967176
        %v4023 = vlaneseq
        %v4024 = vshrl.u32 %v4023, 7
        %v4025 = vsub.s32 %v4022, %v4024
        %v4026 = vrot.slane %v3677, %v4025
        %vm4027 = vcmask 1048512
        %v4028 = vsel %vm4027, %v4026, %v4021
        %v4029 = vlaneseq
        %v4030 = vshrl.u32 %v4029, 7
        %v4031 = vsub.s32 %v3919, %v4030
        %v4032 = vrot.slane %v3678, %v4031
        %v4033 = vlaneseq
        %v4034 = vshrl.u32 %v4033, 7
        %v4035 = vsub.s32 %v3924, %v4034
        %v4036 = vrot.slane %v3679, %v4035
        %v4037 = vsel %vm3929, %v4036, %v4032
        %v4038 = vlaneseq
        %v4039 = vshrl.u32 %v4038, 7
        %v4040 = vsub.s32 %v3931, %v4039
        %v4041 = vrot.slane %v3680, %v4040
        %v4042 = vsel %vm3936, %v4041, %v4037
        %v4043 = vlaneseq
        %v4044 = vshrl.u32 %v4043, 7
        %v4045 = vsub.s32 %v3938, %v4044
        %v4046 = vrot.slane %v3681, %v4045
        %v4047 = vsel %vm3943, %v4046, %v4042
        %v4048 = vlaneseq
        %v4049 = vshrl.u32 %v4048, 7
        %v4050 = vsub.s32 %v3945, %v4049
        %v4051 = vrot.slane %v3682, %v4050
        %v4052 = vsel %vm3950, %v4051, %v4047
        %v4053 = vlaneseq
        %v4054 = vshrl.u32 %v4053, 7
        %v4055 = vsub.s32 %v3952, %v4054
        %v4056 = vrot.slane %v3683, %v4055
        %v4057 = vsel %vm3957, %v4056, %v4052
        %v4058 = vlaneseq
        %v4059 = vshrl.u32 %v4058, 7
        %v4060 = vsub.s32 %v3959, %v4059
        %v4061 = vrot.slane %v3684, %v4060
        %v4062 = vsel %vm3964, %v4061, %v4057
        %v4063 = vlaneseq
        %v4064 = vshrl.u32 %v4063, 7
        %v4065 = vsub.s32 %v3966, %v4064
        %v4066 = vrot.slane %v3685, %v4065
        %v4067 = vsel %vm3971, %v4066, %v4062
        %v4068 = vlaneseq
        %v4069 = vshrl.u32 %v4068, 7
        %v4070 = vsub.s32 %v3973, %v4069
        %v4071 = vrot.slane %v3686, %v4070
        %v4072 = vsel %vm3978, %v4071, %v4067
        %v4073 = vlaneseq
        %v4074 = vshrl.u32 %v4073, 7
        %v4075 = vsub.s32 %v3980, %v4074
        %v4076 = vrot.slane %v3687, %v4075
        %v4077 = vsel %vm3985, %v4076, %v4072
        %v4078 = vlaneseq
        %v4079 = vshrl.u32 %v4078, 7
        %v4080 = vsub.s32 %v3987, %v4079
        %v4081 = vrot.slane %v3688, %v4080
        %v4082 = vsel %vm3992, %v4081, %v4077
        %v4083 = vlaneseq
        %v4084 = vshrl.u32 %v4083, 7
        %v4085 = vsub.s32 %v3994, %v4084
        %v4086 = vrot.slane %v3689, %v4085
        %v4087 = vsel %vm3999, %v4086, %v4082
        %v4088 = vlaneseq
        %v4089 = vshrl.u32 %v4088, 7
        %v4090 = vsub.s32 %v4001, %v4089
        %v4091 = vrot.slane %v3690, %v4090
        %v4092 = vsel %vm4006, %v4091, %v4087
        %v4093 = vlaneseq
        %v4094 = vshrl.u32 %v4093, 7
        %v4095 = vsub.s32 %v4008, %v4094
        %v4096 = vrot.slane %v3691, %v4095
        %v4097 = vsel %vm4013, %v4096, %v4092
        %v4098 = vlaneseq
        %v4099 = vshrl.u32 %v4098, 7
        %v4100 = vsub.s32 %v4015, %v4099
        %v4101 = vrot.slane %v3692, %v4100
        %v4102 = vsel %vm4020, %v4101, %v4097
        %v4103 = vlaneseq
        %v4104 = vshrl.u32 %v4103, 7
        %v4105 = vsub.s32 %v4022, %v4104
        %v4106 = vrot.slane %v3693, %v4105
        %v4107 = vsel %vm4027, %v4106, %v4102
        %v4108 = vlaneseq
        %v4109 = vshrl.u32 %v4108, 7
        %v4110 = vsub.s32 %v3919, %v4109
        %v4111 = vrot.slane %v3694, %v4110
        %v4112 = vlaneseq
        %v4113 = vshrl.u32 %v4112, 7
        %v4114 = vsub.s32 %v3924, %v4113
        %v4115 = vrot.slane %v3695, %v4114
        %v4116 = vsel %vm3929, %v4115, %v4111
        %v4117 = vlaneseq
        %v4118 = vshrl.u32 %v4117, 7
        %v4119 = vsub.s32 %v3931, %v4118
        %v4120 = vrot.slane %v3696, %v4119
        %v4121 = vsel %vm3936, %v4120, %v4116
        %v4122 = vlaneseq
        %v4123 = vshrl.u32 %v4122, 7
        %v4124 = vsub.s32 %v3938, %v4123
        %v4125 = vrot.slane %v3697, %v4124
        %v4126 = vsel %vm3943, %v4125, %v4121
        %v4127 = vlaneseq
        %v4128 = vshrl.u32 %v4127, 7
        %v4129 = vsub.s32 %v3945, %v4128
        %v4130 = vrot.slane %v3698, %v4129
        %v4131 = vsel %vm3950, %v4130, %v4126
        %v4132 = vlaneseq
        %v4133 = vshrl.u32 %v4132, 7
        %v4134 = vsub.s32 %v3952, %v4133
        %v4135 = vrot.slane %v3699, %v4134
        %v4136 = vsel %vm3957, %v4135, %v4131
        %v4137 = vlaneseq
        %v4138 = vshrl.u32 %v4137, 7
        %v4139 = vsub.s32 %v3959, %v4138
        %v4140 = vrot.slane %v3700, %v4139
        %v4141 = vsel %vm3964, %v4140, %v4136
        %v4142 = vlaneseq
        %v4143 = vshrl.u32 %v4142, 7
        %v4144 = vsub.s32 %v3966, %v4143
        %v4145 = vrot.slane %v3701, %v4144
        %v4146 = vsel %vm3971, %v4145, %v4141
        %v4147 = vlaneseq
        %v4148 = vshrl.u32 %v4147, 7
        %v4149 = vsub.s32 %v3973, %v4148
        %v4150 = vrot.slane %v3702, %v4149
        %v4151 = vsel %vm3978, %v4150, %v4146
        %v4152 = vlaneseq
        %v4153 = vshrl.u32 %v4152, 7
        %v4154 = vsub.s32 %v3980, %v4153
        %v4155 = vrot.slane %v3703, %v4154
        %v4156 = vsel %vm3985, %v4155, %v4151
        %v4157 = vlaneseq
        %v4158 = vshrl.u32 %v4157, 7
        %v4159 = vsub.s32 %v3987, %v4158
        %v4160 = vrot.slane %v3704, %v4159
        %v4161 = vsel %vm3992, %v4160, %v4156
        %v4162 = vlaneseq
        %v4163 = vshrl.u32 %v4162, 7
        %v4164 = vsub.s32 %v3994, %v4163
        %v4165 = vrot.slane %v3705, %v4164
        %v4166 = vsel %vm3999, %v4165, %v4161
        %v4167 = vlaneseq
        %v4168 = vshrl.u32 %v4167, 7
        %v4169 = vsub.s32 %v4001, %v4168
        %v4170 = vrot.slane %v3706, %v4169
        %v4171 = vsel %vm4006, %v4170, %v4166
        %v4172 = vlaneseq
        %v4173 = vshrl.u32 %v4172, 7
        %v4174 = vsub.s32 %v4008, %v4173
        %v4175 = vrot.slane %v3707, %v4174
        %v4176 = vsel %vm4013, %v4175, %v4171
        %v4177 = vlaneseq
        %v4178 = vshrl.u32 %v4177, 7
        %v4179 = vsub.s32 %v4015, %v4178
        %v4180 = vrot.slane %v3708, %v4179
        %v4181 = vsel %vm4020, %v4180, %v4176
        %v4182 = vlaneseq
        %v4183 = vshrl.u32 %v4182, 7
        %v4184 = vsub.s32 %v4022, %v4183
        %v4185 = vrot.slane %v3709, %v4184
        %v4186 = vsel %vm4027, %v4185, %v4181
        %v4187 = vlaneseq
        %v4188 = vshrl.u32 %v4187, 7
        %v4189 = vsub.s32 %v3919, %v4188
        %v4190 = vrot.slane %v3710, %v4189
        %v4191 = vlaneseq
        %v4192 = vshrl.u32 %v4191, 7
        %v4193 = vsub.s32 %v3924, %v4192
        %v4194 = vrot.slane %v3711, %v4193
        %v4195 = vsel %vm3929, %v4194, %v4190
        %v4196 = vlaneseq
        %v4197 = vshrl.u32 %v4196, 7
        %v4198 = vsub.s32 %v3931, %v4197
        %v4199 = vrot.slane %v3712, %v4198
        %v4200 = vsel %vm3936, %v4199, %v4195
        %v4201 = vlaneseq
        %v4202 = vshrl.u32 %v4201, 7
        %v4203 = vsub.s32 %v3938, %v4202
        %v4204 = vrot.slane %v3713, %v4203
        %v4205 = vsel %vm3943, %v4204, %v4200
        %v4206 = vlaneseq
        %v4207 = vshrl.u32 %v4206, 7
        %v4208 = vsub.s32 %v3945, %v4207
        %v4209 = vrot.slane %v3714, %v4208
        %v4210 = vsel %vm3950, %v4209, %v4205
        %v4211 = vlaneseq
        %v4212 = vshrl.u32 %v4211, 7
        %v4213 = vsub.s32 %v3952, %v4212
        %v4214 = vrot.slane %v3715, %v4213
        %v4215 = vsel %vm3957, %v4214, %v4210
        %v4216 = vlaneseq
        %v4217 = vshrl.u32 %v4216, 7
        %v4218 = vsub.s32 %v3959, %v4217
        %v4219 = vrot.slane %v3716, %v4218
        %v4220 = vsel %vm3964, %v4219, %v4215
        %v4221 = vlaneseq
        %v4222 = vshrl.u32 %v4221, 7
        %v4223 = vsub.s32 %v3966, %v4222
        %v4224 = vrot.slane %v3717, %v4223
        %v4225 = vsel %vm3971, %v4224, %v4220
        %v4226 = vlaneseq
        %v4227 = vshrl.u32 %v4226, 7
        %v4228 = vsub.s32 %v3973, %v4227
        %v4229 = vrot.slane %v3718, %v4228
        %v4230 = vsel %vm3978, %v4229, %v4225
        %v4231 = vlaneseq
        %v4232 = vshrl.u32 %v4231, 7
        %v4233 = vsub.s32 %v3980, %v4232
        %v4234 = vrot.slane %v3719, %v4233
        %v4235 = vsel %vm3985, %v4234, %v4230
        %v4236 = vlaneseq
        %v4237 = vshrl.u32 %v4236, 7
        %v4238 = vsub.s32 %v3987, %v4237
        %v4239 = vrot.slane %v3720, %v4238
        %v4240 = vsel %vm3992, %v4239, %v4235
        %v4241 = vlaneseq
        %v4242 = vshrl.u32 %v4241, 7
        %v4243 = vsub.s32 %v3994, %v4242
        %v4244 = vrot.slane %v3721, %v4243
        %v4245 = vsel %vm3999, %v4244, %v4240
        %v4246 = vlaneseq
        %v4247 = vshrl.u32 %v4246, 7
        %v4248 = vsub.s32 %v4001, %v4247
        %v4249 = vrot.slane %v3722, %v4248
        %v4250 = vsel %vm4006, %v4249, %v4245
        %v4251 = vlaneseq
        %v4252 = vshrl.u32 %v4251, 7
        %v4253 = vsub.s32 %v4008, %v4252
        %v4254 = vrot.slane %v3723, %v4253
        %v4255 = vsel %vm4013, %v4254, %v4250
        %v4256 = vlaneseq
        %v4257 = vshrl.u32 %v4256, 7
        %v4258 = vsub.s32 %v4015, %v4257
        %v4259 = vrot.slane %v3724, %v4258
        %v4260 = vsel %vm4020, %v4259, %v4255
        %v4261 = vlaneseq
        %v4262 = vshrl.u32 %v4261, 7
        %v4263 = vsub.s32 %v4022, %v4262
        %v4264 = vrot.slane %v3725, %v4263
        %v4265 = vsel %vm4027, %v4264, %v4260
        %v4266 = vlaneseq
        %v4267 = vshrl.u32 %v4266, 7
        %v4268 = vsub.s32 %v3919, %v4267
        %v4269 = vrot.slane %v3726, %v4268
        %v4270 = vlaneseq
        %v4271 = vshrl.u32 %v4270, 7
        %v4272 = vsub.s32 %v3924, %v4271
        %v4273 = vrot.slane %v3727, %v4272
        %v4274 = vsel %vm3929, %v4273, %v4269
        %v4275 = vlaneseq
        %v4276 = vshrl.u32 %v4275, 7
        %v4277 = vsub.s32 %v3931, %v4276
        %v4278 = vrot.slane %v3728, %v4277
        %v4279 = vsel %vm3936, %v4278, %v4274
        %v4280 = vlaneseq
        %v4281 = vshrl.u32 %v4280, 7
        %v4282 = vsub.s32 %v3938, %v4281
        %v4283 = vrot.slane %v3729, %v4282
        %v4284 = vsel %vm3943, %v4283, %v4279
        %v4285 = vlaneseq
        %v4286 = vshrl.u32 %v4285, 7
        %v4287 = vsub.s32 %v3945, %v4286
        %v4288 = vrot.slane %v3730, %v4287
        %v4289 = vsel %vm3950, %v4288, %v4284
        %v4290 = vlaneseq
        %v4291 = vshrl.u32 %v4290, 7
        %v4292 = vsub.s32 %v3952, %v4291
        %v4293 = vrot.slane %v3731, %v4292
        %v4294 = vsel %vm3957, %v4293, %v4289
        %v4295 = vlaneseq
        %v4296 = vshrl.u32 %v4295, 7
        %v4297 = vsub.s32 %v3959, %v4296
        %v4298 = vrot.slane %v3732, %v4297
        %v4299 = vsel %vm3964, %v4298, %v4294
        %v4300 = vlaneseq
        %v4301 = vshrl.u32 %v4300, 7
        %v4302 = vsub.s32 %v3966, %v4301
        %v4303 = vrot.slane %v3733, %v4302
        %v4304 = vsel %vm3971, %v4303, %v4299
        %v4305 = vlaneseq
        %v4306 = vshrl.u32 %v4305, 7
        %v4307 = vsub.s32 %v3973, %v4306
        %v4308 = vrot.slane %v3734, %v4307
        %v4309 = vsel %vm3978, %v4308, %v4304
        %v4310 = vlaneseq
        %v4311 = vshrl.u32 %v4310, 7
        %v4312 = vsub.s32 %v3980, %v4311
        %v4313 = vrot.slane %v3735, %v4312
        %v4314 = vsel %vm3985, %v4313, %v4309
        %v4315 = vlaneseq
        %v4316 = vshrl.u32 %v4315, 7
        %v4317 = vsub.s32 %v3987, %v4316
        %v4318 = vrot.slane %v3736, %v4317
        %v4319 = vsel %vm3992, %v4318, %v4314
        %v4320 = vlaneseq
        %v4321 = vshrl.u32 %v4320, 7
        %v4322 = vsub.s32 %v3994, %v4321
        %v4323 = vrot.slane %v3737, %v4322
        %v4324 = vsel %vm3999, %v4323, %v4319
        %v4325 = vlaneseq
        %v4326 = vshrl.u32 %v4325, 7
        %v4327 = vsub.s32 %v4001, %v4326
        %v4328 = vrot.slane %v3738, %v4327
        %v4329 = vsel %vm4006, %v4328, %v4324
        %v4330 = vlaneseq
        %v4331 = vshrl.u32 %v4330, 7
        %v4332 = vsub.s32 %v4008, %v4331
        %v4333 = vrot.slane %v3739, %v4332
        %v4334 = vsel %vm4013, %v4333, %v4329
        %v4335 = vlaneseq
        %v4336 = vshrl.u32 %v4335, 7
        %v4337 = vsub.s32 %v4015, %v4336
        %v4338 = vrot.slane %v3740, %v4337
        %v4339 = vsel %vm4020, %v4338, %v4334
        %v4340 = vlaneseq
        %v4341 = vshrl.u32 %v4340, 7
        %v4342 = vsub.s32 %v4022, %v4341
        %v4343 = vrot.slane %v3741, %v4342
        %v4344 = vsel %vm4027, %v4343, %v4339
        %v4345 = vlaneseq
        %v4346 = vshrl.u32 %v4345, 7
        %v4347 = vsub.s32 %v3919, %v4346
        %v4348 = vrot.slane %v3742, %v4347
        %v4349 = vlaneseq
        %v4350 = vshrl.u32 %v4349, 7
        %v4351 = vsub.s32 %v3924, %v4350
        %v4352 = vrot.slane %v3743, %v4351
        %v4353 = vsel %vm3929, %v4352, %v4348
        %v4354 = vlaneseq
        %v4355 = vshrl.u32 %v4354, 7
        %v4356 = vsub.s32 %v3931, %v4355
        %v4357 = vrot.slane %v3744, %v4356
        %v4358 = vsel %vm3936, %v4357, %v4353
        %v4359 = vlaneseq
        %v4360 = vshrl.u32 %v4359, 7
        %v4361 = vsub.s32 %v3938, %v4360
        %v4362 = vrot.slane %v3745, %v4361
        %v4363 = vsel %vm3943, %v4362, %v4358
        %v4364 = vlaneseq
        %v4365 = vshrl.u32 %v4364, 7
        %v4366 = vsub.s32 %v3945, %v4365
        %v4367 = vrot.slane %v3746, %v4366
        %v4368 = vsel %vm3950, %v4367, %v4363
        %v4369 = vlaneseq
        %v4370 = vshrl.u32 %v4369, 7
        %v4371 = vsub.s32 %v3952, %v4370
        %v4372 = vrot.slane %v3747, %v4371
        %v4373 = vsel %vm3957, %v4372, %v4368
        %v4374 = vlaneseq
        %v4375 = vshrl.u32 %v4374, 7
        %v4376 = vsub.s32 %v3959, %v4375
        %v4377 = vrot.slane %v3748, %v4376
        %v4378 = vsel %vm3964, %v4377, %v4373
        %v4379 = vlaneseq
        %v4380 = vshrl.u32 %v4379, 7
        %v4381 = vsub.s32 %v3966, %v4380
        %v4382 = vrot.slane %v3749, %v4381
        %v4383 = vsel %vm3971, %v4382, %v4378
        %v4384 = vlaneseq
        %v4385 = vshrl.u32 %v4384, 7
        %v4386 = vsub.s32 %v3973, %v4385
        %v4387 = vrot.slane %v3750, %v4386
        %v4388 = vsel %vm3978, %v4387, %v4383
        %v4389 = vlaneseq
        %v4390 = vshrl.u32 %v4389, 7
        %v4391 = vsub.s32 %v3980, %v4390
        %v4392 = vrot.slane %v3751, %v4391
        %v4393 = vsel %vm3985, %v4392, %v4388
        %v4394 = vlaneseq
        %v4395 = vshrl.u32 %v4394, 7
        %v4396 = vsub.s32 %v3987, %v4395
        %v4397 = vrot.slane %v3752, %v4396
        %v4398 = vsel %vm3992, %v4397, %v4393
        %v4399 = vlaneseq
        %v4400 = vshrl.u32 %v4399, 7
        %v4401 = vsub.s32 %v3994, %v4400
        %v4402 = vrot.slane %v3753, %v4401
        %v4403 = vsel %vm3999, %v4402, %v4398
        %v4404 = vlaneseq
        %v4405 = vshrl.u32 %v4404, 7
        %v4406 = vsub.s32 %v4001, %v4405
        %v4407 = vrot.slane %v3754, %v4406
        %v4408 = vsel %vm4006, %v4407, %v4403
        %v4409 = vlaneseq
        %v4410 = vshrl.u32 %v4409, 7
        %v4411 = vsub.s32 %v4008, %v4410
        %v4412 = vrot.slane %v3755, %v4411
        %v4413 = vsel %vm4013, %v4412, %v4408
        %v4414 = vlaneseq
        %v4415 = vshrl.u32 %v4414, 7
        %v4416 = vsub.s32 %v4015, %v4415
        %v4417 = vrot.slane %v3756, %v4416
        %v4418 = vsel %vm4020, %v4417, %v4413
        %v4419 = vlaneseq
        %v4420 = vshrl.u32 %v4419, 7
        %v4421 = vsub.s32 %v4022, %v4420
        %v4422 = vrot.slane %v3757, %v4421
        %v4423 = vsel %vm4027, %v4422, %v4418
        %v4424 = vlaneseq
        %v4425 = vshrl.u32 %v4424, 7
        %v4426 = vsub.s32 %v3919, %v4425
        %v4427 = vrot.slane %v3758, %v4426
        %v4428 = vlaneseq
        %v4429 = vshrl.u32 %v4428, 7
        %v4430 = vsub.s32 %v3924, %v4429
        %v4431 = vrot.slane %v3759, %v4430
        %v4432 = vsel %vm3929, %v4431, %v4427
        %v4433 = vlaneseq
        %v4434 = vshrl.u32 %v4433, 7
        %v4435 = vsub.s32 %v3931, %v4434
        %v4436 = vrot.slane %v3760, %v4435
        %v4437 = vsel %vm3936, %v4436, %v4432
        %v4438 = vlaneseq
        %v4439 = vshrl.u32 %v4438, 7
        %v4440 = vsub.s32 %v3938, %v4439
        %v4441 = vrot.slane %v3761, %v4440
        %v4442 = vsel %vm3943, %v4441, %v4437
        %v4443 = vlaneseq
        %v4444 = vshrl.u32 %v4443, 7
        %v4445 = vsub.s32 %v3945, %v4444
        %v4446 = vrot.slane %v3762, %v4445
        %v4447 = vsel %vm3950, %v4446, %v4442
        %v4448 = vlaneseq
        %v4449 = vshrl.u32 %v4448, 7
        %v4450 = vsub.s32 %v3952, %v4449
        %v4451 = vrot.slane %v3763, %v4450
        %v4452 = vsel %vm3957, %v4451, %v4447
        %v4453 = vlaneseq
        %v4454 = vshrl.u32 %v4453, 7
        %v4455 = vsub.s32 %v3959, %v4454
        %v4456 = vrot.slane %v3764, %v4455
        %v4457 = vsel %vm3964, %v4456, %v4452
        %v4458 = vlaneseq
        %v4459 = vshrl.u32 %v4458, 7
        %v4460 = vsub.s32 %v3966, %v4459
        %v4461 = vrot.slane %v3765, %v4460
        %v4462 = vsel %vm3971, %v4461, %v4457
        %v4463 = vlaneseq
        %v4464 = vshrl.u32 %v4463, 7
        %v4465 = vsub.s32 %v3973, %v4464
        %v4466 = vrot.slane %v3766, %v4465
        %v4467 = vsel %vm3978, %v4466, %v4462
        %v4468 = vlaneseq
        %v4469 = vshrl.u32 %v4468, 7
        %v4470 = vsub.s32 %v3980, %v4469
        %v4471 = vrot.slane %v3767, %v4470
        %v4472 = vsel %vm3985, %v4471, %v4467
        %v4473 = vlaneseq
        %v4474 = vshrl.u32 %v4473, 7
        %v4475 = vsub.s32 %v3987, %v4474
        %v4476 = vrot.slane %v3768, %v4475
        %v4477 = vsel %vm3992, %v4476, %v4472
        %v4478 = vlaneseq
        %v4479 = vshrl.u32 %v4478, 7
        %v4480 = vsub.s32 %v3994, %v4479
        %v4481 = vrot.slane %v3769, %v4480
        %v4482 = vsel %vm3999, %v4481, %v4477
        %v4483 = vlaneseq
        %v4484 = vshrl.u32 %v4483, 7
        %v4485 = vsub.s32 %v4001, %v4484
        %v4486 = vrot.slane %v3770, %v4485
        %v4487 = vsel %vm4006, %v4486, %v4482
        %v4488 = vlaneseq
        %v4489 = vshrl.u32 %v4488, 7
        %v4490 = vsub.s32 %v4008, %v4489
        %v4491 = vrot.slane %v3771, %v4490
        %v4492 = vsel %vm4013, %v4491, %v4487
        %v4493 = vlaneseq
        %v4494 = vshrl.u32 %v4493, 7
        %v4495 = vsub.s32 %v4015, %v4494
        %v4496 = vrot.slane %v3772, %v4495
        %v4497 = vsel %vm4020, %v4496, %v4492
        %v4498 = vlaneseq
        %v4499 = vshrl.u32 %v4498, 7
        %v4500 = vsub.s32 %v4022, %v4499
        %v4501 = vrot.slane %v3773, %v4500
        %v4502 = vsel %vm4027, %v4501, %v4497
        %v4503 = vlaneseq
        %v4504 = vshrl.u32 %v4503, 7
        %v4505 = vsub.s32 %v3919, %v4504
        %v4506 = vrot.slane %v3774, %v4505
        %v4507 = vlaneseq
        %v4508 = vshrl.u32 %v4507, 7
        %v4509 = vsub.s32 %v3924, %v4508
        %v4510 = vrot.slane %v3775, %v4509
        %v4511 = vsel %vm3929, %v4510, %v4506
        %v4512 = vlaneseq
        %v4513 = vshrl.u32 %v4512, 7
        %v4514 = vsub.s32 %v3931, %v4513
        %v4515 = vrot.slane %v3776, %v4514
        %v4516 = vsel %vm3936, %v4515, %v4511
        %v4517 = vlaneseq
        %v4518 = vshrl.u32 %v4517, 7
        %v4519 = vsub.s32 %v3938, %v4518
        %v4520 = vrot.slane %v3777, %v4519
        %v4521 = vsel %vm3943, %v4520, %v4516
        %v4522 = vlaneseq
        %v4523 = vshrl.u32 %v4522, 7
        %v4524 = vsub.s32 %v3945, %v4523
        %v4525 = vrot.slane %v3778, %v4524
        %v4526 = vsel %vm3950, %v4525, %v4521
        %v4527 = vlaneseq
        %v4528 = vshrl.u32 %v4527, 7
        %v4529 = vsub.s32 %v3952, %v4528
        %v4530 = vrot.slane %v3779, %v4529
        %v4531 = vsel %vm3957, %v4530, %v4526
        %v4532 = vlaneseq
        %v4533 = vshrl.u32 %v4532, 7
        %v4534 = vsub.s32 %v3959, %v4533
        %v4535 = vrot.slane %v3780, %v4534
        %v4536 = vsel %vm3964, %v4535, %v4531
        %v4537 = vlaneseq
        %v4538 = vshrl.u32 %v4537, 7
        %v4539 = vsub.s32 %v3966, %v4538
        %v4540 = vrot.slane %v3781, %v4539
        %v4541 = vsel %vm3971, %v4540, %v4536
        %v4542 = vlaneseq
        %v4543 = vshrl.u32 %v4542, 7
        %v4544 = vsub.s32 %v3973, %v4543
        %v4545 = vrot.slane %v3782, %v4544
        %v4546 = vsel %vm3978, %v4545, %v4541
        %v4547 = vlaneseq
        %v4548 = vshrl.u32 %v4547, 7
        %v4549 = vsub.s32 %v3980, %v4548
        %v4550 = vrot.slane %v3783, %v4549
        %v4551 = vsel %vm3985, %v4550, %v4546
        %v4552 = vlaneseq
        %v4553 = vshrl.u32 %v4552, 7
        %v4554 = vsub.s32 %v3987, %v4553
        %v4555 = vrot.slane %v3784, %v4554
        %v4556 = vsel %vm3992, %v4555, %v4551
        %v4557 = vlaneseq
        %v4558 = vshrl.u32 %v4557, 7
        %v4559 = vsub.s32 %v3994, %v4558
        %v4560 = vrot.slane %v3785, %v4559
        %v4561 = vsel %vm3999, %v4560, %v4556
        %v4562 = vlaneseq
        %v4563 = vshrl.u32 %v4562, 7
        %v4564 = vsub.s32 %v4001, %v4563
        %v4565 = vrot.slane %v3786, %v4564
        %v4566 = vsel %vm4006, %v4565, %v4561
        %v4567 = vlaneseq
        %v4568 = vshrl.u32 %v4567, 7
        %v4569 = vsub.s32 %v4008, %v4568
        %v4570 = vrot.slane %v3787, %v4569
        %v4571 = vsel %vm4013, %v4570, %v4566
        %v4572 = vlaneseq
        %v4573 = vshrl.u32 %v4572, 7
        %v4574 = vsub.s32 %v4015, %v4573
        %v4575 = vrot.slane %v3788, %v4574
        %v4576 = vsel %vm4020, %v4575, %v4571
        %v4577 = vlaneseq
        %v4578 = vshrl.u32 %v4577, 7
        %v4579 = vsub.s32 %v4022, %v4578
        %v4580 = vrot.slane %v3789, %v4579
        %v4581 = vsel %vm4027, %v4580, %v4576
        %vm4582 = vcmask 1042434
        %v4583 = vsel %vm4582, %v4028, %v4028
        %vm4584 = vcmask 1043459
        %v4585 = vsel %vm4584, %v4028, %v4583
        %vm4586 = vcmask 1044484
        %v4587 = vsel %vm4586, %v4028, %v4585
        %vm4588 = vcmask 1045509
        %v4589 = vsel %vm4588, %v4028, %v4587
        %vm4590 = vcmask 1046534
        %v4591 = vsel %vm4590, %v4028, %v4589
        %vm4592 = vcmask 1047559
        %v4593 = vsel %vm4592, %v4028, %v4591
        %v4594 = vsel %vm4582, %v4107, %v4107
        %v4595 = vsel %vm4584, %v4107, %v4594
        %v4596 = vsel %vm4586, %v4107, %v4595
        %v4597 = vsel %vm4588, %v4107, %v4596
        %v4598 = vsel %vm4590, %v4107, %v4597
        %v4599 = vsel %vm4592, %v4107, %v4598
        %v4600 = vsel %vm4582, %v4186, %v4186
        %v4601 = vsel %vm4584, %v4186, %v4600
        %v4602 = vsel %vm4586, %v4186, %v4601
        %v4603 = vsel %vm4588, %v4186, %v4602
        %v4604 = vsel %vm4590, %v4186, %v4603
        %v4605 = vsel %vm4592, %v4186, %v4604
        %v4606 = vsel %vm4582, %v4265, %v4265
        %v4607 = vsel %vm4584, %v4265, %v4606
        %v4608 = vsel %vm4586, %v4265, %v4607
        %v4609 = vsel %vm4588, %v4265, %v4608
        %v4610 = vsel %vm4590, %v4265, %v4609
        %v4611 = vsel %vm4592, %v4265, %v4610
        %v4612 = vsel %vm4582, %v4344, %v4344
        %v4613 = vsel %vm4584, %v4344, %v4612
        %v4614 = vsel %vm4586, %v4344, %v4613
        %v4615 = vsel %vm4588, %v4344, %v4614
        %v4616 = vsel %vm4590, %v4344, %v4615
        %v4617 = vsel %vm4592, %v4344, %v4616
        %v4618 = vsel %vm4582, %v4423, %v4423
        %v4619 = vsel %vm4584, %v4423, %v4618
        %v4620 = vsel %vm4586, %v4423, %v4619
        %v4621 = vsel %vm4588, %v4423, %v4620
        %v4622 = vsel %vm4590, %v4423, %v4621
        %v4623 = vsel %vm4592, %v4423, %v4622
        %v4624 = vsel %vm4582, %v4502, %v4502
        %v4625 = vsel %vm4584, %v4502, %v4624
        %v4626 = vsel %vm4586, %v4502, %v4625
        %v4627 = vsel %vm4588, %v4502, %v4626
        %v4628 = vsel %vm4590, %v4502, %v4627
        %v4629 = vsel %vm4592, %v4502, %v4628
        %v4630 = vsel %vm4582, %v4581, %v4581
        %v4631 = vsel %vm4584, %v4581, %v4630
        %v4632 = vsel %vm4586, %v4581, %v4631
        %v4633 = vsel %vm4588, %v4581, %v4632
        %v4634 = vsel %vm4590, %v4581, %v4633
        %v4635 = vsel %vm4592, %v4581, %v4634
        %v4644 = vmul.f32 %v3533, %v4593
        %v4645 = vmul.f32 %v3535, %v4599
        %v4646 = vmul.f32 %v3574, %v4605
        %v4647 = vmul.f32 %v3576, %v4611
        %v4648 = vmul.f32 %v3615, %v4617
        %v4649 = vmul.f32 %v3617, %v4623
        %v4650 = vmul.f32 %v3656, %v4629
        %v4651 = vmul.f32 %v3658, %v4635
        %v4652 = vld [vmem:[%s5] sm:$0xf]
        %v4653 = vld [vmem:[%s5 + $0x4] sm:$0xf]
        %v4654 = vld [vmem:[%s5 + $0x8] sm:$0xf]
        %v4655 = vld [vmem:[%s5 + $0xc] sm:$0xf]
        %v4656 = vpack.c.bf16 %v4646, %v4644
        %v4657 = vpack.c.bf16 %v4647, %v4645
        %v4658 = vpack.c.bf16 %v4650, %v4648
        %v4659 = vpack.c.bf16 %v4651, %v4649
        %v4660 = vld [vmem:[%s6] sm:$0xff]
        %v4661 = vld [vmem:[%s6 + $0x8] sm:$0xff]
        %v4662 = vld [vmem:[%s6 + $0x10] sm:$0xff]
        %v4663 = vld [vmem:[%s6 + $0x18] sm:$0xff]
        %4665 = vset.pattern.permute.xlu0 0
        %4666 = vperm.xlu0 %4665, %v4660
        %v4667 = vpop.permute.xlu0 %4666
        %4670 = vset.pattern.permute.xlu0 0
        %4671 = vperm.xlu0 %4670, %v4661
        %v4672 = vpop.permute.xlu0 %4671
        %4675 = vset.pattern.permute.xlu0 0
        %4676 = vperm.xlu0 %4675, %v4662
        %v4677 = vpop.permute.xlu0 %4676
        %4680 = vset.pattern.permute.xlu0 0
        %4681 = vperm.xlu0 %4680, %v4663
        %v4682 = vpop.permute.xlu0 %4681
        %v4688 = vunpack.c.l.b16 %v4652
        %v4689 = vunpack.c.l.b16 %v4653
        %v4690 = vunpack.c.l.b16 %v4654
        %v4691 = vunpack.c.l.b16 %v4655
        %v4692 = vpack.c.b16 %v4689, %v4688
        %v4693 = vpack.c.b16 %v4691, %v4690
        %v4695 = vsel %vm580, %v4692, 0
        %v4698 = vsel %vm580, %v4693, 0
        %4700 = vmatprep.subr.bf16.mxu0 %v4657
        %4701 = vmatpush1.bf16.msra.mxu0 %v4656
        %4702 = vmatprep.subr.bf16.mxu0 %v4659
        %4703 = vmatpush1.bf16.msra.mxu0 %v4658
        %4704 = vmatprep.subr.bf16.mxu0 0
        %4705 = vmatpush1.bf16.msra.mxu0 0
        %4706 = vmatprep.subr.bf16.mxu0 0
        %4707 = vmatpush1.bf16.msra.mxu0 0
        %4708 = vmatprep.subr.bf16.mxu0 0
        %4709 = vmatpush1.bf16.msra.mxu0 0
        %4710 = vmatprep.subr.bf16.mxu0 0
        %4711 = vmatpush1.bf16.msra.mxu0 0
        %4712 = vmatprep.subr.bf16.mxu0 0
        %4713 = vmatpush1.bf16.msra.mxu0 0
        %4714 = vmatprep.subr.bf16.mxu0 0
        %4715 = vmatpush1.bf16.msra.mxu0 0
        %4716 = vmatprep.subr.bf16.mxu0 0
        %4717 = vmatpush1.bf16.msra.mxu0 0
        %4718 = vmatprep.subr.bf16.mxu0 0
        %4719 = vmatpush1.bf16.msra.mxu0 0
        %4720 = vmatprep.subr.bf16.mxu0 0
        %4721 = vmatpush1.bf16.msra.mxu0 0
        %4722 = vmatprep.subr.bf16.mxu0 0
        %4723 = vmatpush1.bf16.msra.mxu0 0
        %4724 = vmatprep.subr.bf16.mxu0 0
        %4725 = vmatpush1.bf16.msra.mxu0 0
        %4726 = vmatprep.subr.bf16.mxu0 0
        %4727 = vmatpush1.bf16.msra.mxu0 0
        %4728 = vmatprep.subr.bf16.mxu0 0
        %4729 = vmatpush1.bf16.msra.mxu0 0
        %4730 = vmatprep.subr.bf16.mxu0 0
        %4731 = vmatpush1.bf16.msra.mxu0 0
        %4732 = vmatprep.mubr.bf16.mxu0 0
        %4733 = vmatmul.mubr.bf16.gmra.mrb[0].mxu0 %v4695
        %v4734 = vpop.f32.mrb[0].mxu0
        %v4735 = vadd.f32 %v4667, %v4734
        %v4736 = vpop.f32.mrb[0].mxu0
        %v4737 = vadd.f32 %v4667, %v4736
        %v4738 = vpop.f32.mrb[0].mxu0
        %v4739 = vadd.f32 %v4672, %v4738
        %v4740 = vpop.f32.mrb[0].mxu0
        %v4741 = vadd.f32 %v4672, %v4740
        %4742 = vmatprep.mubr.bf16.mxu0 0
        %4743 = vmatmul.mubr.bf16.gmra.mrb[0].mxu0 %v4698
        %v4744 = vpop.f32.mrb[0].mxu0
        %v4745 = vadd.f32 %v4677, %v4744
        %v4746 = vpop.f32.mrb[0].mxu0
        %v4747 = vadd.f32 %v4677, %v4746
        %v4748 = vpop.f32.mrb[0].mxu0
        %v4749 = vadd.f32 %v4682, %v4748
        %v4750 = vpop.f32.mrb[0].mxu0
        %v4751 = vadd.f32 %v4682, %v4750
        %4752 = vdwg.mxu0
        %v4753 = vadd.f32 %v309, %v4735
        %v4754 = vadd.f32 %v310, %v4737
        %v4755 = vadd.f32 %v311, %v4739
        %v4756 = vadd.f32 %v312, %v4741
        %v4757 = vadd.f32 %v313, %v4745
        %v4758 = vadd.f32 %v314, %v4747
        %v4759 = vadd.f32 %v315, %v4749
        %v4760 = vadd.f32 %v316, %v4751
        %4761 = vst [vmem:[%s298] sm:$0xff] %v4753
        %4762 = vst [vmem:[%s298 + $0x8] sm:$0xff] %v4754
        %4763 = vst [vmem:[%s298 + $0x10] sm:$0xff] %v4755
        %4764 = vst [vmem:[%s298 + $0x18] sm:$0xff] %v4756
        %4765 = vst [vmem:[%s298 + $0x20] sm:$0xff] %v4757
        %4766 = vst [vmem:[%s298 + $0x28] sm:$0xff] %v4758
        %4767 = vst [vmem:[%s298 + $0x30] sm:$0xff] %v4759
        %4768 = vst [vmem:[%s298 + $0x38] sm:$0xff] %v4760
        %s4769 = sand.u32 %s203, 1
        %s4770 = scalar_lea.sflag [#allocation3], %s4769
        %s4771 = sand.u32 %s203, 1
        %s4772 = smul.addr %s4771, 64
        %s4773 = scalar_lea.vmem [#allocation2], %s4772
        // Predicated region
        $region53: #{tpu_custom_call.1} parent=51 // pred_check
          %p4774 = pneg %p213
        $region54: #{tpu_custom_call.1} parent=51 // pred_check_branch
          %4776 = sbr.rel (%p4774) target = $region56
        $region55: #{tpu_custom_call.1} parent=51 // pred_region
          %s4778 = ssub.s32 1024, 1024
          %4779 = vsyncadd %s4770, %s4778
          %s4780 = smul.addr %s22, 8
          %s4781 = smul.addr %s4780, 128
          %s4782 = scalar_lea.hbm %s8, %s4781
          %s4783 = sshll.u32 %s4773, 4
          %s4784 = int_to_ptr.vmem [resolvable:$true] %s4783
          %4789 = dma.vmem_to_hbm [thread:$0]  %s4784, 1024, %s4782, %s4770, 256, 256, 16
        $region56: #{tpu_custom_call.1} parent=51 // pred_fallthru
          _
      $region52: #{tpu_custom_call.1} parent=5 // pred_fallthru
        _
      %p4790 = scmp.le.s32.totalorder 2, %s17
      // Predicated region
      $region57: #{tpu_custom_call.1} parent=5 // pred_check
        %p4791 = pneg %p4790
      $region58: #{tpu_custom_call.1} parent=5 // pred_check_branch
        %4793 = sbr.rel (%p4791) target = $region60
      $region59: #{tpu_custom_call.1} parent=5 // pred_region
        %s4794 = ssub.s32 %s17, 2
        // Predicated region
        $region61: #{tpu_custom_call.1} parent=59 // pred_check
          %p4795 = pneg %p219
        $region62: #{tpu_custom_call.1} parent=59 // pred_check_branch
          %4797 = sbr.rel (%p4795) target = $region64
        $region63: #{tpu_custom_call.1} parent=59 // pred_region
          %s4798 = sand.u32 %s204, 1
          %s4799 = scalar_lea.sflag [#allocation3], %s4798
          %s4800 = sand.u32 %s204, 1
          %s4801 = smul.addr %s4800, 64
          %s4802 = scalar_lea.vmem [#allocation2], %s4801
          %4803 = dma.done %s4799, 1024
        $region64: #{tpu_custom_call.1} parent=59 // pred_fallthru
          _
      $region60: #{tpu_custom_call.1} parent=5 // pred_fallthru
        _
    $region6: #{tpu_custom_call.1} parent=1 // loop_footer
      %s21 = sadd.s32 1, %s17
    $region7: #{tpu_custom_call.1} parent=1 // loop_footer_branch
      %16 = sbr.rel target = $region3
    $region8: #{tpu_custom_call.1} parent=1 // loop_exit
      _
    %4804 = vsyncpa [#allocation3], 1
    %s4805 = scalar_lea.sflag [#allocation3], 1
    %4806 = vsyncpa %s4805, 1

</llo_original>
